<compile_context>
chip_gen: v7x
topology: tpu7x:2x2x1
jax: 0.10.0
libtpu: 0.0.40
codegen_flags: <defaults>
</compile_context>

<pallas_src>
import functools
import math

import jax
import jax.numpy as jnp
from jax import lax
from jax.experimental import pallas as pl
from jax.experimental.pallas import tpu as pltpu


_VMEM_LIMIT = 32 * 1024 * 1024   # explicit cap, safe for v7x's 64 MiB VMEM


def _round_up(x, m):
    return ((x + m - 1) // m) * m


def _full_spec(shape):
    nd = len(shape)
    return pl.BlockSpec(tuple(shape), lambda i, _n=nd: (0,) * _n)


# --------------------------------------------------------------------------
# Generic tiled matmul: M tiled ("parallel"), K tiled with an f32 accumulator
# ("arbitrary"), optional bias / ReLU, bf16 or f32 MXU inputs.
# --------------------------------------------------------------------------
def _make_linear_kernel(relu, has_bias):
    def kernel(*refs):
        if has_bias:
            x_ref, w_ref, b_ref, o_ref, acc_ref = refs
        else:
            x_ref, w_ref, o_ref, acc_ref = refs
            b_ref = None
        k = pl.program_id(1)

        @pl.when(k == 0)
        def _():
            acc_ref[...] = jnp.zeros_like(acc_ref)

        acc_ref[...] += jnp.dot(x_ref[...], w_ref[...],
                                preferred_element_type=jnp.float32)

        @pl.when(k == pl.num_programs(1) - 1)
        def _():
            acc = acc_ref[...]
            if has_bias:
                acc = acc + b_ref[...]
            if relu:
                acc = jnp.maximum(acc, 0.0)
            o_ref[...] = acc.astype(o_ref.dtype)

    return kernel


def linear_pallas(x, w, b=None, relu=False, tm=256, tk=512,
                  compute_dtype=jnp.bfloat16, out_dtype=jnp.float32):
    """(M, K) @ (K, N) [+ b] -> (M, N).  M and K tiled, N kept whole."""
    M, K = x.shape
    N = w.shape[1]
    tm = min(tm, _round_up(M, 8))
    tk = min(tk, _round_up(K, 128))
    Mp = _round_up(M, tm)
    Kp = _round_up(K, tk)
    x = x.astype(compute_dtype)
    w = w.astype(compute_dtype)
    if Mp != M or Kp != K:
        x = jnp.pad(x, ((0, Mp - M), (0, Kp - K)))
    if Kp != K:
        w = jnp.pad(w, ((0, Kp - K), (0, 0)))
    nk = Kp // tk

    in_specs = [
        pl.BlockSpec((tm, tk), lambda i, k: (i, k)),
        pl.BlockSpec((tk, N), lambda i, k: (k, 0)),
    ]
    args = [x, w]
    if b is not None:
        in_specs.append(pl.BlockSpec((1, N), lambda i, k: (0, 0)))
        args.append(b.reshape(1, N).astype(jnp.float32))

    out = pl.pallas_call(
        _make_linear_kernel(relu, b is not None),
        out_shape=jax.ShapeDtypeStruct((Mp, N), out_dtype),
        grid_spec=pltpu.PrefetchScalarGridSpec(
            num_scalar_prefetch=0,
            grid=(Mp // tm, nk),
            in_specs=in_specs,
            out_specs=pl.BlockSpec((tm, N), lambda i, k: (i, 0)),
            scratch_shapes=[pltpu.VMEM((tm, N), jnp.float32)],
        ),
        compiler_params=pltpu.CompilerParams(
            dimension_semantics=("parallel", "arbitrary"),
            vmem_limit_bytes=_VMEM_LIMIT),
    )(*args)
    return out[:M]


# --------------------------------------------------------------------------
# Encoder layer kernel 1: banded Conv3d (in-kernel tap accumulation, no HBM
# im2col) + per-batch BatchNorm sum / sum-of-squares side outputs.
#   x_band : (B, T+2, H+2, Cin*(W+2))  channel-before-width, zero padded
#   w_band : (9, Cin*(W+2), Cout*W)    banded weight per (kt, kh) tap pair
#   y      : (B, T*H, Cout*W)          lane-dense conv+bias output
#   stats  : (B, 8, Cout*W)            row0 = sum, row1 = sum of squares
# --------------------------------------------------------------------------
def _make_conv_stats_kernel(T, H):
    def kernel(x_ref, w_ref, b_ref, y_ref, st_ref):
        N = y_ref.shape[-1]
        bias = b_ref[...]
        s1 = jnp.zeros((1, N), jnp.float32)
        s2 = jnp.zeros((1, N), jnp.float32)
        for t in range(T):
            acc = jnp.zeros((H, N), jnp.float32)
            for kt in range(3):
                xt = x_ref[t + kt]                       # (H+2, Cin*(W+2))
                for kh in range(3):
                    acc = acc + jnp.dot(
                        xt[kh:kh + H, :], w_ref[kt * 3 + kh],
                        preferred_element_type=jnp.float32)
            acc = acc + bias
            y_ref[t * H:(t + 1) * H, :] = acc
            s1 = s1 + jnp.sum(acc, axis=0, keepdims=True)
            s2 = s2 + jnp.sum(acc * acc, axis=0, keepdims=True)
        st_ref[...] = jnp.concatenate(
            [s1, s2, jnp.zeros((6, N), jnp.float32)], axis=0)

    return kernel


# --------------------------------------------------------------------------
# Encoder layer kernel 2: fused BN-apply + ReLU + MaxPool3d(1,2,2).
# Pooling = adjacent max along rows / lanes followed by exact 0/1 selection
# matmuls (pure MXU, no strided or reshaping relayouts).
# --------------------------------------------------------------------------
def _bn_relu_pool_kernel(y_ref, sc_ref, sh_ref, selh_ref, selw_ref, o_ref):
    y = jnp.maximum(y_ref[...] * sc_ref[...] + sh_ref[...], 0.0)  # (T*H, Cout*W)
    mh = jnp.maximum(y[:-1, :], y[1:, :])                         # adjacent-h max
    yh = jnp.dot(selh_ref[...], mh, preferred_element_type=jnp.float32)
    mw = jnp.maximum(yh[:, :-1], yh[:, 1:])                       # adjacent-w max
    yw = jnp.dot(mw, selw_ref[...], preferred_element_type=jnp.float32)
    o_ref[...] = yw.astype(o_ref.dtype)


def _build_band_weight(wt, W):
    """wt: (Cout, Cin, 3, 3, 3) -> banded (9, Cin*(W+2), Cout*W)."""
    Cout, Cin = wt.shape[0], wt.shape[1]
    Wp2 = W + 2
    wi = jnp.arange(Wp2)[:, None]
    wo = jnp.arange(W)[None, :]
    kw = wi - wo
    valid = ((kw >= 0) & (kw < 3)).astype(wt.dtype)
    kwc = jnp.clip(kw, 0, 2)
    wt_p = jnp.transpose(wt, (2, 3, 1, 0, 4))              # (kt, kh, ci, co, kw)
    band = wt_p[:, :, :, :, kwc] * valid[None, None, None, None, :, :]
    band = jnp.transpose(band, (0, 1, 2, 4, 3, 5))         # (kt, kh, ci, wi, co, w)
    return band.reshape(9, Cin * Wp2, Cout * W)


def _encoder_layer_pallas(x_band, layer, B, T, H, W, Cin, Cout):
    K = Cin * (W + 2)
    N = Cout * W
    TH = T * H
    w_band = _build_band_weight(layer["w"], W)
    bias_exp = jnp.repeat(layer["b"], W).reshape(1, N).astype(jnp.float32)

    y, stats = pl.pallas_call(
        _make_conv_stats_kernel(T, H),
        out_shape=(jax.ShapeDtypeStruct((B, TH, N), jnp.float32),
                   jax.ShapeDtypeStruct((B, 8, N), jnp.float32)),
        grid_spec=pltpu.PrefetchScalarGridSpec(
            num_scalar_prefetch=0,
            grid=(B,),
            in_specs=[
                pl.BlockSpec((None, T + 2, H + 2, K), lambda b: (b, 0, 0, 0)),
                pl.BlockSpec((9, K, N), lambda b: (0, 0, 0)),
                pl.BlockSpec((1, N), lambda b: (0, 0)),
            ],
            out_specs=(
                pl.BlockSpec((None, TH, N), lambda b: (b, 0, 0)),
                pl.BlockSpec((None, 8, N), lambda b: (b, 0, 0)),
            ),
        ),
        compiler_params=pltpu.CompilerParams(
            dimension_semantics=("parallel",),
            vmem_limit_bytes=_VMEM_LIMIT),
    )(x_band.astype(jnp.bfloat16), w_band.astype(jnp.bfloat16), bias_exp)

    # BatchNorm3d training-mode statistics from the per-lane partial sums.
    cnt = jnp.float32(B * T * H * W)
    s = jnp.sum(stats[:, 0, :], axis=0).reshape(Cout, W).sum(axis=1)
    ss = jnp.sum(stats[:, 1, :], axis=0).reshape(Cout, W).sum(axis=1)
    mean = s / cnt
    var = jnp.maximum(ss / cnt - mean * mean, 0.0)
    scale_c = layer["gamma"] / jnp.sqrt(var + 1e-5)
    shift_c = layer["beta"] - mean * scale_c
    scale = jnp.repeat(scale_c, W).reshape(1, N).astype(jnp.float32)
    shift = jnp.repeat(shift_c, W).reshape(1, N).astype(jnp.float32)

    # 0/1 selection matrices for the fused 2x2 max-pool.
    sel_h = (jnp.arange(TH - 1)[None, :] ==
             2 * jnp.arange(TH // 2)[:, None]).astype(jnp.float32)      # (TH/2, TH-1)
    m_idx = jnp.arange(N // 2)
    src = (m_idx // (W // 2)) * W + 2 * (m_idx % (W // 2))
    sel_w = (jnp.arange(N - 1)[:, None] == src[None, :]).astype(jnp.float32)

    pooled = pl.pallas_call(
        _bn_relu_pool_kernel,
        out_shape=jax.ShapeDtypeStruct((B, TH // 2, N // 2), jnp.float32),
        grid_spec=pltpu.PrefetchScalarGridSpec(
            num_scalar_prefetch=0,
            grid=(B,),
            in_specs=[
                pl.BlockSpec((None, TH, N), lambda b: (b, 0, 0)),
                pl.BlockSpec((1, N), lambda b: (0, 0)),
                pl.BlockSpec((1, N), lambda b: (0, 0)),
                pl.BlockSpec((TH // 2, TH - 1), lambda b: (0, 0)),
                pl.BlockSpec((N - 1, N // 2), lambda b: (0, 0)),
            ],
            out_specs=pl.BlockSpec((None, TH // 2, N // 2), lambda b: (b, 0, 0)),
        ),
        compiler_params=pltpu.CompilerParams(
            dimension_semantics=("parallel",),
            vmem_limit_bytes=_VMEM_LIMIT),
    )(y, scale, shift, sel_h, sel_w)
    return pooled                          # (B, T*(H/2), Cout*(W/2)) lanes=(co, w')


def encoder_forward(params, frames):
    B, T, C, H, W = frames.shape
    # channel-before-width layout (B, T, H, C, W); lane axis of each kernel is C*W.
    x = jnp.transpose(frames, (0, 1, 3, 2, 4)).astype(jnp.float32)
    Cin, Hc, Wc = C, H, W
    for layer in params["encoder"]:
        Cout = layer["w"].shape[0]
        xp = jnp.pad(x, ((0, 0), (1, 1), (1, 1), (0, 0), (1, 1)))
        x_band = xp.reshape(B, T + 2, Hc + 2, Cin * (Wc + 2))
        pooled = _encoder_layer_pallas(x_band, layer, B, T, Hc, Wc, Cin, Cout)
        Hc, Wc, Cin = Hc // 2, Wc // 2, Cout
        x = pooled.reshape(B, T, Hc, Cin, Wc)
    return x                               # (B, T, H', C', W')


# --------------------------------------------------------------------------
# Fused head: encoder_proj + bbox MLP (Linear-ReLU-Linear) + add + Mamba in_proj
# in a single kernel (these matmuls are far smaller than one MXU tile).
# --------------------------------------------------------------------------
def _fusion_head_kernel(enc_ref, bb_ref, wenc_ref, benc_ref, wb1_ref, bb1_ref,
                        wb2_ref, bb2_ref, win_ref, o_ref):
    ff = jnp.dot(enc_ref[...], wenc_ref[...],
                 preferred_element_type=jnp.float32) + benc_ref[...]
    h1 = jnp.dot(bb_ref[...], wb1_ref[...],
                 preferred_element_type=jnp.float32) + bb1_ref[...]
    h1 = jnp.maximum(h1, 0.0)
    bf = jnp.dot(h1, wb2_ref[...],
                 preferred_element_type=jnp.float32) + bb2_ref[...]
    comb = ff + bf
    o_ref[...] = jnp.dot(comb, win_ref[...], preferred_element_type=jnp.float32)


def fusion_head_pallas(enc_flat, bbox_in, params):
    M = enc_flat.shape[0]
    mp = params["mamba"]
    d_model = params["enc_proj_w"].shape[1]
    N = mp["in_proj_w"].shape[1]
    args = [
        enc_flat.astype(jnp.bfloat16),
        bbox_in.astype(jnp.float32),
        params["enc_proj_w"].astype(jnp.bfloat16),
        params["enc_proj_b"].reshape(1, d_model).astype(jnp.float32),
        params["bbox_w1"].astype(jnp.float32),
        params["bbox_b1"].reshape(1, -1).astype(jnp.float32),
        params["bbox_w2"].astype(jnp.float32),
        params["bbox_b2"].reshape(1, d_model).astype(jnp.float32),
        mp["in_proj_w"].astype(jnp.float32),
    ]
    return pl.pallas_call(
        _fusion_head_kernel,
        out_shape=jax.ShapeDtypeStruct((M, N), jnp.float32),
        grid_spec=pltpu.PrefetchScalarGridSpec(
            num_scalar_prefetch=0,
            grid=(1,),
            in_specs=[_full_spec(a.shape) for a in args],
            out_specs=_full_spec((M, N)),
        ),
        compiler_params=pltpu.CompilerParams(
            dimension_semantics=("arbitrary",),
            vmem_limit_bytes=_VMEM_LIMIT),
    )(*args)


# --------------------------------------------------------------------------
# Mamba selective scan, batch folded into the lane axis (lanes = B*d_inner),
# softplus(dt) / silu(z) hoisted, h carried as a value, out_proj + measurement
# head folded in (no nonlinearity between them).
# --------------------------------------------------------------------------
def _make_scan_kernel(B, T, d_inner):
    def kernel(u_ref, dt_ref, bexp_ref, cexp_ref, z_ref, a_ref, dv_ref,
               woh_ref, bh_ref, o_ref):
        u = u_ref[...]                                   # (T, B*d_inner)
        raw = dt_ref[...]
        dt = jnp.maximum(raw, 0.0) + jnp.log(1.0 + jnp.exp(-jnp.abs(raw)))
        z = z_ref[...]
        gate = z * (1.0 / (1.0 + jnp.exp(-z)))           # silu(z), hoisted
        A = a_ref[...]                                   # (d_state, B*d_inner)
        Dv = dv_ref[...]                                 # (1, B*d_inner)
        dtu = dt * u
        h = jnp.zeros_like(A)
        ys = []
        for t in range(T):                               # unrolled, T is small
            dA = jnp.exp(dt[t:t + 1, :] * A)
            h = dA * h + bexp_ref[t] * dtu[t:t + 1, :]
            y_t = jnp.sum(cexp_ref[t] * h, axis=0, keepdims=True) + Dv * u[t:t + 1, :]
            ys.append(y_t)
        y = jnp.concatenate(ys, axis=0) * gate           # (T, B*d_inner)
        woh = woh_ref[...]                               # (d_inner, 4)
        bh = bh_ref[...]                                 # (1, 4)
        for b in range(B):
            yb = y[:, b * d_inner:(b + 1) * d_inner]
            meas = jnp.dot(yb, woh, preferred_element_type=jnp.float32) + bh
            o_ref[b] = meas.astype(o_ref.dtype)

    return kernel


def selective_scan_pallas(x_act, dt_pre, Bmat, Cmat, z, A_T, Dvec, W_oh, b_head):
    B, T, d_inner = x_act.shape
    d_state = A_T.shape[0]
    BD = B * d_inner
    n_meas = W_oh.shape[1]

    def to_tb(a):                                        # (B, T, D) -> (T, B*D)
        return jnp.transpose(a, (1, 0, 2)).reshape(T, BD)

    def expand(m):                                       # (B, T, S) -> (T, S, B*D)
        return jnp.broadcast_to(
            jnp.transpose(m, (1, 2, 0))[:, :, :, None],
            (T, d_state, B, d_inner)).reshape(T, d_state, BD)

    args = [to_tb(x_act), to_tb(dt_pre), expand(Bmat), expand(Cmat), to_tb(z),
            jnp.tile(A_T, (1, B)), jnp.tile(Dvec.reshape(1, d_inner), (1, B)),
            W_oh, b_head.reshape(1, n_meas)]
    args = [a.astype(jnp.float32) for a in args]

    return pl.pallas_call(
        _make_scan_kernel(B, T, d_inner),
        out_shape=jax.ShapeDtypeStruct((B, T, n_meas), jnp.float32),
        grid_spec=pltpu.PrefetchScalarGridSpec(
            num_scalar_prefetch=0,
            grid=(1,),
            in_specs=[_full_spec(a.shape) for a in args],
            out_specs=_full_spec((B, T, n_meas)),
        ),
        compiler_params=pltpu.CompilerParams(
            dimension_semantics=("arbitrary",),
            vmem_limit_bytes=_VMEM_LIMIT),
    )(*args)


# --------------------------------------------------------------------------
# Full forward pass.
# --------------------------------------------------------------------------
def temporal_fusion_forward(params, frames, target_bboxes):
    B, T, C, H, W = frames.shape

    # teacher-forced bbox inputs
    if T > 1:
        input_bboxes = jnp.concatenate(
            [target_bboxes[:, :1], target_bboxes[:, :-1]], axis=1)
    else:
        input_bboxes = target_bboxes

    # 3-D conv encoder (Pallas: conv+BN-stats kernel, BN+ReLU+pool kernel / layer)
    enc = encoder_forward(params, frames)                 # (B, T, H', C', W')
    _, _, He, Ce, We = enc.shape
    enc_flat = jnp.transpose(enc, (0, 1, 3, 2, 4)).reshape(B * T, Ce * He * We)

    # fused head: encoder_proj + bbox MLP + add + in_proj
    xz = fusion_head_pallas(enc_flat, input_bboxes.reshape(B * T, 4), params)

    mp = params["mamba"]
    d_inner = mp["in_proj_w"].shape[1] // 2
    d_state = mp["A_log"].shape[1]
    dt_rank = mp["dt_proj_w"].shape[0]
    d_conv = mp["conv_w"].shape[1]

    xz = xz.reshape(B, T, 2 * d_inner)
    x_in, z = xz[..., :d_inner], xz[..., d_inner:]

    # causal depthwise conv1d along T + SiLU (tiny glue: d_conv taps, KB-scale)
    xp = jnp.pad(x_in, ((0, 0), (d_conv - 1, 0), (0, 0)))
    x_conv = mp["conv_b"][None, None, :]
    for k in range(d_conv):
        x_conv = x_conv + mp["conv_w"][:, k][None, None, :] * xp[:, k:k + T, :]
    x_act = x_conv * jax.nn.sigmoid(x_conv)

    # x_proj and dt_proj folded into one Pallas matmul: [dt_pre | B | C]
    W_dt = jnp.dot(mp["x_proj_w"][:, :dt_rank], mp["dt_proj_w"])
    W_cmb = jnp.concatenate([W_dt, mp["x_proj_w"][:, dt_rank:]], axis=1)
    b_cmb = jnp.concatenate(
        [mp["dt_proj_b"], jnp.zeros((2 * d_state,), jnp.float32)])
    x_cmb = linear_pallas(x_act.reshape(B * T, d_inner), W_cmb, b_cmb,
                          compute_dtype=jnp.float32)
    x_cmb = x_cmb.reshape(B, T, d_inner + 2 * d_state)
    dt_pre = x_cmb[..., :d_inner]
    Bmat = x_cmb[..., d_inner:d_inner + d_state]
    Cmat = x_cmb[..., d_inner + d_state:]

    # out_proj and the measurement head folded (both linear, no nonlinearity)
    W_oh = jnp.dot(mp["out_proj_w"], params["head_w"])    # (d_inner, 4)

    mamba_measurements = selective_scan_pallas(
        x_act, dt_pre, Bmat, Cmat, z,
        A_T=(-jnp.exp(mp["A_log"])).T, Dvec=mp["D"],
        W_oh=W_oh, b_head=params["head_b"])               # (B, T, 4)

    # ---------------- Learnable Kalman filter ----------------
    # TODO(synk): batched 4x4 torch.linalg.solve (and its pinv fallback) has no
    # clean Pallas equivalent; the tiny 8x8 recursion is kept in plain JAX.
    kf = params["kf"]
    Fm, Hm = kf["F"], kf["H"]
    Q = jnp.diag(jnp.exp(kf["log_q"]) + 1e-6)
    R = jnp.diag(jnp.exp(kf["log_r"]) + 1e-6)
    sdim, mdim = Fm.shape[0], Hm.shape[0]
    I = jnp.eye(sdim, dtype=jnp.float32)

    init_pos = target_bboxes[:, 0, :]
    if T > 1:
        init_vel = target_bboxes[:, 1, :] - target_bboxes[:, 0, :]
    else:
        init_vel = jnp.zeros_like(init_pos)
    state0 = jnp.concatenate([init_pos, init_vel], axis=1)[:, :, None]
    cov0 = jnp.broadcast_to(I, (B, sdim, sdim)) * kf["init_cov_scale"]

    def step(carry, meas_t):
        state, cov = carry
        state_pred = jnp.matmul(Fm, state)
        cov_pred = jnp.matmul(jnp.matmul(Fm, cov), Fm.T) + Q
        yk = meas_t - jnp.matmul(Hm, state_pred)
        S = jnp.matmul(jnp.matmul(Hm, cov_pred), Hm.T) + R
        S_inv_H_T = jnp.linalg.solve(S, jnp.broadcast_to(Hm, (B, mdim, sdim)))
        Kg = jnp.matmul(cov_pred, jnp.swapaxes(S_inv_H_T, -1, -2))
        state_new = state_pred + jnp.matmul(Kg, yk)
        I_KH = I - jnp.matmul(Kg, Hm)
        cov_new = (jnp.matmul(jnp.matmul(I_KH, cov_pred), jnp.swapaxes(I_KH, -1, -2))
                   + jnp.matmul(jnp.matmul(Kg, R), jnp.swapaxes(Kg, -1, -2)))
        return (state_new, cov_new), state_new[:, :mdim, 0]

    meas_seq = jnp.moveaxis(mamba_measurements, 1, 0)[..., None]   # (T, B, 4, 1)
    _, preds = lax.scan(step, (state0, cov0), meas_seq)
    final_kf_predictions = jnp.moveaxis(preds, 0, 1)               # (B, T, 4)

    return final_kf_predictions, mamba_measurements


# --------------------------------------------------------------------------
# Deterministic parameter initialization (synthetic; shapes match the module).
# --------------------------------------------------------------------------
def init_params(key, H=32, W=32):
    keys = list(jax.random.split(key, 64))
    kit = iter(keys)

    def nrm(shape, scale=1.0):
        return jax.random.normal(next(kit), shape, jnp.float32) * scale

    d_model, d_state, d_conv, expand = 32, 8, 4, 2
    d_inner = expand * d_model
    dt_rank = math.ceil(d_model / 16)
    enc_channels = [4, 8]

    encoder = []
    in_ch = 3
    for out_ch in enc_channels:
        fan = in_ch * 27
        encoder.append(dict(
            w=nrm((out_ch, in_ch, 3, 3, 3), 1.0 / math.sqrt(fan)),   # Conv3d layout
            b=nrm((out_ch,), 0.01),
            gamma=jnp.ones((out_ch,), jnp.float32),
            beta=jnp.zeros((out_ch,), jnp.float32)))
        in_ch = out_ch
    n_pool = len(enc_channels)
    flat_dim = enc_channels[-1] * (H // (2 ** n_pool)) * (W // (2 ** n_pool))

    F0 = jnp.eye(8, dtype=jnp.float32)
    F0 = F0.at[jnp.arange(4), jnp.arange(4) + 4].set(1.0)
    H0 = jnp.zeros((4, 8), jnp.float32).at[jnp.arange(4), jnp.arange(4)].set(1.0)

    params = dict(
        encoder=encoder,
        enc_proj_w=nrm((flat_dim, d_model), 1.0 / math.sqrt(flat_dim)),
        enc_proj_b=jnp.zeros((d_model,), jnp.float32),
        bbox_w1=nrm((4, 64), 0.5),
        bbox_b1=jnp.zeros((64,), jnp.float32),
        bbox_w2=nrm((64, d_model), 1.0 / 8.0),
        bbox_b2=jnp.zeros((d_model,), jnp.float32),
        mamba=dict(
            in_proj_w=nrm((d_model, 2 * d_inner), 1.0 / math.sqrt(d_model)),
            conv_w=nrm((d_inner, d_conv), 0.3),
            conv_b=jnp.zeros((d_inner,), jnp.float32),
            x_proj_w=nrm((d_inner, dt_rank + 2 * d_state), 1.0 / math.sqrt(d_inner)),
            dt_proj_w=nrm((dt_rank, d_inner), dt_rank ** -0.5),
            dt_proj_b=nrm((d_inner,), 0.1) - 2.0,
            A_log=jnp.log(jnp.broadcast_to(
                jnp.arange(1, d_state + 1, dtype=jnp.float32), (d_inner, d_state))),
            D=jnp.ones((d_inner,), jnp.float32),
            out_proj_w=nrm((d_inner, d_model), 1.0 / math.sqrt(d_inner)),
        ),
        head_w=nrm((d_model, 4), 1.0 / math.sqrt(d_model)),
        head_b=jnp.zeros((4,), jnp.float32),
        kf=dict(
            F=F0 + nrm((8, 8), 0.001),
            H=H0 + nrm((4, 8), 0.01),
            log_q=jnp.concatenate([nrm((4,), 1.0) - 2.0, nrm((4,), 1.0) - 4.0]),
            log_r=nrm((4,), 1.0) - 2.0,
            init_cov_scale=jnp.float32(0.01),
        ),
    )
    return params


if __name__ == "__main__":
    B, T, C, H, W = 2, 5, 3, 32, 32
    key = jax.random.PRNGKey(0)
    kp, kfrm, kbox = jax.random.split(key, 3)

    params = init_params(kp, H=H, W=W)
    frames = jax.random.normal(kfrm, (B, T, C, H, W), jnp.float32)
    target_bboxes = jax.random.uniform(kbox, (B, T, 4), jnp.float32)

    fwd = jax.jit(functools.partial(temporal_fusion_forward, params))
    kf_preds, mamba_meas = fwd(frames, target_bboxes)
    jax.block_until_ready((kf_preds, mamba_meas))

    assert kf_preds.shape == (B, T, 4)
    assert mamba_meas.shape == (B, T, 4)
    assert bool(jnp.all(jnp.isfinite(kf_preds))) and bool(jnp.all(jnp.isfinite(mamba_meas)))
    print("KERNEL_OK")
</pallas_src>

<mosaic_0001>
module attributes {stable_mosaic.version = 11 : i64} {
  func.func @kernel(%arg0: i32, %arg1: memref<1x7x34x102xbf16, #tpu.memory_space<vmem>>, %arg2: memref<9x102x128xbf16, #tpu.memory_space<vmem>>, %arg3: memref<1x128xf32, #tpu.memory_space<vmem>>, %arg4: memref<1x160x128xf32, #tpu.memory_space<vmem>>, %arg5: memref<1x8x128xf32, #tpu.memory_space<vmem>>) attributes {dimension_semantics = [#tpu.dimension_semantics<parallel>], iteration_bounds = array<i64: 2>, scalar_prefetch = 0 : i64, scratch_operands = 0 : i64, tpu.core_type = #tpu.core_type<tc>, window_params = [{transform_indices = @transform_0, window_bounds = array<i64: 1, 7, 34, 102>}, {pipeline_mode = #tpu.pipeline_mode<synchronous>, transform_indices = @transform_1, window_bounds = array<i64: 9, 102, 128>}, {pipeline_mode = #tpu.pipeline_mode<synchronous>, transform_indices = @transform_2, window_bounds = array<i64: 1, 128>}, {transform_indices = @transform_3, window_bounds = array<i64: 1, 160, 128>}, {transform_indices = @transform_4, window_bounds = array<i64: 1, 8, 128>}]} {
    %c0 = arith.constant 0 : index
    %c0_0 = arith.constant 0 : index
    %0 = vector.load %arg3[%c0, %c0_0] : memref<1x128xf32, #tpu.memory_space<vmem>>, vector<1x128xf32>
    %cst = arith.constant 0.000000e+00 : f32
    %1 = vector.broadcast %cst : f32 to vector<1x128xf32>
    %cst_1 = arith.constant 0.000000e+00 : f32
    %2 = vector.broadcast %cst_1 : f32 to vector<1x128xf32>
    %cst_2 = arith.constant 0.000000e+00 : f32
    %3 = vector.broadcast %cst_2 : f32 to vector<32x128xf32>
    %c0_3 = arith.constant 0 : index
    %c0_4 = arith.constant 0 : index
    %c0_5 = arith.constant 0 : index
    %c0_6 = arith.constant 0 : index
    %4 = vector.load %arg1[%c0_3, %c0_4, %c0_5, %c0_6] : memref<1x7x34x102xbf16, #tpu.memory_space<vmem>>, vector<1x1x34x102xbf16>
    %5 = vector.shape_cast %4 : vector<1x1x34x102xbf16> to vector<34x102xbf16>
    %6 = vector.extract_strided_slice %5 {offsets = [0, 0], sizes = [32, 102], strides = [1, 1]} : vector<34x102xbf16> to vector<32x102xbf16>
    %c0_7 = arith.constant 0 : index
    %c0_8 = arith.constant 0 : index
    %c0_9 = arith.constant 0 : index
    %7 = vector.load %arg2[%c0_7, %c0_8, %c0_9] : memref<9x102x128xbf16, #tpu.memory_space<vmem>>, vector<1x102x128xbf16>
    %8 = vector.shape_cast %7 : vector<1x102x128xbf16> to vector<102x128xbf16>
    %cst_10 = arith.constant dense<0.000000e+00> : vector<32x128xf32>
    %9 = tpu.matmul %6, %8, %cst_10 {dimension_numbers = #tpu.dot_dimension_numbers<[1], [0], [0], [1], [0, 0, 1, 1], [], []>} : vector<32x102xbf16>, vector<102x128xbf16>, vector<32x128xf32> -> vector<32x128xf32>
    %10 = arith.addf %3, %9 : vector<32x128xf32>
    %11 = vector.extract_strided_slice %5 {offsets = [1, 0], sizes = [32, 102], strides = [1, 1]} : vector<34x102xbf16> to vector<32x102xbf16>
    %c1 = arith.constant 1 : index
    %c0_11 = arith.constant 0 : index
    %c0_12 = arith.constant 0 : index
    %12 = vector.load %arg2[%c1, %c0_11, %c0_12] : memref<9x102x128xbf16, #tpu.memory_space<vmem>>, vector<1x102x128xbf16>
    %13 = vector.shape_cast %12 : vector<1x102x128xbf16> to vector<102x128xbf16>
    %cst_13 = arith.constant dense<0.000000e+00> : vector<32x128xf32>
    %14 = tpu.matmul %11, %13, %cst_13 {dimension_numbers = #tpu.dot_dimension_numbers<[1], [0], [0], [1], [0, 0, 1, 1], [], []>} : vector<32x102xbf16>, vector<102x128xbf16>, vector<32x128xf32> -> vector<32x128xf32>
    %15 = arith.addf %10, %14 : vector<32x128xf32>
    %16 = vector.extract_strided_slice %5 {offsets = [2, 0], sizes = [32, 102], strides = [1, 1]} : vector<34x102xbf16> to vector<32x102xbf16>
    %c2 = arith.constant 2 : index
    %c0_14 = arith.constant 0 : index
    %c0_15 = arith.constant 0 : index
    %17 = vector.load %arg2[%c2, %c0_14, %c0_15] : memref<9x102x128xbf16, #tpu.memory_space<vmem>>, vector<1x102x128xbf16>
    %18 = vector.shape_cast %17 : vector<1x102x128xbf16> to vector<102x128xbf16>
    %cst_16 = arith.constant dense<0.000000e+00> : vector<32x128xf32>
    %19 = tpu.matmul %16, %18, %cst_16 {dimension_numbers = #tpu.dot_dimension_numbers<[1], [0], [0], [1], [0, 0, 1, 1], [], []>} : vector<32x102xbf16>, vector<102x128xbf16>, vector<32x128xf32> -> vector<32x128xf32>
    %20 = arith.addf %15, %19 : vector<32x128xf32>
    %c0_17 = arith.constant 0 : index
    %c1_18 = arith.constant 1 : index
    %c0_19 = arith.constant 0 : index
    %c0_20 = arith.constant 0 : index
    %21 = vector.load %arg1[%c0_17, %c1_18, %c0_19, %c0_20] : memref<1x7x34x102xbf16, #tpu.memory_space<vmem>>, vector<1x1x34x102xbf16>
    %22 = vector.shape_cast %21 : vector<1x1x34x102xbf16> to vector<34x102xbf16>
    %23 = vector.extract_strided_slice %22 {offsets = [0, 0], sizes = [32, 102], strides = [1, 1]} : vector<34x102xbf16> to vector<32x102xbf16>
    %c3 = arith.constant 3 : index
    %c0_21 = arith.constant 0 : index
    %c0_22 = arith.constant 0 : index
    %24 = vector.load %arg2[%c3, %c0_21, %c0_22] : memref<9x102x128xbf16, #tpu.memory_space<vmem>>, vector<1x102x128xbf16>
    %25 = vector.shape_cast %24 : vector<1x102x128xbf16> to vector<102x128xbf16>
    %cst_23 = arith.constant dense<0.000000e+00> : vector<32x128xf32>
    %26 = tpu.matmul %23, %25, %cst_23 {dimension_numbers = #tpu.dot_dimension_numbers<[1], [0], [0], [1], [0, 0, 1, 1], [], []>} : vector<32x102xbf16>, vector<102x128xbf16>, vector<32x128xf32> -> vector<32x128xf32>
    %27 = arith.addf %20, %26 : vector<32x128xf32>
    %28 = vector.extract_strided_slice %22 {offsets = [1, 0], sizes = [32, 102], strides = [1, 1]} : vector<34x102xbf16> to vector<32x102xbf16>
    %c4 = arith.constant 4 : index
    %c0_24 = arith.constant 0 : index
    %c0_25 = arith.constant 0 : index
    %29 = vector.load %arg2[%c4, %c0_24, %c0_25] : memref<9x102x128xbf16, #tpu.memory_space<vmem>>, vector<1x102x128xbf16>
    %30 = vector.shape_cast %29 : vector<1x102x128xbf16> to vector<102x128xbf16>
    %cst_26 = arith.constant dense<0.000000e+00> : vector<32x128xf32>
    %31 = tpu.matmul %28, %30, %cst_26 {dimension_numbers = #tpu.dot_dimension_numbers<[1], [0], [0], [1], [0, 0, 1, 1], [], []>} : vector<32x102xbf16>, vector<102x128xbf16>, vector<32x128xf32> -> vector<32x128xf32>
    %32 = arith.addf %27, %31 : vector<32x128xf32>
    %33 = vector.extract_strided_slice %22 {offsets = [2, 0], sizes = [32, 102], strides = [1, 1]} : vector<34x102xbf16> to vector<32x102xbf16>
    %c5 = arith.constant 5 : index
    %c0_27 = arith.constant 0 : index
    %c0_28 = arith.constant 0 : index
    %34 = vector.load %arg2[%c5, %c0_27, %c0_28] : memref<9x102x128xbf16, #tpu.memory_space<vmem>>, vector<1x102x128xbf16>
    %35 = vector.shape_cast %34 : vector<1x102x128xbf16> to vector<102x128xbf16>
    %cst_29 = arith.constant dense<0.000000e+00> : vector<32x128xf32>
    %36 = tpu.matmul %33, %35, %cst_29 {dimension_numbers = #tpu.dot_dimension_numbers<[1], [0], [0], [1], [0, 0, 1, 1], [], []>} : vector<32x102xbf16>, vector<102x128xbf16>, vector<32x128xf32> -> vector<32x128xf32>
    %37 = arith.addf %32, %36 : vector<32x128xf32>
    %c0_30 = arith.constant 0 : index
    %c2_31 = arith.constant 2 : index
    %c0_32 = arith.constant 0 : index
    %c0_33 = arith.constant 0 : index
    %38 = vector.load %arg1[%c0_30, %c2_31, %c0_32, %c0_33] : memref<1x7x34x102xbf16, #tpu.memory_space<vmem>>, vector<1x1x34x102xbf16>
    %39 = vector.shape_cast %38 : vector<1x1x34x102xbf16> to vector<34x102xbf16>
    %40 = vector.extract_strided_slice %39 {offsets = [0, 0], sizes = [32, 102], strides = [1, 1]} : vector<34x102xbf16> to vector<32x102xbf16>
    %c6 = arith.constant 6 : index
    %c0_34 = arith.constant 0 : index
    %c0_35 = arith.constant 0 : index
    %41 = vector.load %arg2[%c6, %c0_34, %c0_35] : memref<9x102x128xbf16, #tpu.memory_space<vmem>>, vector<1x102x128xbf16>
    %42 = vector.shape_cast %41 : vector<1x102x128xbf16> to vector<102x128xbf16>
    %cst_36 = arith.constant dense<0.000000e+00> : vector<32x128xf32>
    %43 = tpu.matmul %40, %42, %cst_36 {dimension_numbers = #tpu.dot_dimension_numbers<[1], [0], [0], [1], [0, 0, 1, 1], [], []>} : vector<32x102xbf16>, vector<102x128xbf16>, vector<32x128xf32> -> vector<32x128xf32>
    %44 = arith.addf %37, %43 : vector<32x128xf32>
    %45 = vector.extract_strided_slice %39 {offsets = [1, 0], sizes = [32, 102], strides = [1, 1]} : vector<34x102xbf16> to vector<32x102xbf16>
    %c7 = arith.constant 7 : index
    %c0_37 = arith.constant 0 : index
    %c0_38 = arith.constant 0 : index
    %46 = vector.load %arg2[%c7, %c0_37, %c0_38] : memref<9x102x128xbf16, #tpu.memory_space<vmem>>, vector<1x102x128xbf16>
    %47 = vector.shape_cast %46 : vector<1x102x128xbf16> to vector<102x128xbf16>
    %cst_39 = arith.constant dense<0.000000e+00> : vector<32x128xf32>
    %48 = tpu.matmul %45, %47, %cst_39 {dimension_numbers = #tpu.dot_dimension_numbers<[1], [0], [0], [1], [0, 0, 1, 1], [], []>} : vector<32x102xbf16>, vector<102x128xbf16>, vector<32x128xf32> -> vector<32x128xf32>
    %49 = arith.addf %44, %48 : vector<32x128xf32>
    %50 = vector.extract_strided_slice %39 {offsets = [2, 0], sizes = [32, 102], strides = [1, 1]} : vector<34x102xbf16> to vector<32x102xbf16>
    %c8 = arith.constant 8 : index
    %c0_40 = arith.constant 0 : index
    %c0_41 = arith.constant 0 : index
    %51 = vector.load %arg2[%c8, %c0_40, %c0_41] : memref<9x102x128xbf16, #tpu.memory_space<vmem>>, vector<1x102x128xbf16>
    %52 = vector.shape_cast %51 : vector<1x102x128xbf16> to vector<102x128xbf16>
    %cst_42 = arith.constant dense<0.000000e+00> : vector<32x128xf32>
    %53 = tpu.matmul %50, %52, %cst_42 {dimension_numbers = #tpu.dot_dimension_numbers<[1], [0], [0], [1], [0, 0, 1, 1], [], []>} : vector<32x102xbf16>, vector<102x128xbf16>, vector<32x128xf32> -> vector<32x128xf32>
    %54 = arith.addf %49, %53 : vector<32x128xf32>
    %55 = vector.broadcast %0 : vector<1x128xf32> to vector<32x128xf32>
    %56 = arith.addf %54, %55 : vector<32x128xf32>
    %c0_43 = arith.constant 0 : index
    %c0_44 = arith.constant 0 : index
    %c0_45 = arith.constant 0 : index
    %57 = vector.load %arg4[%c0_43, %c0_44, %c0_45] : memref<1x160x128xf32, #tpu.memory_space<vmem>>, vector<1x32x128xf32>
    %58 = vector.shape_cast %57 : vector<1x32x128xf32> to vector<32x128xf32>
    %59 = vector.shape_cast %56 : vector<32x128xf32> to vector<1x32x128xf32>
    tpu.vector_store %arg4[%c0_43, %c0_44, %c0_45], %59 {strides = array<i32>} : memref<1x160x128xf32, #tpu.memory_space<vmem>>, vector<1x32x128xf32>,
    %cst_46 = arith.constant dense<0.000000e+00> : vector<128xf32>
    %60 = vector.multi_reduction <add>, %56, %cst_46 [0] : vector<32x128xf32> to vector<128xf32>
    %61 = vector.shape_cast %60 : vector<128xf32> to vector<1x128xf32>
    %62 = arith.addf %1, %61 : vector<1x128xf32>
    %63 = arith.mulf %56, %56 : vector<32x128xf32>
    %cst_47 = arith.constant dense<0.000000e+00> : vector<128xf32>
    %64 = vector.multi_reduction <add>, %63, %cst_47 [0] : vector<32x128xf32> to vector<128xf32>
    %65 = vector.shape_cast %64 : vector<128xf32> to vector<1x128xf32>
    %66 = arith.addf %2, %65 : vector<1x128xf32>
    %cst_48 = arith.constant 0.000000e+00 : f32
    %67 = vector.broadcast %cst_48 : f32 to vector<32x128xf32>
    %c0_49 = arith.constant 0 : index
    %c1_50 = arith.constant 1 : index
    %c0_51 = arith.constant 0 : index
    %c0_52 = arith.constant 0 : index
    %68 = vector.load %arg1[%c0_49, %c1_50, %c0_51, %c0_52] : memref<1x7x34x102xbf16, #tpu.memory_space<vmem>>, vector<1x1x34x102xbf16>
    %69 = vector.shape_cast %68 : vector<1x1x34x102xbf16> to vector<34x102xbf16>
    %70 = vector.extract_strided_slice %69 {offsets = [0, 0], sizes = [32, 102], strides = [1, 1]} : vector<34x102xbf16> to vector<32x102xbf16>
    %c0_53 = arith.constant 0 : index
    %c0_54 = arith.constant 0 : index
    %c0_55 = arith.constant 0 : index
    %71 = vector.load %arg2[%c0_53, %c0_54, %c0_55] : memref<9x102x128xbf16, #tpu.memory_space<vmem>>, vector<1x102x128xbf16>
    %72 = vector.shape_cast %71 : vector<1x102x128xbf16> to vector<102x128xbf16>
    %cst_56 = arith.constant dense<0.000000e+00> : vector<32x128xf32>
    %73 = tpu.matmul %70, %72, %cst_56 {dimension_numbers = #tpu.dot_dimension_numbers<[1], [0], [0], [1], [0, 0, 1, 1], [], []>} : vector<32x102xbf16>, vector<102x128xbf16>, vector<32x128xf32> -> vector<32x128xf32>
    %74 = arith.addf %67, %73 : vector<32x128xf32>
    %75 = vector.extract_strided_slice %69 {offsets = [1, 0], sizes = [32, 102], strides = [1, 1]} : vector<34x102xbf16> to vector<32x102xbf16>
    %c1_57 = arith.constant 1 : index
    %c0_58 = arith.constant 0 : index
    %c0_59 = arith.constant 0 : index
    %76 = vector.load %arg2[%c1_57, %c0_58, %c0_59] : memref<9x102x128xbf16, #tpu.memory_space<vmem>>, vector<1x102x128xbf16>
    %77 = vector.shape_cast %76 : vector<1x102x128xbf16> to vector<102x128xbf16>
    %cst_60 = arith.constant dense<0.000000e+00> : vector<32x128xf32>
    %78 = tpu.matmul %75, %77, %cst_60 {dimension_numbers = #tpu.dot_dimension_numbers<[1], [0], [0], [1], [0, 0, 1, 1], [], []>} : vector<32x102xbf16>, vector<102x128xbf16>, vector<32x128xf32> -> vector<32x128xf32>
    %79 = arith.addf %74, %78 : vector<32x128xf32>
    %80 = vector.extract_strided_slice %69 {offsets = [2, 0], sizes = [32, 102], strides = [1, 1]} : vector<34x102xbf16> to vector<32x102xbf16>
    %c2_61 = arith.constant 2 : index
    %c0_62 = arith.constant 0 : index
    %c0_63 = arith.constant 0 : index
    %81 = vector.load %arg2[%c2_61, %c0_62, %c0_63] : memref<9x102x128xbf16, #tpu.memory_space<vmem>>, vector<1x102x128xbf16>
    %82 = vector.shape_cast %81 : vector<1x102x128xbf16> to vector<102x128xbf16>
    %cst_64 = arith.constant dense<0.000000e+00> : vector<32x128xf32>
    %83 = tpu.matmul %80, %82, %cst_64 {dimension_numbers = #tpu.dot_dimension_numbers<[1], [0], [0], [1], [0, 0, 1, 1], [], []>} : vector<32x102xbf16>, vector<102x128xbf16>, vector<32x128xf32> -> vector<32x128xf32>
    %84 = arith.addf %79, %83 : vector<32x128xf32>
    %c0_65 = arith.constant 0 : index
    %c2_66 = arith.constant 2 : index
    %c0_67 = arith.constant 0 : index
    %c0_68 = arith.constant 0 : index
    %85 = vector.load %arg1[%c0_65, %c2_66, %c0_67, %c0_68] : memref<1x7x34x102xbf16, #tpu.memory_space<vmem>>, vector<1x1x34x102xbf16>
    %86 = vector.shape_cast %85 : vector<1x1x34x102xbf16> to vector<34x102xbf16>
    %87 = vector.extract_strided_slice %86 {offsets = [0, 0], sizes = [32, 102], strides = [1, 1]} : vector<34x102xbf16> to vector<32x102xbf16>
    %c3_69 = arith.constant 3 : index
    %c0_70 = arith.constant 0 : index
    %c0_71 = arith.constant 0 : index
    %88 = vector.load %arg2[%c3_69, %c0_70, %c0_71] : memref<9x102x128xbf16, #tpu.memory_space<vmem>>, vector<1x102x128xbf16>
    %89 = vector.shape_cast %88 : vector<1x102x128xbf16> to vector<102x128xbf16>
    %cst_72 = arith.constant dense<0.000000e+00> : vector<32x128xf32>
    %90 = tpu.matmul %87, %89, %cst_72 {dimension_numbers = #tpu.dot_dimension_numbers<[1], [0], [0], [1], [0, 0, 1, 1], [], []>} : vector<32x102xbf16>, vector<102x128xbf16>, vector<32x128xf32> -> vector<32x128xf32>
    %91 = arith.addf %84, %90 : vector<32x128xf32>
    %92 = vector.extract_strided_slice %86 {offsets = [1, 0], sizes = [32, 102], strides = [1, 1]} : vector<34x102xbf16> to vector<32x102xbf16>
    %c4_73 = arith.constant 4 : index
    %c0_74 = arith.constant 0 : index
    %c0_75 = arith.constant 0 : index
    %93 = vector.load %arg2[%c4_73, %c0_74, %c0_75] : memref<9x102x128xbf16, #tpu.memory_space<vmem>>, vector<1x102x128xbf16>
    %94 = vector.shape_cast %93 : vector<1x102x128xbf16> to vector<102x128xbf16>
    %cst_76 = arith.constant dense<0.000000e+00> : vector<32x128xf32>
    %95 = tpu.matmul %92, %94, %cst_76 {dimension_numbers = #tpu.dot_dimension_numbers<[1], [0], [0], [1], [0, 0, 1, 1], [], []>} : vector<32x102xbf16>, vector<102x128xbf16>, vector<32x128xf32> -> vector<32x128xf32>
    %96 = arith.addf %91, %95 : vector<32x128xf32>
    %97 = vector.extract_strided_slice %86 {offsets = [2, 0], sizes = [32, 102], strides = [1, 1]} : vector<34x102xbf16> to vector<32x102xbf16>
    %c5_77 = arith.constant 5 : index
    %c0_78 = arith.constant 0 : index
    %c0_79 = arith.constant 0 : index
    %98 = vector.load %arg2[%c5_77, %c0_78, %c0_79] : memref<9x102x128xbf16, #tpu.memory_space<vmem>>, vector<1x102x128xbf16>
    %99 = vector.shape_cast %98 : vector<1x102x128xbf16> to vector<102x128xbf16>
    %cst_80 = arith.constant dense<0.000000e+00> : vector<32x128xf32>
    %100 = tpu.matmul %97, %99, %cst_80 {dimension_numbers = #tpu.dot_dimension_numbers<[1], [0], [0], [1], [0, 0, 1, 1], [], []>} : vector<32x102xbf16>, vector<102x128xbf16>, vector<32x128xf32> -> vector<32x128xf32>
    %101 = arith.addf %96, %100 : vector<32x128xf32>
    %c0_81 = arith.constant 0 : index
    %c3_82 = arith.constant 3 : index
    %c0_83 = arith.constant 0 : index
    %c0_84 = arith.constant 0 : index
    %102 = vector.load %arg1[%c0_81, %c3_82, %c0_83, %c0_84] : memref<1x7x34x102xbf16, #tpu.memory_space<vmem>>, vector<1x1x34x102xbf16>
    %103 = vector.shape_cast %102 : vector<1x1x34x102xbf16> to vector<34x102xbf16>
    %104 = vector.extract_strided_slice %103 {offsets = [0, 0], sizes = [32, 102], strides = [1, 1]} : vector<34x102xbf16> to vector<32x102xbf16>
    %c6_85 = arith.constant 6 : index
    %c0_86 = arith.constant 0 : index
    %c0_87 = arith.constant 0 : index
    %105 = vector.load %arg2[%c6_85, %c0_86, %c0_87] : memref<9x102x128xbf16, #tpu.memory_space<vmem>>, vector<1x102x128xbf16>
    %106 = vector.shape_cast %105 : vector<1x102x128xbf16> to vector<102x128xbf16>
    %cst_88 = arith.constant dense<0.000000e+00> : vector<32x128xf32>
    %107 = tpu.matmul %104, %106, %cst_88 {dimension_numbers = #tpu.dot_dimension_numbers<[1], [0], [0], [1], [0, 0, 1, 1], [], []>} : vector<32x102xbf16>, vector<102x128xbf16>, vector<32x128xf32> -> vector<32x128xf32>
    %108 = arith.addf %101, %107 : vector<32x128xf32>
    %109 = vector.extract_strided_slice %103 {offsets = [1, 0], sizes = [32, 102], strides = [1, 1]} : vector<34x102xbf16> to vector<32x102xbf16>
    %c7_89 = arith.constant 7 : index
    %c0_90 = arith.constant 0 : index
    %c0_91 = arith.constant 0 : index
    %110 = vector.load %arg2[%c7_89, %c0_90, %c0_91] : memref<9x102x128xbf16, #tpu.memory_space<vmem>>, vector<1x102x128xbf16>
    %111 = vector.shape_cast %110 : vector<1x102x128xbf16> to vector<102x128xbf16>
    %cst_92 = arith.constant dense<0.000000e+00> : vector<32x128xf32>
    %112 = tpu.matmul %109, %111, %cst_92 {dimension_numbers = #tpu.dot_dimension_numbers<[1], [0], [0], [1], [0, 0, 1, 1], [], []>} : vector<32x102xbf16>, vector<102x128xbf16>, vector<32x128xf32> -> vector<32x128xf32>
    %113 = arith.addf %108, %112 : vector<32x128xf32>
    %114 = vector.extract_strided_slice %103 {offsets = [2, 0], sizes = [32, 102], strides = [1, 1]} : vector<34x102xbf16> to vector<32x102xbf16>
    %c8_93 = arith.constant 8 : index
    %c0_94 = arith.constant 0 : index
    %c0_95 = arith.constant 0 : index
    %115 = vector.load %arg2[%c8_93, %c0_94, %c0_95] : memref<9x102x128xbf16, #tpu.memory_space<vmem>>, vector<1x102x128xbf16>
    %116 = vector.shape_cast %115 : vector<1x102x128xbf16> to vector<102x128xbf16>
    %cst_96 = arith.constant dense<0.000000e+00> : vector<32x128xf32>
    %117 = tpu.matmul %114, %116, %cst_96 {dimension_numbers = #tpu.dot_dimension_numbers<[1], [0], [0], [1], [0, 0, 1, 1], [], []>} : vector<32x102xbf16>, vector<102x128xbf16>, vector<32x128xf32> -> vector<32x128xf32>
    %118 = arith.addf %113, %117 : vector<32x128xf32>
    %119 = vector.broadcast %0 : vector<1x128xf32> to vector<32x128xf32>
    %120 = arith.addf %118, %119 : vector<32x128xf32>
    %c0_97 = arith.constant 0 : index
    %c32 = arith.constant 32 : index
    %c0_98 = arith.constant 0 : index
    %121 = vector.load %arg4[%c0_97, %c32, %c0_98] : memref<1x160x128xf32, #tpu.memory_space<vmem>>, vector<1x32x128xf32>
    %122 = vector.shape_cast %121 : vector<1x32x128xf32> to vector<32x128xf32>
    %123 = vector.shape_cast %120 : vector<32x128xf32> to vector<1x32x128xf32>
    tpu.vector_store %arg4[%c0_97, %c32, %c0_98], %123 {strides = array<i32>} : memref<1x160x128xf32, #tpu.memory_space<vmem>>, vector<1x32x128xf32>,
    %cst_99 = arith.constant dense<0.000000e+00> : vector<128xf32>
    %124 = vector.multi_reduction <add>, %120, %cst_99 [0] : vector<32x128xf32> to vector<128xf32>
    %125 = vector.shape_cast %124 : vector<128xf32> to vector<1x128xf32>
    %126 = arith.addf %62, %125 : vector<1x128xf32>
    %127 = arith.mulf %120, %120 : vector<32x128xf32>
    %cst_100 = arith.constant dense<0.000000e+00> : vector<128xf32>
    %128 = vector.multi_reduction <add>, %127, %cst_100 [0] : vector<32x128xf32> to vector<128xf32>
    %129 = vector.shape_cast %128 : vector<128xf32> to vector<1x128xf32>
    %130 = arith.addf %66, %129 : vector<1x128xf32>
    %cst_101 = arith.constant 0.000000e+00 : f32
    %131 = vector.broadcast %cst_101 : f32 to vector<32x128xf32>
    %c0_102 = arith.constant 0 : index
    %c2_103 = arith.constant 2 : index
    %c0_104 = arith.constant 0 : index
    %c0_105 = arith.constant 0 : index
    %132 = vector.load %arg1[%c0_102, %c2_103, %c0_104, %c0_105] : memref<1x7x34x102xbf16, #tpu.memory_space<vmem>>, vector<1x1x34x102xbf16>
    %133 = vector.shape_cast %132 : vector<1x1x34x102xbf16> to vector<34x102xbf16>
    %134 = vector.extract_strided_slice %133 {offsets = [0, 0], sizes = [32, 102], strides = [1, 1]} : vector<34x102xbf16> to vector<32x102xbf16>
    %c0_106 = arith.constant 0 : index
    %c0_107 = arith.constant 0 : index
    %c0_108 = arith.constant 0 : index
    %135 = vector.load %arg2[%c0_106, %c0_107, %c0_108] : memref<9x102x128xbf16, #tpu.memory_space<vmem>>, vector<1x102x128xbf16>
    %136 = vector.shape_cast %135 : vector<1x102x128xbf16> to vector<102x128xbf16>
    %cst_109 = arith.constant dense<0.000000e+00> : vector<32x128xf32>
    %137 = tpu.matmul %134, %136, %cst_109 {dimension_numbers = #tpu.dot_dimension_numbers<[1], [0], [0], [1], [0, 0, 1, 1], [], []>} : vector<32x102xbf16>, vector<102x128xbf16>, vector<32x128xf32> -> vector<32x128xf32>
    %138 = arith.addf %131, %137 : vector<32x128xf32>
    %139 = vector.extract_strided_slice %133 {offsets = [1, 0], sizes = [32, 102], strides = [1, 1]} : vector<34x102xbf16> to vector<32x102xbf16>
    %c1_110 = arith.constant 1 : index
    %c0_111 = arith.constant 0 : index
    %c0_112 = arith.constant 0 : index
    %140 = vector.load %arg2[%c1_110, %c0_111, %c0_112] : memref<9x102x128xbf16, #tpu.memory_space<vmem>>, vector<1x102x128xbf16>
    %141 = vector.shape_cast %140 : vector<1x102x128xbf16> to vector<102x128xbf16>
    %cst_113 = arith.constant dense<0.000000e+00> : vector<32x128xf32>
    %142 = tpu.matmul %139, %141, %cst_113 {dimension_numbers = #tpu.dot_dimension_numbers<[1], [0], [0], [1], [0, 0, 1, 1], [], []>} : vector<32x102xbf16>, vector<102x128xbf16>, vector<32x128xf32> -> vector<32x128xf32>
    %143 = arith.addf %138, %142 : vector<32x128xf32>
    %144 = vector.extract_strided_slice %133 {offsets = [2, 0], sizes = [32, 102], strides = [1, 1]} : vector<34x102xbf16> to vector<32x102xbf16>
    %c2_114 = arith.constant 2 : index
    %c0_115 = arith.constant 0 : index
    %c0_116 = arith.constant 0 : index
    %145 = vector.load %arg2[%c2_114, %c0_115, %c0_116] : memref<9x102x128xbf16, #tpu.memory_space<vmem>>, vector<1x102x128xbf16>
    %146 = vector.shape_cast %145 : vector<1x102x128xbf16> to vector<102x128xbf16>
    %cst_117 = arith.constant dense<0.000000e+00> : vector<32x128xf32>
    %147 = tpu.matmul %144, %146, %cst_117 {dimension_numbers = #tpu.dot_dimension_numbers<[1], [0], [0], [1], [0, 0, 1, 1], [], []>} : vector<32x102xbf16>, vector<102x128xbf16>, vector<32x128xf32> -> vector<32x128xf32>
    %148 = arith.addf %143, %147 : vector<32x128xf32>
    %c0_118 = arith.constant 0 : index
    %c3_119 = arith.constant 3 : index
    %c0_120 = arith.constant 0 : index
    %c0_121 = arith.constant 0 : index
    %149 = vector.load %arg1[%c0_118, %c3_119, %c0_120, %c0_121] : memref<1x7x34x102xbf16, #tpu.memory_space<vmem>>, vector<1x1x34x102xbf16>
    %150 = vector.shape_cast %149 : vector<1x1x34x102xbf16> to vector<34x102xbf16>
    %151 = vector.extract_strided_slice %150 {offsets = [0, 0], sizes = [32, 102], strides = [1, 1]} : vector<34x102xbf16> to vector<32x102xbf16>
    %c3_122 = arith.constant 3 : index
    %c0_123 = arith.constant 0 : index
    %c0_124 = arith.constant 0 : index
    %152 = vector.load %arg2[%c3_122, %c0_123, %c0_124] : memref<9x102x128xbf16, #tpu.memory_space<vmem>>, vector<1x102x128xbf16>
    %153 = vector.shape_cast %152 : vector<1x102x128xbf16> to vector<102x128xbf16>
    %cst_125 = arith.constant dense<0.000000e+00> : vector<32x128xf32>
    %154 = tpu.matmul %151, %153, %cst_125 {dimension_numbers = #tpu.dot_dimension_numbers<[1], [0], [0], [1], [0, 0, 1, 1], [], []>} : vector<32x102xbf16>, vector<102x128xbf16>, vector<32x128xf32> -> vector<32x128xf32>
    %155 = arith.addf %148, %154 : vector<32x128xf32>
    %156 = vector.extract_strided_slice %150 {offsets = [1, 0], sizes = [32, 102], strides = [1, 1]} : vector<34x102xbf16> to vector<32x102xbf16>
    %c4_126 = arith.constant 4 : index
    %c0_127 = arith.constant 0 : index
    %c0_128 = arith.constant 0 : index
    %157 = vector.load %arg2[%c4_126, %c0_127, %c0_128] : memref<9x102x128xbf16, #tpu.memory_space<vmem>>, vector<1x102x128xbf16>
    %158 = vector.shape_cast %157 : vector<1x102x128xbf16> to vector<102x128xbf16>
    %cst_129 = arith.constant dense<0.000000e+00> : vector<32x128xf32>
    %159 = tpu.matmul %156, %158, %cst_129 {dimension_numbers = #tpu.dot_dimension_numbers<[1], [0], [0], [1], [0, 0, 1, 1], [], []>} : vector<32x102xbf16>, vector<102x128xbf16>, vector<32x128xf32> -> vector<32x128xf32>
    %160 = arith.addf %155, %159 : vector<32x128xf32>
    %161 = vector.extract_strided_slice %150 {offsets = [2, 0], sizes = [32, 102], strides = [1, 1]} : vector<34x102xbf16> to vector<32x102xbf16>
    %c5_130 = arith.constant 5 : index
    %c0_131 = arith.constant 0 : index
    %c0_132 = arith.constant 0 : index
    %162 = vector.load %arg2[%c5_130, %c0_131, %c0_132] : memref<9x102x128xbf16, #tpu.memory_space<vmem>>, vector<1x102x128xbf16>
    %163 = vector.shape_cast %162 : vector<1x102x128xbf16> to vector<102x128xbf16>
    %cst_133 = arith.constant dense<0.000000e+00> : vector<32x128xf32>
    %164 = tpu.matmul %161, %163, %cst_133 {dimension_numbers = #tpu.dot_dimension_numbers<[1], [0], [0], [1], [0, 0, 1, 1], [], []>} : vector<32x102xbf16>, vector<102x128xbf16>, vector<32x128xf32> -> vector<32x128xf32>
    %165 = arith.addf %160, %164 : vector<32x128xf32>
    %c0_134 = arith.constant 0 : index
    %c4_135 = arith.constant 4 : index
    %c0_136 = arith.constant 0 : index
    %c0_137 = arith.constant 0 : index
    %166 = vector.load %arg1[%c0_134, %c4_135, %c0_136, %c0_137] : memref<1x7x34x102xbf16, #tpu.memory_space<vmem>>, vector<1x1x34x102xbf16>
    %167 = vector.shape_cast %166 : vector<1x1x34x102xbf16> to vector<34x102xbf16>
    %168 = vector.extract_strided_slice %167 {offsets = [0, 0], sizes = [32, 102], strides = [1, 1]} : vector<34x102xbf16> to vector<32x102xbf16>
    %c6_138 = arith.constant 6 : index
    %c0_139 = arith.constant 0 : index
    %c0_140 = arith.constant 0 : index
    %169 = vector.load %arg2[%c6_138, %c0_139, %c0_140] : memref<9x102x128xbf16, #tpu.memory_space<vmem>>, vector<1x102x128xbf16>
    %170 = vector.shape_cast %169 : vector<1x102x128xbf16> to vector<102x128xbf16>
    %cst_141 = arith.constant dense<0.000000e+00> : vector<32x128xf32>
    %171 = tpu.matmul %168, %170, %cst_141 {dimension_numbers = #tpu.dot_dimension_numbers<[1], [0], [0], [1], [0, 0, 1, 1], [], []>} : vector<32x102xbf16>, vector<102x128xbf16>, vector<32x128xf32> -> vector<32x128xf32>
    %172 = arith.addf %165, %171 : vector<32x128xf32>
    %173 = vector.extract_strided_slice %167 {offsets = [1, 0], sizes = [32, 102], strides = [1, 1]} : vector<34x102xbf16> to vector<32x102xbf16>
    %c7_142 = arith.constant 7 : index
    %c0_143 = arith.constant 0 : index
    %c0_144 = arith.constant 0 : index
    %174 = vector.load %arg2[%c7_142, %c0_143, %c0_144] : memref<9x102x128xbf16, #tpu.memory_space<vmem>>, vector<1x102x128xbf16>
    %175 = vector.shape_cast %174 : vector<1x102x128xbf16> to vector<102x128xbf16>
    %cst_145 = arith.constant dense<0.000000e+00> : vector<32x128xf32>
    %176 = tpu.matmul %173, %175, %cst_145 {dimension_numbers = #tpu.dot_dimension_numbers<[1], [0], [0], [1], [0, 0, 1, 1], [], []>} : vector<32x102xbf16>, vector<102x128xbf16>, vector<32x128xf32> -> vector<32x128xf32>
    %177 = arith.addf %172, %176 : vector<32x128xf32>
    %178 = vector.extract_strided_slice %167 {offsets = [2, 0], sizes = [32, 102], strides = [1, 1]} : vector<34x102xbf16> to vector<32x102xbf16>
    %c8_146 = arith.constant 8 : index
    %c0_147 = arith.constant 0 : index
    %c0_148 = arith.constant 0 : index
    %179 = vector.load %arg2[%c8_146, %c0_147, %c0_148] : memref<9x102x128xbf16, #tpu.memory_space<vmem>>, vector<1x102x128xbf16>
    %180 = vector.shape_cast %179 : vector<1x102x128xbf16> to vector<102x128xbf16>
    %cst_149 = arith.constant dense<0.000000e+00> : vector<32x128xf32>
    %181 = tpu.matmul %178, %180, %cst_149 {dimension_numbers = #tpu.dot_dimension_numbers<[1], [0], [0], [1], [0, 0, 1, 1], [], []>} : vector<32x102xbf16>, vector<102x128xbf16>, vector<32x128xf32> -> vector<32x128xf32>
    %182 = arith.addf %177, %181 : vector<32x128xf32>
    %183 = vector.broadcast %0 : vector<1x128xf32> to vector<32x128xf32>
    %184 = arith.addf %182, %183 : vector<32x128xf32>
    %c0_150 = arith.constant 0 : index
    %c64 = arith.constant 64 : index
    %c0_151 = arith.constant 0 : index
    %185 = vector.load %arg4[%c0_150, %c64, %c0_151] : memref<1x160x128xf32, #tpu.memory_space<vmem>>, vector<1x32x128xf32>
    %186 = vector.shape_cast %185 : vector<1x32x128xf32> to vector<32x128xf32>
    %187 = vector.shape_cast %184 : vector<32x128xf32> to vector<1x32x128xf32>
    tpu.vector_store %arg4[%c0_150, %c64, %c0_151], %187 {strides = array<i32>} : memref<1x160x128xf32, #tpu.memory_space<vmem>>, vector<1x32x128xf32>,
    %cst_152 = arith.constant dense<0.000000e+00> : vector<128xf32>
    %188 = vector.multi_reduction <add>, %184, %cst_152 [0] : vector<32x128xf32> to vector<128xf32>
    %189 = vector.shape_cast %188 : vector<128xf32> to vector<1x128xf32>
    %190 = arith.addf %126, %189 : vector<1x128xf32>
    %191 = arith.mulf %184, %184 : vector<32x128xf32>
    %cst_153 = arith.constant dense<0.000000e+00> : vector<128xf32>
    %192 = vector.multi_reduction <add>, %191, %cst_153 [0] : vector<32x128xf32> to vector<128xf32>
    %193 = vector.shape_cast %192 : vector<128xf32> to vector<1x128xf32>
    %194 = arith.addf %130, %193 : vector<1x128xf32>
    %cst_154 = arith.constant 0.000000e+00 : f32
    %195 = vector.broadcast %cst_154 : f32 to vector<32x128xf32>
    %c0_155 = arith.constant 0 : index
    %c3_156 = arith.constant 3 : index
    %c0_157 = arith.constant 0 : index
    %c0_158 = arith.constant 0 : index
    %196 = vector.load %arg1[%c0_155, %c3_156, %c0_157, %c0_158] : memref<1x7x34x102xbf16, #tpu.memory_space<vmem>>, vector<1x1x34x102xbf16>
    %197 = vector.shape_cast %196 : vector<1x1x34x102xbf16> to vector<34x102xbf16>
    %198 = vector.extract_strided_slice %197 {offsets = [0, 0], sizes = [32, 102], strides = [1, 1]} : vector<34x102xbf16> to vector<32x102xbf16>
    %c0_159 = arith.constant 0 : index
    %c0_160 = arith.constant 0 : index
    %c0_161 = arith.constant 0 : index
    %199 = vector.load %arg2[%c0_159, %c0_160, %c0_161] : memref<9x102x128xbf16, #tpu.memory_space<vmem>>, vector<1x102x128xbf16>
    %200 = vector.shape_cast %199 : vector<1x102x128xbf16> to vector<102x128xbf16>
    %cst_162 = arith.constant dense<0.000000e+00> : vector<32x128xf32>
    %201 = tpu.matmul %198, %200, %cst_162 {dimension_numbers = #tpu.dot_dimension_numbers<[1], [0], [0], [1], [0, 0, 1, 1], [], []>} : vector<32x102xbf16>, vector<102x128xbf16>, vector<32x128xf32> -> vector<32x128xf32>
    %202 = arith.addf %195, %201 : vector<32x128xf32>
    %203 = vector.extract_strided_slice %197 {offsets = [1, 0], sizes = [32, 102], strides = [1, 1]} : vector<34x102xbf16> to vector<32x102xbf16>
    %c1_163 = arith.constant 1 : index
    %c0_164 = arith.constant 0 : index
    %c0_165 = arith.constant 0 : index
    %204 = vector.load %arg2[%c1_163, %c0_164, %c0_165] : memref<9x102x128xbf16, #tpu.memory_space<vmem>>, vector<1x102x128xbf16>
    %205 = vector.shape_cast %204 : vector<1x102x128xbf16> to vector<102x128xbf16>
    %cst_166 = arith.constant dense<0.000000e+00> : vector<32x128xf32>
    %206 = tpu.matmul %203, %205, %cst_166 {dimension_numbers = #tpu.dot_dimension_numbers<[1], [0], [0], [1], [0, 0, 1, 1], [], []>} : vector<32x102xbf16>, vector<102x128xbf16>, vector<32x128xf32> -> vector<32x128xf32>
    %207 = arith.addf %202, %206 : vector<32x128xf32>
    %208 = vector.extract_strided_slice %197 {offsets = [2, 0], sizes = [32, 102], strides = [1, 1]} : vector<34x102xbf16> to vector<32x102xbf16>
    %c2_167 = arith.constant 2 : index
    %c0_168 = arith.constant 0 : index
    %c0_169 = arith.constant 0 : index
    %209 = vector.load %arg2[%c2_167, %c0_168, %c0_169] : memref<9x102x128xbf16, #tpu.memory_space<vmem>>, vector<1x102x128xbf16>
    %210 = vector.shape_cast %209 : vector<1x102x128xbf16> to vector<102x128xbf16>
    %cst_170 = arith.constant dense<0.000000e+00> : vector<32x128xf32>
    %211 = tpu.matmul %208, %210, %cst_170 {dimension_numbers = #tpu.dot_dimension_numbers<[1], [0], [0], [1], [0, 0, 1, 1], [], []>} : vector<32x102xbf16>, vector<102x128xbf16>, vector<32x128xf32> -> vector<32x128xf32>
    %212 = arith.addf %207, %211 : vector<32x128xf32>
    %c0_171 = arith.constant 0 : index
    %c4_172 = arith.constant 4 : index
    %c0_173 = arith.constant 0 : index
    %c0_174 = arith.constant 0 : index
    %213 = vector.load %arg1[%c0_171, %c4_172, %c0_173, %c0_174] : memref<1x7x34x102xbf16, #tpu.memory_space<vmem>>, vector<1x1x34x102xbf16>
    %214 = vector.shape_cast %213 : vector<1x1x34x102xbf16> to vector<34x102xbf16>
    %215 = vector.extract_strided_slice %214 {offsets = [0, 0], sizes = [32, 102], strides = [1, 1]} : vector<34x102xbf16> to vector<32x102xbf16>
    %c3_175 = arith.constant 3 : index
    %c0_176 = arith.constant 0 : index
    %c0_177 = arith.constant 0 : index
    %216 = vector.load %arg2[%c3_175, %c0_176, %c0_177] : memref<9x102x128xbf16, #tpu.memory_space<vmem>>, vector<1x102x128xbf16>
    %217 = vector.shape_cast %216 : vector<1x102x128xbf16> to vector<102x128xbf16>
    %cst_178 = arith.constant dense<0.000000e+00> : vector<32x128xf32>
    %218 = tpu.matmul %215, %217, %cst_178 {dimension_numbers = #tpu.dot_dimension_numbers<[1], [0], [0], [1], [0, 0, 1, 1], [], []>} : vector<32x102xbf16>, vector<102x128xbf16>, vector<32x128xf32> -> vector<32x128xf32>
    %219 = arith.addf %212, %218 : vector<32x128xf32>
    %220 = vector.extract_strided_slice %214 {offsets = [1, 0], sizes = [32, 102], strides = [1, 1]} : vector<34x102xbf16> to vector<32x102xbf16>
    %c4_179 = arith.constant 4 : index
    %c0_180 = arith.constant 0 : index
    %c0_181 = arith.constant 0 : index
    %221 = vector.load %arg2[%c4_179, %c0_180, %c0_181] : memref<9x102x128xbf16, #tpu.memory_space<vmem>>, vector<1x102x128xbf16>
    %222 = vector.shape_cast %221 : vector<1x102x128xbf16> to vector<102x128xbf16>
    %cst_182 = arith.constant dense<0.000000e+00> : vector<32x128xf32>
    %223 = tpu.matmul %220, %222, %cst_182 {dimension_numbers = #tpu.dot_dimension_numbers<[1], [0], [0], [1], [0, 0, 1, 1], [], []>} : vector<32x102xbf16>, vector<102x128xbf16>, vector<32x128xf32> -> vector<32x128xf32>
    %224 = arith.addf %219, %223 : vector<32x128xf32>
    %225 = vector.extract_strided_slice %214 {offsets = [2, 0], sizes = [32, 102], strides = [1, 1]} : vector<34x102xbf16> to vector<32x102xbf16>
    %c5_183 = arith.constant 5 : index
    %c0_184 = arith.constant 0 : index
    %c0_185 = arith.constant 0 : index
    %226 = vector.load %arg2[%c5_183, %c0_184, %c0_185] : memref<9x102x128xbf16, #tpu.memory_space<vmem>>, vector<1x102x128xbf16>
    %227 = vector.shape_cast %226 : vector<1x102x128xbf16> to vector<102x128xbf16>
    %cst_186 = arith.constant dense<0.000000e+00> : vector<32x128xf32>
    %228 = tpu.matmul %225, %227, %cst_186 {dimension_numbers = #tpu.dot_dimension_numbers<[1], [0], [0], [1], [0, 0, 1, 1], [], []>} : vector<32x102xbf16>, vector<102x128xbf16>, vector<32x128xf32> -> vector<32x128xf32>
    %229 = arith.addf %224, %228 : vector<32x128xf32>
    %c0_187 = arith.constant 0 : index
    %c5_188 = arith.constant 5 : index
    %c0_189 = arith.constant 0 : index
    %c0_190 = arith.constant 0 : index
    %230 = vector.load %arg1[%c0_187, %c5_188, %c0_189, %c0_190] : memref<1x7x34x102xbf16, #tpu.memory_space<vmem>>, vector<1x1x34x102xbf16>
    %231 = vector.shape_cast %230 : vector<1x1x34x102xbf16> to vector<34x102xbf16>
    %232 = vector.extract_strided_slice %231 {offsets = [0, 0], sizes = [32, 102], strides = [1, 1]} : vector<34x102xbf16> to vector<32x102xbf16>
    %c6_191 = arith.constant 6 : index
    %c0_192 = arith.constant 0 : index
    %c0_193 = arith.constant 0 : index
    %233 = vector.load %arg2[%c6_191, %c0_192, %c0_193] : memref<9x102x128xbf16, #tpu.memory_space<vmem>>, vector<1x102x128xbf16>
    %234 = vector.shape_cast %233 : vector<1x102x128xbf16> to vector<102x128xbf16>
    %cst_194 = arith.constant dense<0.000000e+00> : vector<32x128xf32>
    %235 = tpu.matmul %232, %234, %cst_194 {dimension_numbers = #tpu.dot_dimension_numbers<[1], [0], [0], [1], [0, 0, 1, 1], [], []>} : vector<32x102xbf16>, vector<102x128xbf16>, vector<32x128xf32> -> vector<32x128xf32>
    %236 = arith.addf %229, %235 : vector<32x128xf32>
    %237 = vector.extract_strided_slice %231 {offsets = [1, 0], sizes = [32, 102], strides = [1, 1]} : vector<34x102xbf16> to vector<32x102xbf16>
    %c7_195 = arith.constant 7 : index
    %c0_196 = arith.constant 0 : index
    %c0_197 = arith.constant 0 : index
    %238 = vector.load %arg2[%c7_195, %c0_196, %c0_197] : memref<9x102x128xbf16, #tpu.memory_space<vmem>>, vector<1x102x128xbf16>
    %239 = vector.shape_cast %238 : vector<1x102x128xbf16> to vector<102x128xbf16>
    %cst_198 = arith.constant dense<0.000000e+00> : vector<32x128xf32>
    %240 = tpu.matmul %237, %239, %cst_198 {dimension_numbers = #tpu.dot_dimension_numbers<[1], [0], [0], [1], [0, 0, 1, 1], [], []>} : vector<32x102xbf16>, vector<102x128xbf16>, vector<32x128xf32> -> vector<32x128xf32>
    %241 = arith.addf %236, %240 : vector<32x128xf32>
    %242 = vector.extract_strided_slice %231 {offsets = [2, 0], sizes = [32, 102], strides = [1, 1]} : vector<34x102xbf16> to vector<32x102xbf16>
    %c8_199 = arith.constant 8 : index
    %c0_200 = arith.constant 0 : index
    %c0_201 = arith.constant 0 : index
    %243 = vector.load %arg2[%c8_199, %c0_200, %c0_201] : memref<9x102x128xbf16, #tpu.memory_space<vmem>>, vector<1x102x128xbf16>
    %244 = vector.shape_cast %243 : vector<1x102x128xbf16> to vector<102x128xbf16>
    %cst_202 = arith.constant dense<0.000000e+00> : vector<32x128xf32>
    %245 = tpu.matmul %242, %244, %cst_202 {dimension_numbers = #tpu.dot_dimension_numbers<[1], [0], [0], [1], [0, 0, 1, 1], [], []>} : vector<32x102xbf16>, vector<102x128xbf16>, vector<32x128xf32> -> vector<32x128xf32>
    %246 = arith.addf %241, %245 : vector<32x128xf32>
    %247 = vector.broadcast %0 : vector<1x128xf32> to vector<32x128xf32>
    %248 = arith.addf %246, %247 : vector<32x128xf32>
    %c0_203 = arith.constant 0 : index
    %c96 = arith.constant 96 : index
    %c0_204 = arith.constant 0 : index
    %249 = vector.load %arg4[%c0_203, %c96, %c0_204] : memref<1x160x128xf32, #tpu.memory_space<vmem>>, vector<1x32x128xf32>
    %250 = vector.shape_cast %249 : vector<1x32x128xf32> to vector<32x128xf32>
    %251 = vector.shape_cast %248 : vector<32x128xf32> to vector<1x32x128xf32>
    tpu.vector_store %arg4[%c0_203, %c96, %c0_204], %251 {strides = array<i32>} : memref<1x160x128xf32, #tpu.memory_space<vmem>>, vector<1x32x128xf32>,
    %cst_205 = arith.constant dense<0.000000e+00> : vector<128xf32>
    %252 = vector.multi_reduction <add>, %248, %cst_205 [0] : vector<32x128xf32> to vector<128xf32>
    %253 = vector.shape_cast %252 : vector<128xf32> to vector<1x128xf32>
    %254 = arith.addf %190, %253 : vector<1x128xf32>
    %255 = arith.mulf %248, %248 : vector<32x128xf32>
    %cst_206 = arith.constant dense<0.000000e+00> : vector<128xf32>
    %256 = vector.multi_reduction <add>, %255, %cst_206 [0] : vector<32x128xf32> to vector<128xf32>
    %257 = vector.shape_cast %256 : vector<128xf32> to vector<1x128xf32>
    %258 = arith.addf %194, %257 : vector<1x128xf32>
    %cst_207 = arith.constant 0.000000e+00 : f32
    %259 = vector.broadcast %cst_207 : f32 to vector<32x128xf32>
    %c0_208 = arith.constant 0 : index
    %c4_209 = arith.constant 4 : index
    %c0_210 = arith.constant 0 : index
    %c0_211 = arith.constant 0 : index
    %260 = vector.load %arg1[%c0_208, %c4_209, %c0_210, %c0_211] : memref<1x7x34x102xbf16, #tpu.memory_space<vmem>>, vector<1x1x34x102xbf16>
    %261 = vector.shape_cast %260 : vector<1x1x34x102xbf16> to vector<34x102xbf16>
    %262 = vector.extract_strided_slice %261 {offsets = [0, 0], sizes = [32, 102], strides = [1, 1]} : vector<34x102xbf16> to vector<32x102xbf16>
    %c0_212 = arith.constant 0 : index
    %c0_213 = arith.constant 0 : index
    %c0_214 = arith.constant 0 : index
    %263 = vector.load %arg2[%c0_212, %c0_213, %c0_214] : memref<9x102x128xbf16, #tpu.memory_space<vmem>>, vector<1x102x128xbf16>
    %264 = vector.shape_cast %263 : vector<1x102x128xbf16> to vector<102x128xbf16>
    %cst_215 = arith.constant dense<0.000000e+00> : vector<32x128xf32>
    %265 = tpu.matmul %262, %264, %cst_215 {dimension_numbers = #tpu.dot_dimension_numbers<[1], [0], [0], [1], [0, 0, 1, 1], [], []>} : vector<32x102xbf16>, vector<102x128xbf16>, vector<32x128xf32> -> vector<32x128xf32>
    %266 = arith.addf %259, %265 : vector<32x128xf32>
    %267 = vector.extract_strided_slice %261 {offsets = [1, 0], sizes = [32, 102], strides = [1, 1]} : vector<34x102xbf16> to vector<32x102xbf16>
    %c1_216 = arith.constant 1 : index
    %c0_217 = arith.constant 0 : index
    %c0_218 = arith.constant 0 : index
    %268 = vector.load %arg2[%c1_216, %c0_217, %c0_218] : memref<9x102x128xbf16, #tpu.memory_space<vmem>>, vector<1x102x128xbf16>
    %269 = vector.shape_cast %268 : vector<1x102x128xbf16> to vector<102x128xbf16>
    %cst_219 = arith.constant dense<0.000000e+00> : vector<32x128xf32>
    %270 = tpu.matmul %267, %269, %cst_219 {dimension_numbers = #tpu.dot_dimension_numbers<[1], [0], [0], [1], [0, 0, 1, 1], [], []>} : vector<32x102xbf16>, vector<102x128xbf16>, vector<32x128xf32> -> vector<32x128xf32>
    %271 = arith.addf %266, %270 : vector<32x128xf32>
    %272 = vector.extract_strided_slice %261 {offsets = [2, 0], sizes = [32, 102], strides = [1, 1]} : vector<34x102xbf16> to vector<32x102xbf16>
    %c2_220 = arith.constant 2 : index
    %c0_221 = arith.constant 0 : index
    %c0_222 = arith.constant 0 : index
    %273 = vector.load %arg2[%c2_220, %c0_221, %c0_222] : memref<9x102x128xbf16, #tpu.memory_space<vmem>>, vector<1x102x128xbf16>
    %274 = vector.shape_cast %273 : vector<1x102x128xbf16> to vector<102x128xbf16>
    %cst_223 = arith.constant dense<0.000000e+00> : vector<32x128xf32>
    %275 = tpu.matmul %272, %274, %cst_223 {dimension_numbers = #tpu.dot_dimension_numbers<[1], [0], [0], [1], [0, 0, 1, 1], [], []>} : vector<32x102xbf16>, vector<102x128xbf16>, vector<32x128xf32> -> vector<32x128xf32>
    %276 = arith.addf %271, %275 : vector<32x128xf32>
    %c0_224 = arith.constant 0 : index
    %c5_225 = arith.constant 5 : index
    %c0_226 = arith.constant 0 : index
    %c0_227 = arith.constant 0 : index
    %277 = vector.load %arg1[%c0_224, %c5_225, %c0_226, %c0_227] : memref<1x7x34x102xbf16, #tpu.memory_space<vmem>>, vector<1x1x34x102xbf16>
    %278 = vector.shape_cast %277 : vector<1x1x34x102xbf16> to vector<34x102xbf16>
    %279 = vector.extract_strided_slice %278 {offsets = [0, 0], sizes = [32, 102], strides = [1, 1]} : vector<34x102xbf16> to vector<32x102xbf16>
    %c3_228 = arith.constant 3 : index
    %c0_229 = arith.constant 0 : index
    %c0_230 = arith.constant 0 : index
    %280 = vector.load %arg2[%c3_228, %c0_229, %c0_230] : memref<9x102x128xbf16, #tpu.memory_space<vmem>>, vector<1x102x128xbf16>
    %281 = vector.shape_cast %280 : vector<1x102x128xbf16> to vector<102x128xbf16>
    %cst_231 = arith.constant dense<0.000000e+00> : vector<32x128xf32>
    %282 = tpu.matmul %279, %281, %cst_231 {dimension_numbers = #tpu.dot_dimension_numbers<[1], [0], [0], [1], [0, 0, 1, 1], [], []>} : vector<32x102xbf16>, vector<102x128xbf16>, vector<32x128xf32> -> vector<32x128xf32>
    %283 = arith.addf %276, %282 : vector<32x128xf32>
    %284 = vector.extract_strided_slice %278 {offsets = [1, 0], sizes = [32, 102], strides = [1, 1]} : vector<34x102xbf16> to vector<32x102xbf16>
    %c4_232 = arith.constant 4 : index
    %c0_233 = arith.constant 0 : index
    %c0_234 = arith.constant 0 : index
    %285 = vector.load %arg2[%c4_232, %c0_233, %c0_234] : memref<9x102x128xbf16, #tpu.memory_space<vmem>>, vector<1x102x128xbf16>
    %286 = vector.shape_cast %285 : vector<1x102x128xbf16> to vector<102x128xbf16>
    %cst_235 = arith.constant dense<0.000000e+00> : vector<32x128xf32>
    %287 = tpu.matmul %284, %286, %cst_235 {dimension_numbers = #tpu.dot_dimension_numbers<[1], [0], [0], [1], [0, 0, 1, 1], [], []>} : vector<32x102xbf16>, vector<102x128xbf16>, vector<32x128xf32> -> vector<32x128xf32>
    %288 = arith.addf %283, %287 : vector<32x128xf32>
    %289 = vector.extract_strided_slice %278 {offsets = [2, 0], sizes = [32, 102], strides = [1, 1]} : vector<34x102xbf16> to vector<32x102xbf16>
    %c5_236 = arith.constant 5 : index
    %c0_237 = arith.constant 0 : index
    %c0_238 = arith.constant 0 : index
    %290 = vector.load %arg2[%c5_236, %c0_237, %c0_238] : memref<9x102x128xbf16, #tpu.memory_space<vmem>>, vector<1x102x128xbf16>
    %291 = vector.shape_cast %290 : vector<1x102x128xbf16> to vector<102x128xbf16>
    %cst_239 = arith.constant dense<0.000000e+00> : vector<32x128xf32>
    %292 = tpu.matmul %289, %291, %cst_239 {dimension_numbers = #tpu.dot_dimension_numbers<[1], [0], [0], [1], [0, 0, 1, 1], [], []>} : vector<32x102xbf16>, vector<102x128xbf16>, vector<32x128xf32> -> vector<32x128xf32>
    %293 = arith.addf %288, %292 : vector<32x128xf32>
    %c0_240 = arith.constant 0 : index
    %c6_241 = arith.constant 6 : index
    %c0_242 = arith.constant 0 : index
    %c0_243 = arith.constant 0 : index
    %294 = vector.load %arg1[%c0_240, %c6_241, %c0_242, %c0_243] : memref<1x7x34x102xbf16, #tpu.memory_space<vmem>>, vector<1x1x34x102xbf16>
    %295 = vector.shape_cast %294 : vector<1x1x34x102xbf16> to vector<34x102xbf16>
    %296 = vector.extract_strided_slice %295 {offsets = [0, 0], sizes = [32, 102], strides = [1, 1]} : vector<34x102xbf16> to vector<32x102xbf16>
    %c6_244 = arith.constant 6 : index
    %c0_245 = arith.constant 0 : index
    %c0_246 = arith.constant 0 : index
    %297 = vector.load %arg2[%c6_244, %c0_245, %c0_246] : memref<9x102x128xbf16, #tpu.memory_space<vmem>>, vector<1x102x128xbf16>
    %298 = vector.shape_cast %297 : vector<1x102x128xbf16> to vector<102x128xbf16>
    %cst_247 = arith.constant dense<0.000000e+00> : vector<32x128xf32>
    %299 = tpu.matmul %296, %298, %cst_247 {dimension_numbers = #tpu.dot_dimension_numbers<[1], [0], [0], [1], [0, 0, 1, 1], [], []>} : vector<32x102xbf16>, vector<102x128xbf16>, vector<32x128xf32> -> vector<32x128xf32>
    %300 = arith.addf %293, %299 : vector<32x128xf32>
    %301 = vector.extract_strided_slice %295 {offsets = [1, 0], sizes = [32, 102], strides = [1, 1]} : vector<34x102xbf16> to vector<32x102xbf16>
    %c7_248 = arith.constant 7 : index
    %c0_249 = arith.constant 0 : index
    %c0_250 = arith.constant 0 : index
    %302 = vector.load %arg2[%c7_248, %c0_249, %c0_250] : memref<9x102x128xbf16, #tpu.memory_space<vmem>>, vector<1x102x128xbf16>
    %303 = vector.shape_cast %302 : vector<1x102x128xbf16> to vector<102x128xbf16>
    %cst_251 = arith.constant dense<0.000000e+00> : vector<32x128xf32>
    %304 = tpu.matmul %301, %303, %cst_251 {dimension_numbers = #tpu.dot_dimension_numbers<[1], [0], [0], [1], [0, 0, 1, 1], [], []>} : vector<32x102xbf16>, vector<102x128xbf16>, vector<32x128xf32> -> vector<32x128xf32>
    %305 = arith.addf %300, %304 : vector<32x128xf32>
    %306 = vector.extract_strided_slice %295 {offsets = [2, 0], sizes = [32, 102], strides = [1, 1]} : vector<34x102xbf16> to vector<32x102xbf16>
    %c8_252 = arith.constant 8 : index
    %c0_253 = arith.constant 0 : index
    %c0_254 = arith.constant 0 : index
    %307 = vector.load %arg2[%c8_252, %c0_253, %c0_254] : memref<9x102x128xbf16, #tpu.memory_space<vmem>>, vector<1x102x128xbf16>
    %308 = vector.shape_cast %307 : vector<1x102x128xbf16> to vector<102x128xbf16>
    %cst_255 = arith.constant dense<0.000000e+00> : vector<32x128xf32>
    %309 = tpu.matmul %306, %308, %cst_255 {dimension_numbers = #tpu.dot_dimension_numbers<[1], [0], [0], [1], [0, 0, 1, 1], [], []>} : vector<32x102xbf16>, vector<102x128xbf16>, vector<32x128xf32> -> vector<32x128xf32>
    %310 = arith.addf %305, %309 : vector<32x128xf32>
    %311 = vector.broadcast %0 : vector<1x128xf32> to vector<32x128xf32>
    %312 = arith.addf %310, %311 : vector<32x128xf32>
    %c0_256 = arith.constant 0 : index
    %c128 = arith.constant 128 : index
    %c0_257 = arith.constant 0 : index
    %313 = vector.load %arg4[%c0_256, %c128, %c0_257] : memref<1x160x128xf32, #tpu.memory_space<vmem>>, vector<1x32x128xf32>
    %314 = vector.shape_cast %313 : vector<1x32x128xf32> to vector<32x128xf32>
    %315 = vector.shape_cast %312 : vector<32x128xf32> to vector<1x32x128xf32>
    tpu.vector_store %arg4[%c0_256, %c128, %c0_257], %315 {strides = array<i32>} : memref<1x160x128xf32, #tpu.memory_space<vmem>>, vector<1x32x128xf32>,
    %cst_258 = arith.constant dense<0.000000e+00> : vector<128xf32>
    %316 = vector.multi_reduction <add>, %312, %cst_258 [0] : vector<32x128xf32> to vector<128xf32>
    %317 = vector.shape_cast %316 : vector<128xf32> to vector<1x128xf32>
    %318 = arith.addf %254, %317 : vector<1x128xf32>
    %319 = arith.mulf %312, %312 : vector<32x128xf32>
    %cst_259 = arith.constant dense<0.000000e+00> : vector<128xf32>
    %320 = vector.multi_reduction <add>, %319, %cst_259 [0] : vector<32x128xf32> to vector<128xf32>
    %321 = vector.shape_cast %320 : vector<128xf32> to vector<1x128xf32>
    %322 = arith.addf %258, %321 : vector<1x128xf32>
    %cst_260 = arith.constant 0.000000e+00 : f32
    %323 = vector.broadcast %cst_260 : f32 to vector<6x128xf32>
    %324 = tpu.concatenate %318, %322, %323 in 0 : vector<1x128xf32>, vector<1x128xf32>, vector<6x128xf32> -> vector<8x128xf32>
    %c0_261 = arith.constant 0 : index
    %c0_262 = arith.constant 0 : index
    %c0_263 = arith.constant 0 : index
    %325 = vector.load %arg5[%c0_261, %c0_262, %c0_263] : memref<1x8x128xf32, #tpu.memory_space<vmem>>, vector<1x8x128xf32>
    %326 = vector.shape_cast %325 : vector<1x8x128xf32> to vector<8x128xf32>
    %327 = vector.shape_cast %324 : vector<8x128xf32> to vector<1x8x128xf32>
    tpu.vector_store %arg5[%c0_261, %c0_262, %c0_263], %327 {strides = array<i32>} : memref<1x8x128xf32, #tpu.memory_space<vmem>>, vector<1x8x128xf32>,
    return
  }
  func.func @transform_0(%arg0: i32) -> (i32, i32, i32, i32) {
    %c0_i32 = arith.constant 0 : i32
    %c0_i32_0 = arith.constant 0 : i32
    %c0_i32_1 = arith.constant 0 : i32
    %c0_i32_2 = arith.constant 0 : i32
    return %arg0, %c0_i32, %c0_i32_0, %c0_i32_1 : i32, i32, i32, i32
  }
  func.func @transform_1(%arg0: i32) -> (i32, i32, i32) {
    %c0_i32 = arith.constant 0 : i32
    %c0_i32_0 = arith.constant 0 : i32
    %c0_i32_1 = arith.constant 0 : i32
    %c0_i32_2 = arith.constant 0 : i32
    return %c0_i32, %c0_i32_0, %c0_i32_1 : i32, i32, i32
  }
  func.func @transform_2(%arg0: i32) -> (i32, i32) {
    %c0_i32 = arith.constant 0 : i32
    %c0_i32_0 = arith.constant 0 : i32
    %c0_i32_1 = arith.constant 0 : i32
    return %c0_i32, %c0_i32_0 : i32, i32
  }
  func.func @transform_3(%arg0: i32) -> (i32, i32, i32) {
    %c0_i32 = arith.constant 0 : i32
    %c0_i32_0 = arith.constant 0 : i32
    %c0_i32_1 = arith.constant 0 : i32
    return %arg0, %c0_i32, %c0_i32_0 : i32, i32, i32
  }
  func.func @transform_4(%arg0: i32) -> (i32, i32, i32) {
    %c0_i32 = arith.constant 0 : i32
    %c0_i32_0 = arith.constant 0 : i32
    %c0_i32_1 = arith.constant 0 : i32
    return %arg0, %c0_i32, %c0_i32_0 : i32, i32, i32
  }
}

module attributes {stable_mosaic.version = 11 : i64} {
  func.func @_bn_relu_pool_kernel(%arg0: i32, %arg1: memref<1x160x128xf32, #tpu.memory_space<vmem>>, %arg2: memref<1x128xf32, #tpu.memory_space<vmem>>, %arg3: memref<1x128xf32, #tpu.memory_space<vmem>>, %arg4: memref<80x159xf32, #tpu.memory_space<vmem>>, %arg5: memref<127x64xf32, #tpu.memory_space<vmem>>, %arg6: memref<1x80x64xf32, #tpu.memory_space<vmem>>) attributes {dimension_semantics = [#tpu.dimension_semantics<parallel>], iteration_bounds = array<i64: 2>, scalar_prefetch = 0 : i64, scratch_operands = 0 : i64, tpu.core_type = #tpu.core_type<tc>, window_params = [{transform_indices = @transform_0, window_bounds = array<i64: 1, 160, 128>}, {pipeline_mode = #tpu.pipeline_mode<synchronous>, transform_indices = @transform_1, window_bounds = array<i64: 1, 128>}, {pipeline_mode = #tpu.pipeline_mode<synchronous>, transform_indices = @transform_2, window_bounds = array<i64: 1, 128>}, {pipeline_mode = #tpu.pipeline_mode<synchronous>, transform_indices = @transform_3, window_bounds = array<i64: 80, 159>}, {pipeline_mode = #tpu.pipeline_mode<synchronous>, transform_indices = @transform_4, window_bounds = array<i64: 127, 64>}, {transform_indices = @transform_5, window_bounds = array<i64: 1, 80, 64>}]} {
    %c0 = arith.constant 0 : index
    %c0_0 = arith.constant 0 : index
    %c0_1 = arith.constant 0 : index
    %0 = vector.load %arg1[%c0, %c0_0, %c0_1] : memref<1x160x128xf32, #tpu.memory_space<vmem>>, vector<1x160x128xf32>
    %1 = vector.shape_cast %0 : vector<1x160x128xf32> to vector<160x128xf32>
    %c0_2 = arith.constant 0 : index
    %c0_3 = arith.constant 0 : index
    %2 = vector.load %arg2[%c0_2, %c0_3] : memref<1x128xf32, #tpu.memory_space<vmem>>, vector<1x128xf32>
    %3 = vector.broadcast %2 : vector<1x128xf32> to vector<160x128xf32>
    %4 = arith.mulf %1, %3 : vector<160x128xf32>
    %c0_4 = arith.constant 0 : index
    %c0_5 = arith.constant 0 : index
    %5 = vector.load %arg3[%c0_4, %c0_5] : memref<1x128xf32, #tpu.memory_space<vmem>>, vector<1x128xf32>
    %6 = vector.broadcast %5 : vector<1x128xf32> to vector<160x128xf32>
    %7 = arith.addf %4, %6 : vector<160x128xf32>
    %cst = arith.constant 0.000000e+00 : f32
    %8 = vector.broadcast %cst : f32 to vector<160x128xf32>
    %9 = arith.maximumf %7, %8 : vector<160x128xf32>
    %10 = vector.extract_strided_slice %9 {offsets = [0, 0], sizes = [159, 128], strides = [1, 1]} : vector<160x128xf32> to vector<159x128xf32>
    %11 = vector.extract_strided_slice %9 {offsets = [1, 0], sizes = [159, 128], strides = [1, 1]} : vector<160x128xf32> to vector<159x128xf32>
    %12 = arith.maximumf %10, %11 : vector<159x128xf32>
    %c0_6 = arith.constant 0 : index
    %c0_7 = arith.constant 0 : index
    %13 = vector.load %arg4[%c0_6, %c0_7] : memref<80x159xf32, #tpu.memory_space<vmem>>, vector<80x159xf32>
    %cst_8 = arith.constant dense<0.000000e+00> : vector<80x128xf32>
    %14 = tpu.matmul %13, %12, %cst_8 {dimension_numbers = #tpu.dot_dimension_numbers<[1], [0], [0], [1], [0, 0, 1, 1], [], []>} : vector<80x159xf32>, vector<159x128xf32>, vector<80x128xf32> -> vector<80x128xf32>
    %15 = vector.extract_strided_slice %14 {offsets = [0, 0], sizes = [80, 127], strides = [1, 1]} : vector<80x128xf32> to vector<80x127xf32>
    %16 = vector.extract_strided_slice %14 {offsets = [0, 1], sizes = [80, 127], strides = [1, 1]} : vector<80x128xf32> to vector<80x127xf32>
    %17 = arith.maximumf %15, %16 : vector<80x127xf32>
    %c0_9 = arith.constant 0 : index
    %c0_10 = arith.constant 0 : index
    %18 = vector.load %arg5[%c0_9, %c0_10] : memref<127x64xf32, #tpu.memory_space<vmem>>, vector<127x64xf32>
    %cst_11 = arith.constant dense<0.000000e+00> : vector<80x64xf32>
    %19 = tpu.matmul %17, %18, %cst_11 {dimension_numbers = #tpu.dot_dimension_numbers<[1], [0], [0], [1], [0, 0, 1, 1], [], []>} : vector<80x127xf32>, vector<127x64xf32>, vector<80x64xf32> -> vector<80x64xf32>
    %c0_12 = arith.constant 0 : index
    %c0_13 = arith.constant 0 : index
    %c0_14 = arith.constant 0 : index
    %20 = vector.load %arg6[%c0_12, %c0_13, %c0_14] : memref<1x80x64xf32, #tpu.memory_space<vmem>>, vector<1x80x64xf32>
    %21 = vector.shape_cast %20 : vector<1x80x64xf32> to vector<80x64xf32>
    %22 = vector.shape_cast %19 : vector<80x64xf32> to vector<1x80x64xf32>
    tpu.vector_store %arg6[%c0_12, %c0_13, %c0_14], %22 {strides = array<i32>} : memref<1x80x64xf32, #tpu.memory_space<vmem>>, vector<1x80x64xf32>,
    return
  }
  func.func @transform_0(%arg0: i32) -> (i32, i32, i32) {
    %c0_i32 = arith.constant 0 : i32
    %c0_i32_0 = arith.constant 0 : i32
    %c0_i32_1 = arith.constant 0 : i32
    return %arg0, %c0_i32, %c0_i32_0 : i32, i32, i32
  }
  func.func @transform_1(%arg0: i32) -> (i32, i32) {
    %c0_i32 = arith.constant 0 : i32
    %c0_i32_0 = arith.constant 0 : i32
    %c0_i32_1 = arith.constant 0 : i32
    return %c0_i32, %c0_i32_0 : i32, i32
  }
  func.func @transform_2(%arg0: i32) -> (i32, i32) {
    %c0_i32 = arith.constant 0 : i32
    %c0_i32_0 = arith.constant 0 : i32
    %c0_i32_1 = arith.constant 0 : i32
    return %c0_i32, %c0_i32_0 : i32, i32
  }
  func.func @transform_3(%arg0: i32) -> (i32, i32) {
    %c0_i32 = arith.constant 0 : i32
    %c0_i32_0 = arith.constant 0 : i32
    %c0_i32_1 = arith.constant 0 : i32
    return %c0_i32, %c0_i32_0 : i32, i32
  }
  func.func @transform_4(%arg0: i32) -> (i32, i32) {
    %c0_i32 = arith.constant 0 : i32
    %c0_i32_0 = arith.constant 0 : i32
    %c0_i32_1 = arith.constant 0 : i32
    return %c0_i32, %c0_i32_0 : i32, i32
  }
  func.func @transform_5(%arg0: i32) -> (i32, i32, i32) {
    %c0_i32 = arith.constant 0 : i32
    %c0_i32_0 = arith.constant 0 : i32
    %c0_i32_1 = arith.constant 0 : i32
    return %arg0, %c0_i32, %c0_i32_0 : i32, i32, i32
  }
}

module attributes {stable_mosaic.version = 11 : i64} {
  func.func @kernel(%arg0: i32, %arg1: memref<1x7x18x72xbf16, #tpu.memory_space<vmem>>, %arg2: memref<9x72x128xbf16, #tpu.memory_space<vmem>>, %arg3: memref<1x128xf32, #tpu.memory_space<vmem>>, %arg4: memref<1x80x128xf32, #tpu.memory_space<vmem>>, %arg5: memref<1x8x128xf32, #tpu.memory_space<vmem>>) attributes {dimension_semantics = [#tpu.dimension_semantics<parallel>], iteration_bounds = array<i64: 2>, scalar_prefetch = 0 : i64, scratch_operands = 0 : i64, tpu.core_type = #tpu.core_type<tc>, window_params = [{transform_indices = @transform_0, window_bounds = array<i64: 1, 7, 18, 72>}, {pipeline_mode = #tpu.pipeline_mode<synchronous>, transform_indices = @transform_1, window_bounds = array<i64: 9, 72, 128>}, {pipeline_mode = #tpu.pipeline_mode<synchronous>, transform_indices = @transform_2, window_bounds = array<i64: 1, 128>}, {transform_indices = @transform_3, window_bounds = array<i64: 1, 80, 128>}, {transform_indices = @transform_4, window_bounds = array<i64: 1, 8, 128>}]} {
    %c0 = arith.constant 0 : index
    %c0_0 = arith.constant 0 : index
    %0 = vector.load %arg3[%c0, %c0_0] : memref<1x128xf32, #tpu.memory_space<vmem>>, vector<1x128xf32>
    %cst = arith.constant 0.000000e+00 : f32
    %1 = vector.broadcast %cst : f32 to vector<1x128xf32>
    %cst_1 = arith.constant 0.000000e+00 : f32
    %2 = vector.broadcast %cst_1 : f32 to vector<1x128xf32>
    %cst_2 = arith.constant 0.000000e+00 : f32
    %3 = vector.broadcast %cst_2 : f32 to vector<16x128xf32>
    %c0_3 = arith.constant 0 : index
    %c0_4 = arith.constant 0 : index
    %c0_5 = arith.constant 0 : index
    %c0_6 = arith.constant 0 : index
    %4 = vector.load %arg1[%c0_3, %c0_4, %c0_5, %c0_6] : memref<1x7x18x72xbf16, #tpu.memory_space<vmem>>, vector<1x1x18x72xbf16>
    %5 = vector.shape_cast %4 : vector<1x1x18x72xbf16> to vector<18x72xbf16>
    %6 = vector.extract_strided_slice %5 {offsets = [0, 0], sizes = [16, 72], strides = [1, 1]} : vector<18x72xbf16> to vector<16x72xbf16>
    %c0_7 = arith.constant 0 : index
    %c0_8 = arith.constant 0 : index
    %c0_9 = arith.constant 0 : index
    %7 = vector.load %arg2[%c0_7, %c0_8, %c0_9] : memref<9x72x128xbf16, #tpu.memory_space<vmem>>, vector<1x72x128xbf16>
    %8 = vector.shape_cast %7 : vector<1x72x128xbf16> to vector<72x128xbf16>
    %cst_10 = arith.constant dense<0.000000e+00> : vector<16x128xf32>
    %9 = tpu.matmul %6, %8, %cst_10 {dimension_numbers = #tpu.dot_dimension_numbers<[1], [0], [0], [1], [0, 0, 1, 1], [], []>} : vector<16x72xbf16>, vector<72x128xbf16>, vector<16x128xf32> -> vector<16x128xf32>
    %10 = arith.addf %3, %9 : vector<16x128xf32>
    %11 = vector.extract_strided_slice %5 {offsets = [1, 0], sizes = [16, 72], strides = [1, 1]} : vector<18x72xbf16> to vector<16x72xbf16>
    %c1 = arith.constant 1 : index
    %c0_11 = arith.constant 0 : index
    %c0_12 = arith.constant 0 : index
    %12 = vector.load %arg2[%c1, %c0_11, %c0_12] : memref<9x72x128xbf16, #tpu.memory_space<vmem>>, vector<1x72x128xbf16>
    %13 = vector.shape_cast %12 : vector<1x72x128xbf16> to vector<72x128xbf16>
    %cst_13 = arith.constant dense<0.000000e+00> : vector<16x128xf32>
    %14 = tpu.matmul %11, %13, %cst_13 {dimension_numbers = #tpu.dot_dimension_numbers<[1], [0], [0], [1], [0, 0, 1, 1], [], []>} : vector<16x72xbf16>, vector<72x128xbf16>, vector<16x128xf32> -> vector<16x128xf32>
    %15 = arith.addf %10, %14 : vector<16x128xf32>
    %16 = vector.extract_strided_slice %5 {offsets = [2, 0], sizes = [16, 72], strides = [1, 1]} : vector<18x72xbf16> to vector<16x72xbf16>
    %c2 = arith.constant 2 : index
    %c0_14 = arith.constant 0 : index
    %c0_15 = arith.constant 0 : index
    %17 = vector.load %arg2[%c2, %c0_14, %c0_15] : memref<9x72x128xbf16, #tpu.memory_space<vmem>>, vector<1x72x128xbf16>
    %18 = vector.shape_cast %17 : vector<1x72x128xbf16> to vector<72x128xbf16>
    %cst_16 = arith.constant dense<0.000000e+00> : vector<16x128xf32>
    %19 = tpu.matmul %16, %18, %cst_16 {dimension_numbers = #tpu.dot_dimension_numbers<[1], [0], [0], [1], [0, 0, 1, 1], [], []>} : vector<16x72xbf16>, vector<72x128xbf16>, vector<16x128xf32> -> vector<16x128xf32>
    %20 = arith.addf %15, %19 : vector<16x128xf32>
    %c0_17 = arith.constant 0 : index
    %c1_18 = arith.constant 1 : index
    %c0_19 = arith.constant 0 : index
    %c0_20 = arith.constant 0 : index
    %21 = vector.load %arg1[%c0_17, %c1_18, %c0_19, %c0_20] : memref<1x7x18x72xbf16, #tpu.memory_space<vmem>>, vector<1x1x18x72xbf16>
    %22 = vector.shape_cast %21 : vector<1x1x18x72xbf16> to vector<18x72xbf16>
    %23 = vector.extract_strided_slice %22 {offsets = [0, 0], sizes = [16, 72], strides = [1, 1]} : vector<18x72xbf16> to vector<16x72xbf16>
    %c3 = arith.constant 3 : index
    %c0_21 = arith.constant 0 : index
    %c0_22 = arith.constant 0 : index
    %24 = vector.load %arg2[%c3, %c0_21, %c0_22] : memref<9x72x128xbf16, #tpu.memory_space<vmem>>, vector<1x72x128xbf16>
    %25 = vector.shape_cast %24 : vector<1x72x128xbf16> to vector<72x128xbf16>
    %cst_23 = arith.constant dense<0.000000e+00> : vector<16x128xf32>
    %26 = tpu.matmul %23, %25, %cst_23 {dimension_numbers = #tpu.dot_dimension_numbers<[1], [0], [0], [1], [0, 0, 1, 1], [], []>} : vector<16x72xbf16>, vector<72x128xbf16>, vector<16x128xf32> -> vector<16x128xf32>
    %27 = arith.addf %20, %26 : vector<16x128xf32>
    %28 = vector.extract_strided_slice %22 {offsets = [1, 0], sizes = [16, 72], strides = [1, 1]} : vector<18x72xbf16> to vector<16x72xbf16>
    %c4 = arith.constant 4 : index
    %c0_24 = arith.constant 0 : index
    %c0_25 = arith.constant 0 : index
    %29 = vector.load %arg2[%c4, %c0_24, %c0_25] : memref<9x72x128xbf16, #tpu.memory_space<vmem>>, vector<1x72x128xbf16>
    %30 = vector.shape_cast %29 : vector<1x72x128xbf16> to vector<72x128xbf16>
    %cst_26 = arith.constant dense<0.000000e+00> : vector<16x128xf32>
    %31 = tpu.matmul %28, %30, %cst_26 {dimension_numbers = #tpu.dot_dimension_numbers<[1], [0], [0], [1], [0, 0, 1, 1], [], []>} : vector<16x72xbf16>, vector<72x128xbf16>, vector<16x128xf32> -> vector<16x128xf32>
    %32 = arith.addf %27, %31 : vector<16x128xf32>
    %33 = vector.extract_strided_slice %22 {offsets = [2, 0], sizes = [16, 72], strides = [1, 1]} : vector<18x72xbf16> to vector<16x72xbf16>
    %c5 = arith.constant 5 : index
    %c0_27 = arith.constant 0 : index
    %c0_28 = arith.constant 0 : index
    %34 = vector.load %arg2[%c5, %c0_27, %c0_28] : memref<9x72x128xbf16, #tpu.memory_space<vmem>>, vector<1x72x128xbf16>
    %35 = vector.shape_cast %34 : vector<1x72x128xbf16> to vector<72x128xbf16>
    %cst_29 = arith.constant dense<0.000000e+00> : vector<16x128xf32>
    %36 = tpu.matmul %33, %35, %cst_29 {dimension_numbers = #tpu.dot_dimension_numbers<[1], [0], [0], [1], [0, 0, 1, 1], [], []>} : vector<16x72xbf16>, vector<72x128xbf16>, vector<16x128xf32> -> vector<16x128xf32>
    %37 = arith.addf %32, %36 : vector<16x128xf32>
    %c0_30 = arith.constant 0 : index
    %c2_31 = arith.constant 2 : index
    %c0_32 = arith.constant 0 : index
    %c0_33 = arith.constant 0 : index
    %38 = vector.load %arg1[%c0_30, %c2_31, %c0_32, %c0_33] : memref<1x7x18x72xbf16, #tpu.memory_space<vmem>>, vector<1x1x18x72xbf16>
    %39 = vector.shape_cast %38 : vector<1x1x18x72xbf16> to vector<18x72xbf16>
    %40 = vector.extract_strided_slice %39 {offsets = [0, 0], sizes = [16, 72], strides = [1, 1]} : vector<18x72xbf16> to vector<16x72xbf16>
    %c6 = arith.constant 6 : index
    %c0_34 = arith.constant 0 : index
    %c0_35 = arith.constant 0 : index
    %41 = vector.load %arg2[%c6, %c0_34, %c0_35] : memref<9x72x128xbf16, #tpu.memory_space<vmem>>, vector<1x72x128xbf16>
    %42 = vector.shape_cast %41 : vector<1x72x128xbf16> to vector<72x128xbf16>
    %cst_36 = arith.constant dense<0.000000e+00> : vector<16x128xf32>
    %43 = tpu.matmul %40, %42, %cst_36 {dimension_numbers = #tpu.dot_dimension_numbers<[1], [0], [0], [1], [0, 0, 1, 1], [], []>} : vector<16x72xbf16>, vector<72x128xbf16>, vector<16x128xf32> -> vector<16x128xf32>
    %44 = arith.addf %37, %43 : vector<16x128xf32>
    %45 = vector.extract_strided_slice %39 {offsets = [1, 0], sizes = [16, 72], strides = [1, 1]} : vector<18x72xbf16> to vector<16x72xbf16>
    %c7 = arith.constant 7 : index
    %c0_37 = arith.constant 0 : index
    %c0_38 = arith.constant 0 : index
    %46 = vector.load %arg2[%c7, %c0_37, %c0_38] : memref<9x72x128xbf16, #tpu.memory_space<vmem>>, vector<1x72x128xbf16>
    %47 = vector.shape_cast %46 : vector<1x72x128xbf16> to vector<72x128xbf16>
    %cst_39 = arith.constant dense<0.000000e+00> : vector<16x128xf32>
    %48 = tpu.matmul %45, %47, %cst_39 {dimension_numbers = #tpu.dot_dimension_numbers<[1], [0], [0], [1], [0, 0, 1, 1], [], []>} : vector<16x72xbf16>, vector<72x128xbf16>, vector<16x128xf32> -> vector<16x128xf32>
    %49 = arith.addf %44, %48 : vector<16x128xf32>
    %50 = vector.extract_strided_slice %39 {offsets = [2, 0], sizes = [16, 72], strides = [1, 1]} : vector<18x72xbf16> to vector<16x72xbf16>
    %c8 = arith.constant 8 : index
    %c0_40 = arith.constant 0 : index
    %c0_41 = arith.constant 0 : index
    %51 = vector.load %arg2[%c8, %c0_40, %c0_41] : memref<9x72x128xbf16, #tpu.memory_space<vmem>>, vector<1x72x128xbf16>
    %52 = vector.shape_cast %51 : vector<1x72x128xbf16> to vector<72x128xbf16>
    %cst_42 = arith.constant dense<0.000000e+00> : vector<16x128xf32>
    %53 = tpu.matmul %50, %52, %cst_42 {dimension_numbers = #tpu.dot_dimension_numbers<[1], [0], [0], [1], [0, 0, 1, 1], [], []>} : vector<16x72xbf16>, vector<72x128xbf16>, vector<16x128xf32> -> vector<16x128xf32>
    %54 = arith.addf %49, %53 : vector<16x128xf32>
    %55 = vector.broadcast %0 : vector<1x128xf32> to vector<16x128xf32>
    %56 = arith.addf %54, %55 : vector<16x128xf32>
    %c0_43 = arith.constant 0 : index
    %c0_44 = arith.constant 0 : index
    %c0_45 = arith.constant 0 : index
    %57 = vector.load %arg4[%c0_43, %c0_44, %c0_45] : memref<1x80x128xf32, #tpu.memory_space<vmem>>, vector<1x16x128xf32>
    %58 = vector.shape_cast %57 : vector<1x16x128xf32> to vector<16x128xf32>
    %59 = vector.shape_cast %56 : vector<16x128xf32> to vector<1x16x128xf32>
    tpu.vector_store %arg4[%c0_43, %c0_44, %c0_45], %59 {strides = array<i32>} : memref<1x80x128xf32, #tpu.memory_space<vmem>>, vector<1x16x128xf32>,
    %cst_46 = arith.constant dense<0.000000e+00> : vector<128xf32>
    %60 = vector.multi_reduction <add>, %56, %cst_46 [0] : vector<16x128xf32> to vector<128xf32>
    %61 = vector.shape_cast %60 : vector<128xf32> to vector<1x128xf32>
    %62 = arith.addf %1, %61 : vector<1x128xf32>
    %63 = arith.mulf %56, %56 : vector<16x128xf32>
    %cst_47 = arith.constant dense<0.000000e+00> : vector<128xf32>
    %64 = vector.multi_reduction <add>, %63, %cst_47 [0] : vector<16x128xf32> to vector<128xf32>
    %65 = vector.shape_cast %64 : vector<128xf32> to vector<1x128xf32>
    %66 = arith.addf %2, %65 : vector<1x128xf32>
    %cst_48 = arith.constant 0.000000e+00 : f32
    %67 = vector.broadcast %cst_48 : f32 to vector<16x128xf32>
    %c0_49 = arith.constant 0 : index
    %c1_50 = arith.constant 1 : index
    %c0_51 = arith.constant 0 : index
    %c0_52 = arith.constant 0 : index
    %68 = vector.load %arg1[%c0_49, %c1_50, %c0_51, %c0_52] : memref<1x7x18x72xbf16, #tpu.memory_space<vmem>>, vector<1x1x18x72xbf16>
    %69 = vector.shape_cast %68 : vector<1x1x18x72xbf16> to vector<18x72xbf16>
    %70 = vector.extract_strided_slice %69 {offsets = [0, 0], sizes = [16, 72], strides = [1, 1]} : vector<18x72xbf16> to vector<16x72xbf16>
    %c0_53 = arith.constant 0 : index
    %c0_54 = arith.constant 0 : index
    %c0_55 = arith.constant 0 : index
    %71 = vector.load %arg2[%c0_53, %c0_54, %c0_55] : memref<9x72x128xbf16, #tpu.memory_space<vmem>>, vector<1x72x128xbf16>
    %72 = vector.shape_cast %71 : vector<1x72x128xbf16> to vector<72x128xbf16>
    %cst_56 = arith.constant dense<0.000000e+00> : vector<16x128xf32>
    %73 = tpu.matmul %70, %72, %cst_56 {dimension_numbers = #tpu.dot_dimension_numbers<[1], [0], [0], [1], [0, 0, 1, 1], [], []>} : vector<16x72xbf16>, vector<72x128xbf16>, vector<16x128xf32> -> vector<16x128xf32>
    %74 = arith.addf %67, %73 : vector<16x128xf32>
    %75 = vector.extract_strided_slice %69 {offsets = [1, 0], sizes = [16, 72], strides = [1, 1]} : vector<18x72xbf16> to vector<16x72xbf16>
    %c1_57 = arith.constant 1 : index
    %c0_58 = arith.constant 0 : index
    %c0_59 = arith.constant 0 : index
    %76 = vector.load %arg2[%c1_57, %c0_58, %c0_59] : memref<9x72x128xbf16, #tpu.memory_space<vmem>>, vector<1x72x128xbf16>
    %77 = vector.shape_cast %76 : vector<1x72x128xbf16> to vector<72x128xbf16>
    %cst_60 = arith.constant dense<0.000000e+00> : vector<16x128xf32>
    %78 = tpu.matmul %75, %77, %cst_60 {dimension_numbers = #tpu.dot_dimension_numbers<[1], [0], [0], [1], [0, 0, 1, 1], [], []>} : vector<16x72xbf16>, vector<72x128xbf16>, vector<16x128xf32> -> vector<16x128xf32>
    %79 = arith.addf %74, %78 : vector<16x128xf32>
    %80 = vector.extract_strided_slice %69 {offsets = [2, 0], sizes = [16, 72], strides = [1, 1]} : vector<18x72xbf16> to vector<16x72xbf16>
    %c2_61 = arith.constant 2 : index
    %c0_62 = arith.constant 0 : index
    %c0_63 = arith.constant 0 : index
    %81 = vector.load %arg2[%c2_61, %c0_62, %c0_63] : memref<9x72x128xbf16, #tpu.memory_space<vmem>>, vector<1x72x128xbf16>
    %82 = vector.shape_cast %81 : vector<1x72x128xbf16> to vector<72x128xbf16>
    %cst_64 = arith.constant dense<0.000000e+00> : vector<16x128xf32>
    %83 = tpu.matmul %80, %82, %cst_64 {dimension_numbers = #tpu.dot_dimension_numbers<[1], [0], [0], [1], [0, 0, 1, 1], [], []>} : vector<16x72xbf16>, vector<72x128xbf16>, vector<16x128xf32> -> vector<16x128xf32>
    %84 = arith.addf %79, %83 : vector<16x128xf32>
    %c0_65 = arith.constant 0 : index
    %c2_66 = arith.constant 2 : index
    %c0_67 = arith.constant 0 : index
    %c0_68 = arith.constant 0 : index
    %85 = vector.load %arg1[%c0_65, %c2_66, %c0_67, %c0_68] : memref<1x7x18x72xbf16, #tpu.memory_space<vmem>>, vector<1x1x18x72xbf16>
    %86 = vector.shape_cast %85 : vector<1x1x18x72xbf16> to vector<18x72xbf16>
    %87 = vector.extract_strided_slice %86 {offsets = [0, 0], sizes = [16, 72], strides = [1, 1]} : vector<18x72xbf16> to vector<16x72xbf16>
    %c3_69 = arith.constant 3 : index
    %c0_70 = arith.constant 0 : index
    %c0_71 = arith.constant 0 : index
    %88 = vector.load %arg2[%c3_69, %c0_70, %c0_71] : memref<9x72x128xbf16, #tpu.memory_space<vmem>>, vector<1x72x128xbf16>
    %89 = vector.shape_cast %88 : vector<1x72x128xbf16> to vector<72x128xbf16>
    %cst_72 = arith.constant dense<0.000000e+00> : vector<16x128xf32>
    %90 = tpu.matmul %87, %89, %cst_72 {dimension_numbers = #tpu.dot_dimension_numbers<[1], [0], [0], [1], [0, 0, 1, 1], [], []>} : vector<16x72xbf16>, vector<72x128xbf16>, vector<16x128xf32> -> vector<16x128xf32>
    %91 = arith.addf %84, %90 : vector<16x128xf32>
    %92 = vector.extract_strided_slice %86 {offsets = [1, 0], sizes = [16, 72], strides = [1, 1]} : vector<18x72xbf16> to vector<16x72xbf16>
    %c4_73 = arith.constant 4 : index
    %c0_74 = arith.constant 0 : index
    %c0_75 = arith.constant 0 : index
    %93 = vector.load %arg2[%c4_73, %c0_74, %c0_75] : memref<9x72x128xbf16, #tpu.memory_space<vmem>>, vector<1x72x128xbf16>
    %94 = vector.shape_cast %93 : vector<1x72x128xbf16> to vector<72x128xbf16>
    %cst_76 = arith.constant dense<0.000000e+00> : vector<16x128xf32>
    %95 = tpu.matmul %92, %94, %cst_76 {dimension_numbers = #tpu.dot_dimension_numbers<[1], [0], [0], [1], [0, 0, 1, 1], [], []>} : vector<16x72xbf16>, vector<72x128xbf16>, vector<16x128xf32> -> vector<16x128xf32>
    %96 = arith.addf %91, %95 : vector<16x128xf32>
    %97 = vector.extract_strided_slice %86 {offsets = [2, 0], sizes = [16, 72], strides = [1, 1]} : vector<18x72xbf16> to vector<16x72xbf16>
    %c5_77 = arith.constant 5 : index
    %c0_78 = arith.constant 0 : index
    %c0_79 = arith.constant 0 : index
    %98 = vector.load %arg2[%c5_77, %c0_78, %c0_79] : memref<9x72x128xbf16, #tpu.memory_space<vmem>>, vector<1x72x128xbf16>
    %99 = vector.shape_cast %98 : vector<1x72x128xbf16> to vector<72x128xbf16>
    %cst_80 = arith.constant dense<0.000000e+00> : vector<16x128xf32>
    %100 = tpu.matmul %97, %99, %cst_80 {dimension_numbers = #tpu.dot_dimension_numbers<[1], [0], [0], [1], [0, 0, 1, 1], [], []>} : vector<16x72xbf16>, vector<72x128xbf16>, vector<16x128xf32> -> vector<16x128xf32>
    %101 = arith.addf %96, %100 : vector<16x128xf32>
    %c0_81 = arith.constant 0 : index
    %c3_82 = arith.constant 3 : index
    %c0_83 = arith.constant 0 : index
    %c0_84 = arith.constant 0 : index
    %102 = vector.load %arg1[%c0_81, %c3_82, %c0_83, %c0_84] : memref<1x7x18x72xbf16, #tpu.memory_space<vmem>>, vector<1x1x18x72xbf16>
    %103 = vector.shape_cast %102 : vector<1x1x18x72xbf16> to vector<18x72xbf16>
    %104 = vector.extract_strided_slice %103 {offsets = [0, 0], sizes = [16, 72], strides = [1, 1]} : vector<18x72xbf16> to vector<16x72xbf16>
    %c6_85 = arith.constant 6 : index
    %c0_86 = arith.constant 0 : index
    %c0_87 = arith.constant 0 : index
    %105 = vector.load %arg2[%c6_85, %c0_86, %c0_87] : memref<9x72x128xbf16, #tpu.memory_space<vmem>>, vector<1x72x128xbf16>
    %106 = vector.shape_cast %105 : vector<1x72x128xbf16> to vector<72x128xbf16>
    %cst_88 = arith.constant dense<0.000000e+00> : vector<16x128xf32>
    %107 = tpu.matmul %104, %106, %cst_88 {dimension_numbers = #tpu.dot_dimension_numbers<[1], [0], [0], [1], [0, 0, 1, 1], [], []>} : vector<16x72xbf16>, vector<72x128xbf16>, vector<16x128xf32> -> vector<16x128xf32>
    %108 = arith.addf %101, %107 : vector<16x128xf32>
    %109 = vector.extract_strided_slice %103 {offsets = [1, 0], sizes = [16, 72], strides = [1, 1]} : vector<18x72xbf16> to vector<16x72xbf16>
    %c7_89 = arith.constant 7 : index
    %c0_90 = arith.constant 0 : index
    %c0_91 = arith.constant 0 : index
    %110 = vector.load %arg2[%c7_89, %c0_90, %c0_91] : memref<9x72x128xbf16, #tpu.memory_space<vmem>>, vector<1x72x128xbf16>
    %111 = vector.shape_cast %110 : vector<1x72x128xbf16> to vector<72x128xbf16>
    %cst_92 = arith.constant dense<0.000000e+00> : vector<16x128xf32>
    %112 = tpu.matmul %109, %111, %cst_92 {dimension_numbers = #tpu.dot_dimension_numbers<[1], [0], [0], [1], [0, 0, 1, 1], [], []>} : vector<16x72xbf16>, vector<72x128xbf16>, vector<16x128xf32> -> vector<16x128xf32>
    %113 = arith.addf %108, %112 : vector<16x128xf32>
    %114 = vector.extract_strided_slice %103 {offsets = [2, 0], sizes = [16, 72], strides = [1, 1]} : vector<18x72xbf16> to vector<16x72xbf16>
    %c8_93 = arith.constant 8 : index
    %c0_94 = arith.constant 0 : index
    %c0_95 = arith.constant 0 : index
    %115 = vector.load %arg2[%c8_93, %c0_94, %c0_95] : memref<9x72x128xbf16, #tpu.memory_space<vmem>>, vector<1x72x128xbf16>
    %116 = vector.shape_cast %115 : vector<1x72x128xbf16> to vector<72x128xbf16>
    %cst_96 = arith.constant dense<0.000000e+00> : vector<16x128xf32>
    %117 = tpu.matmul %114, %116, %cst_96 {dimension_numbers = #tpu.dot_dimension_numbers<[1], [0], [0], [1], [0, 0, 1, 1], [], []>} : vector<16x72xbf16>, vector<72x128xbf16>, vector<16x128xf32> -> vector<16x128xf32>
    %118 = arith.addf %113, %117 : vector<16x128xf32>
    %119 = vector.broadcast %0 : vector<1x128xf32> to vector<16x128xf32>
    %120 = arith.addf %118, %119 : vector<16x128xf32>
    %c0_97 = arith.constant 0 : index
    %c16 = arith.constant 16 : index
    %c0_98 = arith.constant 0 : index
    %121 = vector.load %arg4[%c0_97, %c16, %c0_98] : memref<1x80x128xf32, #tpu.memory_space<vmem>>, vector<1x16x128xf32>
    %122 = vector.shape_cast %121 : vector<1x16x128xf32> to vector<16x128xf32>
    %123 = vector.shape_cast %120 : vector<16x128xf32> to vector<1x16x128xf32>
    tpu.vector_store %arg4[%c0_97, %c16, %c0_98], %123 {strides = array<i32>} : memref<1x80x128xf32, #tpu.memory_space<vmem>>, vector<1x16x128xf32>,
    %cst_99 = arith.constant dense<0.000000e+00> : vector<128xf32>
    %124 = vector.multi_reduction <add>, %120, %cst_99 [0] : vector<16x128xf32> to vector<128xf32>
    %125 = vector.shape_cast %124 : vector<128xf32> to vector<1x128xf32>
    %126 = arith.addf %62, %125 : vector<1x128xf32>
    %127 = arith.mulf %120, %120 : vector<16x128xf32>
    %cst_100 = arith.constant dense<0.000000e+00> : vector<128xf32>
    %128 = vector.multi_reduction <add>, %127, %cst_100 [0] : vector<16x128xf32> to vector<128xf32>
    %129 = vector.shape_cast %128 : vector<128xf32> to vector<1x128xf32>
    %130 = arith.addf %66, %129 : vector<1x128xf32>
    %cst_101 = arith.constant 0.000000e+00 : f32
    %131 = vector.broadcast %cst_101 : f32 to vector<16x128xf32>
    %c0_102 = arith.constant 0 : index
    %c2_103 = arith.constant 2 : index
    %c0_104 = arith.constant 0 : index
    %c0_105 = arith.constant 0 : index
    %132 = vector.load %arg1[%c0_102, %c2_103, %c0_104, %c0_105] : memref<1x7x18x72xbf16, #tpu.memory_space<vmem>>, vector<1x1x18x72xbf16>
    %133 = vector.shape_cast %132 : vector<1x1x18x72xbf16> to vector<18x72xbf16>
    %134 = vector.extract_strided_slice %133 {offsets = [0, 0], sizes = [16, 72], strides = [1, 1]} : vector<18x72xbf16> to vector<16x72xbf16>
    %c0_106 = arith.constant 0 : index
    %c0_107 = arith.constant 0 : index
    %c0_108 = arith.constant 0 : index
    %135 = vector.load %arg2[%c0_106, %c0_107, %c0_108] : memref<9x72x128xbf16, #tpu.memory_space<vmem>>, vector<1x72x128xbf16>
    %136 = vector.shape_cast %135 : vector<1x72x128xbf16> to vector<72x128xbf16>
    %cst_109 = arith.constant dense<0.000000e+00> : vector<16x128xf32>
    %137 = tpu.matmul %134, %136, %cst_109 {dimension_numbers = #tpu.dot_dimension_numbers<[1], [0], [0], [1], [0, 0, 1, 1], [], []>} : vector<16x72xbf16>, vector<72x128xbf16>, vector<16x128xf32> -> vector<16x128xf32>
    %138 = arith.addf %131, %137 : vector<16x128xf32>
    %139 = vector.extract_strided_slice %133 {offsets = [1, 0], sizes = [16, 72], strides = [1, 1]} : vector<18x72xbf16> to vector<16x72xbf16>
    %c1_110 = arith.constant 1 : index
    %c0_111 = arith.constant 0 : index
    %c0_112 = arith.constant 0 : index
    %140 = vector.load %arg2[%c1_110, %c0_111, %c0_112] : memref<9x72x128xbf16, #tpu.memory_space<vmem>>, vector<1x72x128xbf16>
    %141 = vector.shape_cast %140 : vector<1x72x128xbf16> to vector<72x128xbf16>
    %cst_113 = arith.constant dense<0.000000e+00> : vector<16x128xf32>
    %142 = tpu.matmul %139, %141, %cst_113 {dimension_numbers = #tpu.dot_dimension_numbers<[1], [0], [0], [1], [0, 0, 1, 1], [], []>} : vector<16x72xbf16>, vector<72x128xbf16>, vector<16x128xf32> -> vector<16x128xf32>
    %143 = arith.addf %138, %142 : vector<16x128xf32>
    %144 = vector.extract_strided_slice %133 {offsets = [2, 0], sizes = [16, 72], strides = [1, 1]} : vector<18x72xbf16> to vector<16x72xbf16>
    %c2_114 = arith.constant 2 : index
    %c0_115 = arith.constant 0 : index
    %c0_116 = arith.constant 0 : index
    %145 = vector.load %arg2[%c2_114, %c0_115, %c0_116] : memref<9x72x128xbf16, #tpu.memory_space<vmem>>, vector<1x72x128xbf16>
    %146 = vector.shape_cast %145 : vector<1x72x128xbf16> to vector<72x128xbf16>
    %cst_117 = arith.constant dense<0.000000e+00> : vector<16x128xf32>
    %147 = tpu.matmul %144, %146, %cst_117 {dimension_numbers = #tpu.dot_dimension_numbers<[1], [0], [0], [1], [0, 0, 1, 1], [], []>} : vector<16x72xbf16>, vector<72x128xbf16>, vector<16x128xf32> -> vector<16x128xf32>
    %148 = arith.addf %143, %147 : vector<16x128xf32>
    %c0_118 = arith.constant 0 : index
    %c3_119 = arith.constant 3 : index
    %c0_120 = arith.constant 0 : index
    %c0_121 = arith.constant 0 : index
    %149 = vector.load %arg1[%c0_118, %c3_119, %c0_120, %c0_121] : memref<1x7x18x72xbf16, #tpu.memory_space<vmem>>, vector<1x1x18x72xbf16>
    %150 = vector.shape_cast %149 : vector<1x1x18x72xbf16> to vector<18x72xbf16>
    %151 = vector.extract_strided_slice %150 {offsets = [0, 0], sizes = [16, 72], strides = [1, 1]} : vector<18x72xbf16> to vector<16x72xbf16>
    %c3_122 = arith.constant 3 : index
    %c0_123 = arith.constant 0 : index
    %c0_124 = arith.constant 0 : index
    %152 = vector.load %arg2[%c3_122, %c0_123, %c0_124] : memref<9x72x128xbf16, #tpu.memory_space<vmem>>, vector<1x72x128xbf16>
    %153 = vector.shape_cast %152 : vector<1x72x128xbf16> to vector<72x128xbf16>
    %cst_125 = arith.constant dense<0.000000e+00> : vector<16x128xf32>
    %154 = tpu.matmul %151, %153, %cst_125 {dimension_numbers = #tpu.dot_dimension_numbers<[1], [0], [0], [1], [0, 0, 1, 1], [], []>} : vector<16x72xbf16>, vector<72x128xbf16>, vector<16x128xf32> -> vector<16x128xf32>
    %155 = arith.addf %148, %154 : vector<16x128xf32>
    %156 = vector.extract_strided_slice %150 {offsets = [1, 0], sizes = [16, 72], strides = [1, 1]} : vector<18x72xbf16> to vector<16x72xbf16>
    %c4_126 = arith.constant 4 : index
    %c0_127 = arith.constant 0 : index
    %c0_128 = arith.constant 0 : index
    %157 = vector.load %arg2[%c4_126, %c0_127, %c0_128] : memref<9x72x128xbf16, #tpu.memory_space<vmem>>, vector<1x72x128xbf16>
    %158 = vector.shape_cast %157 : vector<1x72x128xbf16> to vector<72x128xbf16>
    %cst_129 = arith.constant dense<0.000000e+00> : vector<16x128xf32>
    %159 = tpu.matmul %156, %158, %cst_129 {dimension_numbers = #tpu.dot_dimension_numbers<[1], [0], [0], [1], [0, 0, 1, 1], [], []>} : vector<16x72xbf16>, vector<72x128xbf16>, vector<16x128xf32> -> vector<16x128xf32>
    %160 = arith.addf %155, %159 : vector<16x128xf32>
    %161 = vector.extract_strided_slice %150 {offsets = [2, 0], sizes = [16, 72], strides = [1, 1]} : vector<18x72xbf16> to vector<16x72xbf16>
    %c5_130 = arith.constant 5 : index
    %c0_131 = arith.constant 0 : index
    %c0_132 = arith.constant 0 : index
    %162 = vector.load %arg2[%c5_130, %c0_131, %c0_132] : memref<9x72x128xbf16, #tpu.memory_space<vmem>>, vector<1x72x128xbf16>
    %163 = vector.shape_cast %162 : vector<1x72x128xbf16> to vector<72x128xbf16>
    %cst_133 = arith.constant dense<0.000000e+00> : vector<16x128xf32>
    %164 = tpu.matmul %161, %163, %cst_133 {dimension_numbers = #tpu.dot_dimension_numbers<[1], [0], [0], [1], [0, 0, 1, 1], [], []>} : vector<16x72xbf16>, vector<72x128xbf16>, vector<16x128xf32> -> vector<16x128xf32>
    %165 = arith.addf %160, %164 : vector<16x128xf32>
    %c0_134 = arith.constant 0 : index
    %c4_135 = arith.constant 4 : index
    %c0_136 = arith.constant 0 : index
    %c0_137 = arith.constant 0 : index
    %166 = vector.load %arg1[%c0_134, %c4_135, %c0_136, %c0_137] : memref<1x7x18x72xbf16, #tpu.memory_space<vmem>>, vector<1x1x18x72xbf16>
    %167 = vector.shape_cast %166 : vector<1x1x18x72xbf16> to vector<18x72xbf16>
    %168 = vector.extract_strided_slice %167 {offsets = [0, 0], sizes = [16, 72], strides = [1, 1]} : vector<18x72xbf16> to vector<16x72xbf16>
    %c6_138 = arith.constant 6 : index
    %c0_139 = arith.constant 0 : index
    %c0_140 = arith.constant 0 : index
    %169 = vector.load %arg2[%c6_138, %c0_139, %c0_140] : memref<9x72x128xbf16, #tpu.memory_space<vmem>>, vector<1x72x128xbf16>
    %170 = vector.shape_cast %169 : vector<1x72x128xbf16> to vector<72x128xbf16>
    %cst_141 = arith.constant dense<0.000000e+00> : vector<16x128xf32>
    %171 = tpu.matmul %168, %170, %cst_141 {dimension_numbers = #tpu.dot_dimension_numbers<[1], [0], [0], [1], [0, 0, 1, 1], [], []>} : vector<16x72xbf16>, vector<72x128xbf16>, vector<16x128xf32> -> vector<16x128xf32>
    %172 = arith.addf %165, %171 : vector<16x128xf32>
    %173 = vector.extract_strided_slice %167 {offsets = [1, 0], sizes = [16, 72], strides = [1, 1]} : vector<18x72xbf16> to vector<16x72xbf16>
    %c7_142 = arith.constant 7 : index
    %c0_143 = arith.constant 0 : index
    %c0_144 = arith.constant 0 : index
    %174 = vector.load %arg2[%c7_142, %c0_143, %c0_144] : memref<9x72x128xbf16, #tpu.memory_space<vmem>>, vector<1x72x128xbf16>
    %175 = vector.shape_cast %174 : vector<1x72x128xbf16> to vector<72x128xbf16>
    %cst_145 = arith.constant dense<0.000000e+00> : vector<16x128xf32>
    %176 = tpu.matmul %173, %175, %cst_145 {dimension_numbers = #tpu.dot_dimension_numbers<[1], [0], [0], [1], [0, 0, 1, 1], [], []>} : vector<16x72xbf16>, vector<72x128xbf16>, vector<16x128xf32> -> vector<16x128xf32>
    %177 = arith.addf %172, %176 : vector<16x128xf32>
    %178 = vector.extract_strided_slice %167 {offsets = [2, 0], sizes = [16, 72], strides = [1, 1]} : vector<18x72xbf16> to vector<16x72xbf16>
    %c8_146 = arith.constant 8 : index
    %c0_147 = arith.constant 0 : index
    %c0_148 = arith.constant 0 : index
    %179 = vector.load %arg2[%c8_146, %c0_147, %c0_148] : memref<9x72x128xbf16, #tpu.memory_space<vmem>>, vector<1x72x128xbf16>
    %180 = vector.shape_cast %179 : vector<1x72x128xbf16> to vector<72x128xbf16>
    %cst_149 = arith.constant dense<0.000000e+00> : vector<16x128xf32>
    %181 = tpu.matmul %178, %180, %cst_149 {dimension_numbers = #tpu.dot_dimension_numbers<[1], [0], [0], [1], [0, 0, 1, 1], [], []>} : vector<16x72xbf16>, vector<72x128xbf16>, vector<16x128xf32> -> vector<16x128xf32>
    %182 = arith.addf %177, %181 : vector<16x128xf32>
    %183 = vector.broadcast %0 : vector<1x128xf32> to vector<16x128xf32>
    %184 = arith.addf %182, %183 : vector<16x128xf32>
    %c0_150 = arith.constant 0 : index
    %c32 = arith.constant 32 : index
    %c0_151 = arith.constant 0 : index
    %185 = vector.load %arg4[%c0_150, %c32, %c0_151] : memref<1x80x128xf32, #tpu.memory_space<vmem>>, vector<1x16x128xf32>
    %186 = vector.shape_cast %185 : vector<1x16x128xf32> to vector<16x128xf32>
    %187 = vector.shape_cast %184 : vector<16x128xf32> to vector<1x16x128xf32>
    tpu.vector_store %arg4[%c0_150, %c32, %c0_151], %187 {strides = array<i32>} : memref<1x80x128xf32, #tpu.memory_space<vmem>>, vector<1x16x128xf32>,
    %cst_152 = arith.constant dense<0.000000e+00> : vector<128xf32>
    %188 = vector.multi_reduction <add>, %184, %cst_152 [0] : vector<16x128xf32> to vector<128xf32>
    %189 = vector.shape_cast %188 : vector<128xf32> to vector<1x128xf32>
    %190 = arith.addf %126, %189 : vector<1x128xf32>
    %191 = arith.mulf %184, %184 : vector<16x128xf32>
    %cst_153 = arith.constant dense<0.000000e+00> : vector<128xf32>
    %192 = vector.multi_reduction <add>, %191, %cst_153 [0] : vector<16x128xf32> to vector<128xf32>
    %193 = vector.shape_cast %192 : vector<128xf32> to vector<1x128xf32>
    %194 = arith.addf %130, %193 : vector<1x128xf32>
    %cst_154 = arith.constant 0.000000e+00 : f32
    %195 = vector.broadcast %cst_154 : f32 to vector<16x128xf32>
    %c0_155 = arith.constant 0 : index
    %c3_156 = arith.constant 3 : index
    %c0_157 = arith.constant 0 : index
    %c0_158 = arith.constant 0 : index
    %196 = vector.load %arg1[%c0_155, %c3_156, %c0_157, %c0_158] : memref<1x7x18x72xbf16, #tpu.memory_space<vmem>>, vector<1x1x18x72xbf16>
    %197 = vector.shape_cast %196 : vector<1x1x18x72xbf16> to vector<18x72xbf16>
    %198 = vector.extract_strided_slice %197 {offsets = [0, 0], sizes = [16, 72], strides = [1, 1]} : vector<18x72xbf16> to vector<16x72xbf16>
    %c0_159 = arith.constant 0 : index
    %c0_160 = arith.constant 0 : index
    %c0_161 = arith.constant 0 : index
    %199 = vector.load %arg2[%c0_159, %c0_160, %c0_161] : memref<9x72x128xbf16, #tpu.memory_space<vmem>>, vector<1x72x128xbf16>
    %200 = vector.shape_cast %199 : vector<1x72x128xbf16> to vector<72x128xbf16>
    %cst_162 = arith.constant dense<0.000000e+00> : vector<16x128xf32>
    %201 = tpu.matmul %198, %200, %cst_162 {dimension_numbers = #tpu.dot_dimension_numbers<[1], [0], [0], [1], [0, 0, 1, 1], [], []>} : vector<16x72xbf16>, vector<72x128xbf16>, vector<16x128xf32> -> vector<16x128xf32>
    %202 = arith.addf %195, %201 : vector<16x128xf32>
    %203 = vector.extract_strided_slice %197 {offsets = [1, 0], sizes = [16, 72], strides = [1, 1]} : vector<18x72xbf16> to vector<16x72xbf16>
    %c1_163 = arith.constant 1 : index
    %c0_164 = arith.constant 0 : index
    %c0_165 = arith.constant 0 : index
    %204 = vector.load %arg2[%c1_163, %c0_164, %c0_165] : memref<9x72x128xbf16, #tpu.memory_space<vmem>>, vector<1x72x128xbf16>
    %205 = vector.shape_cast %204 : vector<1x72x128xbf16> to vector<72x128xbf16>
    %cst_166 = arith.constant dense<0.000000e+00> : vector<16x128xf32>
    %206 = tpu.matmul %203, %205, %cst_166 {dimension_numbers = #tpu.dot_dimension_numbers<[1], [0], [0], [1], [0, 0, 1, 1], [], []>} : vector<16x72xbf16>, vector<72x128xbf16>, vector<16x128xf32> -> vector<16x128xf32>
    %207 = arith.addf %202, %206 : vector<16x128xf32>
    %208 = vector.extract_strided_slice %197 {offsets = [2, 0], sizes = [16, 72], strides = [1, 1]} : vector<18x72xbf16> to vector<16x72xbf16>
    %c2_167 = arith.constant 2 : index
    %c0_168 = arith.constant 0 : index
    %c0_169 = arith.constant 0 : index
    %209 = vector.load %arg2[%c2_167, %c0_168, %c0_169] : memref<9x72x128xbf16, #tpu.memory_space<vmem>>, vector<1x72x128xbf16>
    %210 = vector.shape_cast %209 : vector<1x72x128xbf16> to vector<72x128xbf16>
    %cst_170 = arith.constant dense<0.000000e+00> : vector<16x128xf32>
    %211 = tpu.matmul %208, %210, %cst_170 {dimension_numbers = #tpu.dot_dimension_numbers<[1], [0], [0], [1], [0, 0, 1, 1], [], []>} : vector<16x72xbf16>, vector<72x128xbf16>, vector<16x128xf32> -> vector<16x128xf32>
    %212 = arith.addf %207, %211 : vector<16x128xf32>
    %c0_171 = arith.constant 0 : index
    %c4_172 = arith.constant 4 : index
    %c0_173 = arith.constant 0 : index
    %c0_174 = arith.constant 0 : index
    %213 = vector.load %arg1[%c0_171, %c4_172, %c0_173, %c0_174] : memref<1x7x18x72xbf16, #tpu.memory_space<vmem>>, vector<1x1x18x72xbf16>
    %214 = vector.shape_cast %213 : vector<1x1x18x72xbf16> to vector<18x72xbf16>
    %215 = vector.extract_strided_slice %214 {offsets = [0, 0], sizes = [16, 72], strides = [1, 1]} : vector<18x72xbf16> to vector<16x72xbf16>
    %c3_175 = arith.constant 3 : index
    %c0_176 = arith.constant 0 : index
    %c0_177 = arith.constant 0 : index
    %216 = vector.load %arg2[%c3_175, %c0_176, %c0_177] : memref<9x72x128xbf16, #tpu.memory_space<vmem>>, vector<1x72x128xbf16>
    %217 = vector.shape_cast %216 : vector<1x72x128xbf16> to vector<72x128xbf16>
    %cst_178 = arith.constant dense<0.000000e+00> : vector<16x128xf32>
    %218 = tpu.matmul %215, %217, %cst_178 {dimension_numbers = #tpu.dot_dimension_numbers<[1], [0], [0], [1], [0, 0, 1, 1], [], []>} : vector<16x72xbf16>, vector<72x128xbf16>, vector<16x128xf32> -> vector<16x128xf32>
    %219 = arith.addf %212, %218 : vector<16x128xf32>
    %220 = vector.extract_strided_slice %214 {offsets = [1, 0], sizes = [16, 72], strides = [1, 1]} : vector<18x72xbf16> to vector<16x72xbf16>
    %c4_179 = arith.constant 4 : index
    %c0_180 = arith.constant 0 : index
    %c0_181 = arith.constant 0 : index
    %221 = vector.load %arg2[%c4_179, %c0_180, %c0_181] : memref<9x72x128xbf16, #tpu.memory_space<vmem>>, vector<1x72x128xbf16>
    %222 = vector.shape_cast %221 : vector<1x72x128xbf16> to vector<72x128xbf16>
    %cst_182 = arith.constant dense<0.000000e+00> : vector<16x128xf32>
    %223 = tpu.matmul %220, %222, %cst_182 {dimension_numbers = #tpu.dot_dimension_numbers<[1], [0], [0], [1], [0, 0, 1, 1], [], []>} : vector<16x72xbf16>, vector<72x128xbf16>, vector<16x128xf32> -> vector<16x128xf32>
    %224 = arith.addf %219, %223 : vector<16x128xf32>
    %225 = vector.extract_strided_slice %214 {offsets = [2, 0], sizes = [16, 72], strides = [1, 1]} : vector<18x72xbf16> to vector<16x72xbf16>
    %c5_183 = arith.constant 5 : index
    %c0_184 = arith.constant 0 : index
    %c0_185 = arith.constant 0 : index
    %226 = vector.load %arg2[%c5_183, %c0_184, %c0_185] : memref<9x72x128xbf16, #tpu.memory_space<vmem>>, vector<1x72x128xbf16>
    %227 = vector.shape_cast %226 : vector<1x72x128xbf16> to vector<72x128xbf16>
    %cst_186 = arith.constant dense<0.000000e+00> : vector<16x128xf32>
    %228 = tpu.matmul %225, %227, %cst_186 {dimension_numbers = #tpu.dot_dimension_numbers<[1], [0], [0], [1], [0, 0, 1, 1], [], []>} : vector<16x72xbf16>, vector<72x128xbf16>, vector<16x128xf32> -> vector<16x128xf32>
    %229 = arith.addf %224, %228 : vector<16x128xf32>
    %c0_187 = arith.constant 0 : index
    %c5_188 = arith.constant 5 : index
    %c0_189 = arith.constant 0 : index
    %c0_190 = arith.constant 0 : index
    %230 = vector.load %arg1[%c0_187, %c5_188, %c0_189, %c0_190] : memref<1x7x18x72xbf16, #tpu.memory_space<vmem>>, vector<1x1x18x72xbf16>
    %231 = vector.shape_cast %230 : vector<1x1x18x72xbf16> to vector<18x72xbf16>
    %232 = vector.extract_strided_slice %231 {offsets = [0, 0], sizes = [16, 72], strides = [1, 1]} : vector<18x72xbf16> to vector<16x72xbf16>
    %c6_191 = arith.constant 6 : index
    %c0_192 = arith.constant 0 : index
    %c0_193 = arith.constant 0 : index
    %233 = vector.load %arg2[%c6_191, %c0_192, %c0_193] : memref<9x72x128xbf16, #tpu.memory_space<vmem>>, vector<1x72x128xbf16>
    %234 = vector.shape_cast %233 : vector<1x72x128xbf16> to vector<72x128xbf16>
    %cst_194 = arith.constant dense<0.000000e+00> : vector<16x128xf32>
    %235 = tpu.matmul %232, %234, %cst_194 {dimension_numbers = #tpu.dot_dimension_numbers<[1], [0], [0], [1], [0, 0, 1, 1], [], []>} : vector<16x72xbf16>, vector<72x128xbf16>, vector<16x128xf32> -> vector<16x128xf32>
    %236 = arith.addf %229, %235 : vector<16x128xf32>
    %237 = vector.extract_strided_slice %231 {offsets = [1, 0], sizes = [16, 72], strides = [1, 1]} : vector<18x72xbf16> to vector<16x72xbf16>
    %c7_195 = arith.constant 7 : index
    %c0_196 = arith.constant 0 : index
    %c0_197 = arith.constant 0 : index
    %238 = vector.load %arg2[%c7_195, %c0_196, %c0_197] : memref<9x72x128xbf16, #tpu.memory_space<vmem>>, vector<1x72x128xbf16>
    %239 = vector.shape_cast %238 : vector<1x72x128xbf16> to vector<72x128xbf16>
    %cst_198 = arith.constant dense<0.000000e+00> : vector<16x128xf32>
    %240 = tpu.matmul %237, %239, %cst_198 {dimension_numbers = #tpu.dot_dimension_numbers<[1], [0], [0], [1], [0, 0, 1, 1], [], []>} : vector<16x72xbf16>, vector<72x128xbf16>, vector<16x128xf32> -> vector<16x128xf32>
    %241 = arith.addf %236, %240 : vector<16x128xf32>
    %242 = vector.extract_strided_slice %231 {offsets = [2, 0], sizes = [16, 72], strides = [1, 1]} : vector<18x72xbf16> to vector<16x72xbf16>
    %c8_199 = arith.constant 8 : index
    %c0_200 = arith.constant 0 : index
    %c0_201 = arith.constant 0 : index
    %243 = vector.load %arg2[%c8_199, %c0_200, %c0_201] : memref<9x72x128xbf16, #tpu.memory_space<vmem>>, vector<1x72x128xbf16>
    %244 = vector.shape_cast %243 : vector<1x72x128xbf16> to vector<72x128xbf16>
    %cst_202 = arith.constant dense<0.000000e+00> : vector<16x128xf32>
    %245 = tpu.matmul %242, %244, %cst_202 {dimension_numbers = #tpu.dot_dimension_numbers<[1], [0], [0], [1], [0, 0, 1, 1], [], []>} : vector<16x72xbf16>, vector<72x128xbf16>, vector<16x128xf32> -> vector<16x128xf32>
    %246 = arith.addf %241, %245 : vector<16x128xf32>
    %247 = vector.broadcast %0 : vector<1x128xf32> to vector<16x128xf32>
    %248 = arith.addf %246, %247 : vector<16x128xf32>
    %c0_203 = arith.constant 0 : index
    %c48 = arith.constant 48 : index
    %c0_204 = arith.constant 0 : index
    %249 = vector.load %arg4[%c0_203, %c48, %c0_204] : memref<1x80x128xf32, #tpu.memory_space<vmem>>, vector<1x16x128xf32>
    %250 = vector.shape_cast %249 : vector<1x16x128xf32> to vector<16x128xf32>
    %251 = vector.shape_cast %248 : vector<16x128xf32> to vector<1x16x128xf32>
    tpu.vector_store %arg4[%c0_203, %c48, %c0_204], %251 {strides = array<i32>} : memref<1x80x128xf32, #tpu.memory_space<vmem>>, vector<1x16x128xf32>,
    %cst_205 = arith.constant dense<0.000000e+00> : vector<128xf32>
    %252 = vector.multi_reduction <add>, %248, %cst_205 [0] : vector<16x128xf32> to vector<128xf32>
    %253 = vector.shape_cast %252 : vector<128xf32> to vector<1x128xf32>
    %254 = arith.addf %190, %253 : vector<1x128xf32>
    %255 = arith.mulf %248, %248 : vector<16x128xf32>
    %cst_206 = arith.constant dense<0.000000e+00> : vector<128xf32>
    %256 = vector.multi_reduction <add>, %255, %cst_206 [0] : vector<16x128xf32> to vector<128xf32>
    %257 = vector.shape_cast %256 : vector<128xf32> to vector<1x128xf32>
    %258 = arith.addf %194, %257 : vector<1x128xf32>
    %cst_207 = arith.constant 0.000000e+00 : f32
    %259 = vector.broadcast %cst_207 : f32 to vector<16x128xf32>
    %c0_208 = arith.constant 0 : index
    %c4_209 = arith.constant 4 : index
    %c0_210 = arith.constant 0 : index
    %c0_211 = arith.constant 0 : index
    %260 = vector.load %arg1[%c0_208, %c4_209, %c0_210, %c0_211] : memref<1x7x18x72xbf16, #tpu.memory_space<vmem>>, vector<1x1x18x72xbf16>
    %261 = vector.shape_cast %260 : vector<1x1x18x72xbf16> to vector<18x72xbf16>
    %262 = vector.extract_strided_slice %261 {offsets = [0, 0], sizes = [16, 72], strides = [1, 1]} : vector<18x72xbf16> to vector<16x72xbf16>
    %c0_212 = arith.constant 0 : index
    %c0_213 = arith.constant 0 : index
    %c0_214 = arith.constant 0 : index
    %263 = vector.load %arg2[%c0_212, %c0_213, %c0_214] : memref<9x72x128xbf16, #tpu.memory_space<vmem>>, vector<1x72x128xbf16>
    %264 = vector.shape_cast %263 : vector<1x72x128xbf16> to vector<72x128xbf16>
    %cst_215 = arith.constant dense<0.000000e+00> : vector<16x128xf32>
    %265 = tpu.matmul %262, %264, %cst_215 {dimension_numbers = #tpu.dot_dimension_numbers<[1], [0], [0], [1], [0, 0, 1, 1], [], []>} : vector<16x72xbf16>, vector<72x128xbf16>, vector<16x128xf32> -> vector<16x128xf32>
    %266 = arith.addf %259, %265 : vector<16x128xf32>
    %267 = vector.extract_strided_slice %261 {offsets = [1, 0], sizes = [16, 72], strides = [1, 1]} : vector<18x72xbf16> to vector<16x72xbf16>
    %c1_216 = arith.constant 1 : index
    %c0_217 = arith.constant 0 : index
    %c0_218 = arith.constant 0 : index
    %268 = vector.load %arg2[%c1_216, %c0_217, %c0_218] : memref<9x72x128xbf16, #tpu.memory_space<vmem>>, vector<1x72x128xbf16>
    %269 = vector.shape_cast %268 : vector<1x72x128xbf16> to vector<72x128xbf16>
    %cst_219 = arith.constant dense<0.000000e+00> : vector<16x128xf32>
    %270 = tpu.matmul %267, %269, %cst_219 {dimension_numbers = #tpu.dot_dimension_numbers<[1], [0], [0], [1], [0, 0, 1, 1], [], []>} : vector<16x72xbf16>, vector<72x128xbf16>, vector<16x128xf32> -> vector<16x128xf32>
    %271 = arith.addf %266, %270 : vector<16x128xf32>
    %272 = vector.extract_strided_slice %261 {offsets = [2, 0], sizes = [16, 72], strides = [1, 1]} : vector<18x72xbf16> to vector<16x72xbf16>
    %c2_220 = arith.constant 2 : index
    %c0_221 = arith.constant 0 : index
    %c0_222 = arith.constant 0 : index
    %273 = vector.load %arg2[%c2_220, %c0_221, %c0_222] : memref<9x72x128xbf16, #tpu.memory_space<vmem>>, vector<1x72x128xbf16>
    %274 = vector.shape_cast %273 : vector<1x72x128xbf16> to vector<72x128xbf16>
    %cst_223 = arith.constant dense<0.000000e+00> : vector<16x128xf32>
    %275 = tpu.matmul %272, %274, %cst_223 {dimension_numbers = #tpu.dot_dimension_numbers<[1], [0], [0], [1], [0, 0, 1, 1], [], []>} : vector<16x72xbf16>, vector<72x128xbf16>, vector<16x128xf32> -> vector<16x128xf32>
    %276 = arith.addf %271, %275 : vector<16x128xf32>
    %c0_224 = arith.constant 0 : index
    %c5_225 = arith.constant 5 : index
    %c0_226 = arith.constant 0 : index
    %c0_227 = arith.constant 0 : index
    %277 = vector.load %arg1[%c0_224, %c5_225, %c0_226, %c0_227] : memref<1x7x18x72xbf16, #tpu.memory_space<vmem>>, vector<1x1x18x72xbf16>
    %278 = vector.shape_cast %277 : vector<1x1x18x72xbf16> to vector<18x72xbf16>
    %279 = vector.extract_strided_slice %278 {offsets = [0, 0], sizes = [16, 72], strides = [1, 1]} : vector<18x72xbf16> to vector<16x72xbf16>
    %c3_228 = arith.constant 3 : index
    %c0_229 = arith.constant 0 : index
    %c0_230 = arith.constant 0 : index
    %280 = vector.load %arg2[%c3_228, %c0_229, %c0_230] : memref<9x72x128xbf16, #tpu.memory_space<vmem>>, vector<1x72x128xbf16>
    %281 = vector.shape_cast %280 : vector<1x72x128xbf16> to vector<72x128xbf16>
    %cst_231 = arith.constant dense<0.000000e+00> : vector<16x128xf32>
    %282 = tpu.matmul %279, %281, %cst_231 {dimension_numbers = #tpu.dot_dimension_numbers<[1], [0], [0], [1], [0, 0, 1, 1], [], []>} : vector<16x72xbf16>, vector<72x128xbf16>, vector<16x128xf32> -> vector<16x128xf32>
    %283 = arith.addf %276, %282 : vector<16x128xf32>
    %284 = vector.extract_strided_slice %278 {offsets = [1, 0], sizes = [16, 72], strides = [1, 1]} : vector<18x72xbf16> to vector<16x72xbf16>
    %c4_232 = arith.constant 4 : index
    %c0_233 = arith.constant 0 : index
    %c0_234 = arith.constant 0 : index
    %285 = vector.load %arg2[%c4_232, %c0_233, %c0_234] : memref<9x72x128xbf16, #tpu.memory_space<vmem>>, vector<1x72x128xbf16>
    %286 = vector.shape_cast %285 : vector<1x72x128xbf16> to vector<72x128xbf16>
    %cst_235 = arith.constant dense<0.000000e+00> : vector<16x128xf32>
    %287 = tpu.matmul %284, %286, %cst_235 {dimension_numbers = #tpu.dot_dimension_numbers<[1], [0], [0], [1], [0, 0, 1, 1], [], []>} : vector<16x72xbf16>, vector<72x128xbf16>, vector<16x128xf32> -> vector<16x128xf32>
    %288 = arith.addf %283, %287 : vector<16x128xf32>
    %289 = vector.extract_strided_slice %278 {offsets = [2, 0], sizes = [16, 72], strides = [1, 1]} : vector<18x72xbf16> to vector<16x72xbf16>
    %c5_236 = arith.constant 5 : index
    %c0_237 = arith.constant 0 : index
    %c0_238 = arith.constant 0 : index
    %290 = vector.load %arg2[%c5_236, %c0_237, %c0_238] : memref<9x72x128xbf16, #tpu.memory_space<vmem>>, vector<1x72x128xbf16>
    %291 = vector.shape_cast %290 : vector<1x72x128xbf16> to vector<72x128xbf16>
    %cst_239 = arith.constant dense<0.000000e+00> : vector<16x128xf32>
    %292 = tpu.matmul %289, %291, %cst_239 {dimension_numbers = #tpu.dot_dimension_numbers<[1], [0], [0], [1], [0, 0, 1, 1], [], []>} : vector<16x72xbf16>, vector<72x128xbf16>, vector<16x128xf32> -> vector<16x128xf32>
    %293 = arith.addf %288, %292 : vector<16x128xf32>
    %c0_240 = arith.constant 0 : index
    %c6_241 = arith.constant 6 : index
    %c0_242 = arith.constant 0 : index
    %c0_243 = arith.constant 0 : index
    %294 = vector.load %arg1[%c0_240, %c6_241, %c0_242, %c0_243] : memref<1x7x18x72xbf16, #tpu.memory_space<vmem>>, vector<1x1x18x72xbf16>
    %295 = vector.shape_cast %294 : vector<1x1x18x72xbf16> to vector<18x72xbf16>
    %296 = vector.extract_strided_slice %295 {offsets = [0, 0], sizes = [16, 72], strides = [1, 1]} : vector<18x72xbf16> to vector<16x72xbf16>
    %c6_244 = arith.constant 6 : index
    %c0_245 = arith.constant 0 : index
    %c0_246 = arith.constant 0 : index
    %297 = vector.load %arg2[%c6_244, %c0_245, %c0_246] : memref<9x72x128xbf16, #tpu.memory_space<vmem>>, vector<1x72x128xbf16>
    %298 = vector.shape_cast %297 : vector<1x72x128xbf16> to vector<72x128xbf16>
    %cst_247 = arith.constant dense<0.000000e+00> : vector<16x128xf32>
    %299 = tpu.matmul %296, %298, %cst_247 {dimension_numbers = #tpu.dot_dimension_numbers<[1], [0], [0], [1], [0, 0, 1, 1], [], []>} : vector<16x72xbf16>, vector<72x128xbf16>, vector<16x128xf32> -> vector<16x128xf32>
    %300 = arith.addf %293, %299 : vector<16x128xf32>
    %301 = vector.extract_strided_slice %295 {offsets = [1, 0], sizes = [16, 72], strides = [1, 1]} : vector<18x72xbf16> to vector<16x72xbf16>
    %c7_248 = arith.constant 7 : index
    %c0_249 = arith.constant 0 : index
    %c0_250 = arith.constant 0 : index
    %302 = vector.load %arg2[%c7_248, %c0_249, %c0_250] : memref<9x72x128xbf16, #tpu.memory_space<vmem>>, vector<1x72x128xbf16>
    %303 = vector.shape_cast %302 : vector<1x72x128xbf16> to vector<72x128xbf16>
    %cst_251 = arith.constant dense<0.000000e+00> : vector<16x128xf32>
    %304 = tpu.matmul %301, %303, %cst_251 {dimension_numbers = #tpu.dot_dimension_numbers<[1], [0], [0], [1], [0, 0, 1, 1], [], []>} : vector<16x72xbf16>, vector<72x128xbf16>, vector<16x128xf32> -> vector<16x128xf32>
    %305 = arith.addf %300, %304 : vector<16x128xf32>
    %306 = vector.extract_strided_slice %295 {offsets = [2, 0], sizes = [16, 72], strides = [1, 1]} : vector<18x72xbf16> to vector<16x72xbf16>
    %c8_252 = arith.constant 8 : index
    %c0_253 = arith.constant 0 : index
    %c0_254 = arith.constant 0 : index
    %307 = vector.load %arg2[%c8_252, %c0_253, %c0_254] : memref<9x72x128xbf16, #tpu.memory_space<vmem>>, vector<1x72x128xbf16>
    %308 = vector.shape_cast %307 : vector<1x72x128xbf16> to vector<72x128xbf16>
    %cst_255 = arith.constant dense<0.000000e+00> : vector<16x128xf32>
    %309 = tpu.matmul %306, %308, %cst_255 {dimension_numbers = #tpu.dot_dimension_numbers<[1], [0], [0], [1], [0, 0, 1, 1], [], []>} : vector<16x72xbf16>, vector<72x128xbf16>, vector<16x128xf32> -> vector<16x128xf32>
    %310 = arith.addf %305, %309 : vector<16x128xf32>
    %311 = vector.broadcast %0 : vector<1x128xf32> to vector<16x128xf32>
    %312 = arith.addf %310, %311 : vector<16x128xf32>
    %c0_256 = arith.constant 0 : index
    %c64 = arith.constant 64 : index
    %c0_257 = arith.constant 0 : index
    %313 = vector.load %arg4[%c0_256, %c64, %c0_257] : memref<1x80x128xf32, #tpu.memory_space<vmem>>, vector<1x16x128xf32>
    %314 = vector.shape_cast %313 : vector<1x16x128xf32> to vector<16x128xf32>
    %315 = vector.shape_cast %312 : vector<16x128xf32> to vector<1x16x128xf32>
    tpu.vector_store %arg4[%c0_256, %c64, %c0_257], %315 {strides = array<i32>} : memref<1x80x128xf32, #tpu.memory_space<vmem>>, vector<1x16x128xf32>,
    %cst_258 = arith.constant dense<0.000000e+00> : vector<128xf32>
    %316 = vector.multi_reduction <add>, %312, %cst_258 [0] : vector<16x128xf32> to vector<128xf32>
    %317 = vector.shape_cast %316 : vector<128xf32> to vector<1x128xf32>
    %318 = arith.addf %254, %317 : vector<1x128xf32>
    %319 = arith.mulf %312, %312 : vector<16x128xf32>
    %cst_259 = arith.constant dense<0.000000e+00> : vector<128xf32>
    %320 = vector.multi_reduction <add>, %319, %cst_259 [0] : vector<16x128xf32> to vector<128xf32>
    %321 = vector.shape_cast %320 : vector<128xf32> to vector<1x128xf32>
    %322 = arith.addf %258, %321 : vector<1x128xf32>
    %cst_260 = arith.constant 0.000000e+00 : f32
    %323 = vector.broadcast %cst_260 : f32 to vector<6x128xf32>
    %324 = tpu.concatenate %318, %322, %323 in 0 : vector<1x128xf32>, vector<1x128xf32>, vector<6x128xf32> -> vector<8x128xf32>
    %c0_261 = arith.constant 0 : index
    %c0_262 = arith.constant 0 : index
    %c0_263 = arith.constant 0 : index
    %325 = vector.load %arg5[%c0_261, %c0_262, %c0_263] : memref<1x8x128xf32, #tpu.memory_space<vmem>>, vector<1x8x128xf32>
    %326 = vector.shape_cast %325 : vector<1x8x128xf32> to vector<8x128xf32>
    %327 = vector.shape_cast %324 : vector<8x128xf32> to vector<1x8x128xf32>
    tpu.vector_store %arg5[%c0_261, %c0_262, %c0_263], %327 {strides = array<i32>} : memref<1x8x128xf32, #tpu.memory_space<vmem>>, vector<1x8x128xf32>,
    return
  }
  func.func @transform_0(%arg0: i32) -> (i32, i32, i32, i32) {
    %c0_i32 = arith.constant 0 : i32
    %c0_i32_0 = arith.constant 0 : i32
    %c0_i32_1 = arith.constant 0 : i32
    %c0_i32_2 = arith.constant 0 : i32
    return %arg0, %c0_i32, %c0_i32_0, %c0_i32_1 : i32, i32, i32, i32
  }
  func.func @transform_1(%arg0: i32) -> (i32, i32, i32) {
    %c0_i32 = arith.constant 0 : i32
    %c0_i32_0 = arith.constant 0 : i32
    %c0_i32_1 = arith.constant 0 : i32
    %c0_i32_2 = arith.constant 0 : i32
    return %c0_i32, %c0_i32_0, %c0_i32_1 : i32, i32, i32
  }
  func.func @transform_2(%arg0: i32) -> (i32, i32) {
    %c0_i32 = arith.constant 0 : i32
    %c0_i32_0 = arith.constant 0 : i32
    %c0_i32_1 = arith.constant 0 : i32
    return %c0_i32, %c0_i32_0 : i32, i32
  }
  func.func @transform_3(%arg0: i32) -> (i32, i32, i32) {
    %c0_i32 = arith.constant 0 : i32
    %c0_i32_0 = arith.constant 0 : i32
    %c0_i32_1 = arith.constant 0 : i32
    return %arg0, %c0_i32, %c0_i32_0 : i32, i32, i32
  }
  func.func @transform_4(%arg0: i32) -> (i32, i32, i32) {
    %c0_i32 = arith.constant 0 : i32
    %c0_i32_0 = arith.constant 0 : i32
    %c0_i32_1 = arith.constant 0 : i32
    return %arg0, %c0_i32, %c0_i32_0 : i32, i32, i32
  }
}

module attributes {stable_mosaic.version = 11 : i64} {
  func.func @_bn_relu_pool_kernel(%arg0: i32, %arg1: memref<1x80x128xf32, #tpu.memory_space<vmem>>, %arg2: memref<1x128xf32, #tpu.memory_space<vmem>>, %arg3: memref<1x128xf32, #tpu.memory_space<vmem>>, %arg4: memref<40x79xf32, #tpu.memory_space<vmem>>, %arg5: memref<127x64xf32, #tpu.memory_space<vmem>>, %arg6: memref<1x40x64xf32, #tpu.memory_space<vmem>>) attributes {dimension_semantics = [#tpu.dimension_semantics<parallel>], iteration_bounds = array<i64: 2>, scalar_prefetch = 0 : i64, scratch_operands = 0 : i64, tpu.core_type = #tpu.core_type<tc>, window_params = [{transform_indices = @transform_0, window_bounds = array<i64: 1, 80, 128>}, {pipeline_mode = #tpu.pipeline_mode<synchronous>, transform_indices = @transform_1, window_bounds = array<i64: 1, 128>}, {pipeline_mode = #tpu.pipeline_mode<synchronous>, transform_indices = @transform_2, window_bounds = array<i64: 1, 128>}, {pipeline_mode = #tpu.pipeline_mode<synchronous>, transform_indices = @transform_3, window_bounds = array<i64: 40, 79>}, {pipeline_mode = #tpu.pipeline_mode<synchronous>, transform_indices = @transform_4, window_bounds = array<i64: 127, 64>}, {transform_indices = @transform_5, window_bounds = array<i64: 1, 40, 64>}]} {
    %c0 = arith.constant 0 : index
    %c0_0 = arith.constant 0 : index
    %c0_1 = arith.constant 0 : index
    %0 = vector.load %arg1[%c0, %c0_0, %c0_1] : memref<1x80x128xf32, #tpu.memory_space<vmem>>, vector<1x80x128xf32>
    %1 = vector.shape_cast %0 : vector<1x80x128xf32> to vector<80x128xf32>
    %c0_2 = arith.constant 0 : index
    %c0_3 = arith.constant 0 : index
    %2 = vector.load %arg2[%c0_2, %c0_3] : memref<1x128xf32, #tpu.memory_space<vmem>>, vector<1x128xf32>
    %3 = vector.broadcast %2 : vector<1x128xf32> to vector<80x128xf32>
    %4 = arith.mulf %1, %3 : vector<80x128xf32>
    %c0_4 = arith.constant 0 : index
    %c0_5 = arith.constant 0 : index
    %5 = vector.load %arg3[%c0_4, %c0_5] : memref<1x128xf32, #tpu.memory_space<vmem>>, vector<1x128xf32>
    %6 = vector.broadcast %5 : vector<1x128xf32> to vector<80x128xf32>
    %7 = arith.addf %4, %6 : vector<80x128xf32>
    %cst = arith.constant 0.000000e+00 : f32
    %8 = vector.broadcast %cst : f32 to vector<80x128xf32>
    %9 = arith.maximumf %7, %8 : vector<80x128xf32>
    %10 = vector.extract_strided_slice %9 {offsets = [0, 0], sizes = [79, 128], strides = [1, 1]} : vector<80x128xf32> to vector<79x128xf32>
    %11 = vector.extract_strided_slice %9 {offsets = [1, 0], sizes = [79, 128], strides = [1, 1]} : vector<80x128xf32> to vector<79x128xf32>
    %12 = arith.maximumf %10, %11 : vector<79x128xf32>
    %c0_6 = arith.constant 0 : index
    %c0_7 = arith.constant 0 : index
    %13 = vector.load %arg4[%c0_6, %c0_7] : memref<40x79xf32, #tpu.memory_space<vmem>>, vector<40x79xf32>
    %cst_8 = arith.constant dense<0.000000e+00> : vector<40x128xf32>
    %14 = tpu.matmul %13, %12, %cst_8 {dimension_numbers = #tpu.dot_dimension_numbers<[1], [0], [0], [1], [0, 0, 1, 1], [], []>} : vector<40x79xf32>, vector<79x128xf32>, vector<40x128xf32> -> vector<40x128xf32>
    %15 = vector.extract_strided_slice %14 {offsets = [0, 0], sizes = [40, 127], strides = [1, 1]} : vector<40x128xf32> to vector<40x127xf32>
    %16 = vector.extract_strided_slice %14 {offsets = [0, 1], sizes = [40, 127], strides = [1, 1]} : vector<40x128xf32> to vector<40x127xf32>
    %17 = arith.maximumf %15, %16 : vector<40x127xf32>
    %c0_9 = arith.constant 0 : index
    %c0_10 = arith.constant 0 : index
    %18 = vector.load %arg5[%c0_9, %c0_10] : memref<127x64xf32, #tpu.memory_space<vmem>>, vector<127x64xf32>
    %cst_11 = arith.constant dense<0.000000e+00> : vector<40x64xf32>
    %19 = tpu.matmul %17, %18, %cst_11 {dimension_numbers = #tpu.dot_dimension_numbers<[1], [0], [0], [1], [0, 0, 1, 1], [], []>} : vector<40x127xf32>, vector<127x64xf32>, vector<40x64xf32> -> vector<40x64xf32>
    %c0_12 = arith.constant 0 : index
    %c0_13 = arith.constant 0 : index
    %c0_14 = arith.constant 0 : index
    %20 = vector.load %arg6[%c0_12, %c0_13, %c0_14] : memref<1x40x64xf32, #tpu.memory_space<vmem>>, vector<1x40x64xf32>
    %21 = vector.shape_cast %20 : vector<1x40x64xf32> to vector<40x64xf32>
    %22 = vector.shape_cast %19 : vector<40x64xf32> to vector<1x40x64xf32>
    tpu.vector_store %arg6[%c0_12, %c0_13, %c0_14], %22 {strides = array<i32>} : memref<1x40x64xf32, #tpu.memory_space<vmem>>, vector<1x40x64xf32>,
    return
  }
  func.func @transform_0(%arg0: i32) -> (i32, i32, i32) {
    %c0_i32 = arith.constant 0 : i32
    %c0_i32_0 = arith.constant 0 : i32
    %c0_i32_1 = arith.constant 0 : i32
    return %arg0, %c0_i32, %c0_i32_0 : i32, i32, i32
  }
  func.func @transform_1(%arg0: i32) -> (i32, i32) {
    %c0_i32 = arith.constant 0 : i32
    %c0_i32_0 = arith.constant 0 : i32
    %c0_i32_1 = arith.constant 0 : i32
    return %c0_i32, %c0_i32_0 : i32, i32
  }
  func.func @transform_2(%arg0: i32) -> (i32, i32) {
    %c0_i32 = arith.constant 0 : i32
    %c0_i32_0 = arith.constant 0 : i32
    %c0_i32_1 = arith.constant 0 : i32
    return %c0_i32, %c0_i32_0 : i32, i32
  }
  func.func @transform_3(%arg0: i32) -> (i32, i32) {
    %c0_i32 = arith.constant 0 : i32
    %c0_i32_0 = arith.constant 0 : i32
    %c0_i32_1 = arith.constant 0 : i32
    return %c0_i32, %c0_i32_0 : i32, i32
  }
  func.func @transform_4(%arg0: i32) -> (i32, i32) {
    %c0_i32 = arith.constant 0 : i32
    %c0_i32_0 = arith.constant 0 : i32
    %c0_i32_1 = arith.constant 0 : i32
    return %c0_i32, %c0_i32_0 : i32, i32
  }
  func.func @transform_5(%arg0: i32) -> (i32, i32, i32) {
    %c0_i32 = arith.constant 0 : i32
    %c0_i32_0 = arith.constant 0 : i32
    %c0_i32_1 = arith.constant 0 : i32
    return %arg0, %c0_i32, %c0_i32_0 : i32, i32, i32
  }
}

module attributes {stable_mosaic.version = 11 : i64} {
  func.func @_fusion_head_kernel(%arg0: i32, %arg1: memref<10x512xbf16, #tpu.memory_space<vmem>>, %arg2: memref<10x4xf32, #tpu.memory_space<vmem>>, %arg3: memref<512x32xbf16, #tpu.memory_space<vmem>>, %arg4: memref<1x32xf32, #tpu.memory_space<vmem>>, %arg5: memref<4x64xf32, #tpu.memory_space<vmem>>, %arg6: memref<1x64xf32, #tpu.memory_space<vmem>>, %arg7: memref<64x32xf32, #tpu.memory_space<vmem>>, %arg8: memref<1x32xf32, #tpu.memory_space<vmem>>, %arg9: memref<32x128xf32, #tpu.memory_space<vmem>>, %arg10: memref<10x128xf32, #tpu.memory_space<vmem>>) attributes {dimension_semantics = [#tpu.dimension_semantics<arbitrary>], iteration_bounds = array<i64: 1>, scalar_prefetch = 0 : i64, scratch_operands = 0 : i64, tpu.core_type = #tpu.core_type<tc>, window_params = [{pipeline_mode = #tpu.pipeline_mode<synchronous>, transform_indices = @transform_0, window_bounds = array<i64: 10, 512>}, {pipeline_mode = #tpu.pipeline_mode<synchronous>, transform_indices = @transform_1, window_bounds = array<i64: 10, 4>}, {pipeline_mode = #tpu.pipeline_mode<synchronous>, transform_indices = @transform_2, window_bounds = array<i64: 512, 32>}, {pipeline_mode = #tpu.pipeline_mode<synchronous>, transform_indices = @transform_3, window_bounds = array<i64: 1, 32>}, {pipeline_mode = #tpu.pipeline_mode<synchronous>, transform_indices = @transform_4, window_bounds = array<i64: 4, 64>}, {pipeline_mode = #tpu.pipeline_mode<synchronous>, transform_indices = @transform_5, window_bounds = array<i64: 1, 64>}, {pipeline_mode = #tpu.pipeline_mode<synchronous>, transform_indices = @transform_6, window_bounds = array<i64: 64, 32>}, {pipeline_mode = #tpu.pipeline_mode<synchronous>, transform_indices = @transform_7, window_bounds = array<i64: 1, 32>}, {pipeline_mode = #tpu.pipeline_mode<synchronous>, transform_indices = @transform_8, window_bounds = array<i64: 32, 128>}, {pipeline_mode = #tpu.pipeline_mode<synchronous>, transform_indices = @transform_9, window_bounds = array<i64: 10, 128>}]} {
    %c0 = arith.constant 0 : index
    %c0_0 = arith.constant 0 : index
    %0 = vector.load %arg1[%c0, %c0_0] : memref<10x512xbf16, #tpu.memory_space<vmem>>, vector<10x512xbf16>
    %c0_1 = arith.constant 0 : index
    %c0_2 = arith.constant 0 : index
    %1 = vector.load %arg3[%c0_1, %c0_2] : memref<512x32xbf16, #tpu.memory_space<vmem>>, vector<512x32xbf16>
    %cst = arith.constant dense<0.000000e+00> : vector<10x32xf32>
    %2 = tpu.matmul %0, %1, %cst {dimension_numbers = #tpu.dot_dimension_numbers<[1], [0], [0], [1], [0, 0, 1, 1], [], []>} : vector<10x512xbf16>, vector<512x32xbf16>, vector<10x32xf32> -> vector<10x32xf32>
    %c0_3 = arith.constant 0 : index
    %c0_4 = arith.constant 0 : index
    %3 = vector.load %arg4[%c0_3, %c0_4] : memref<1x32xf32, #tpu.memory_space<vmem>>, vector<1x32xf32>
    %4 = vector.broadcast %3 : vector<1x32xf32> to vector<10x32xf32>
    %5 = arith.addf %2, %4 : vector<10x32xf32>
    %c0_5 = arith.constant 0 : index
    %c0_6 = arith.constant 0 : index
    %6 = vector.load %arg2[%c0_5, %c0_6] : memref<10x4xf32, #tpu.memory_space<vmem>>, vector<10x4xf32>
    %c0_7 = arith.constant 0 : index
    %c0_8 = arith.constant 0 : index
    %7 = vector.load %arg5[%c0_7, %c0_8] : memref<4x64xf32, #tpu.memory_space<vmem>>, vector<4x64xf32>
    %cst_9 = arith.constant dense<0.000000e+00> : vector<10x64xf32>
    %8 = tpu.matmul %6, %7, %cst_9 {dimension_numbers = #tpu.dot_dimension_numbers<[1], [0], [0], [1], [0, 0, 1, 1], [], []>} : vector<10x4xf32>, vector<4x64xf32>, vector<10x64xf32> -> vector<10x64xf32>
    %c0_10 = arith.constant 0 : index
    %c0_11 = arith.constant 0 : index
    %9 = vector.load %arg6[%c0_10, %c0_11] : memref<1x64xf32, #tpu.memory_space<vmem>>, vector<1x64xf32>
    %10 = vector.broadcast %9 : vector<1x64xf32> to vector<10x64xf32>
    %11 = arith.addf %8, %10 : vector<10x64xf32>
    %cst_12 = arith.constant 0.000000e+00 : f32
    %12 = vector.broadcast %cst_12 : f32 to vector<10x64xf32>
    %13 = arith.maximumf %11, %12 : vector<10x64xf32>
    %c0_13 = arith.constant 0 : index
    %c0_14 = arith.constant 0 : index
    %14 = vector.load %arg7[%c0_13, %c0_14] : memref<64x32xf32, #tpu.memory_space<vmem>>, vector<64x32xf32>
    %cst_15 = arith.constant dense<0.000000e+00> : vector<10x32xf32>
    %15 = tpu.matmul %13, %14, %cst_15 {dimension_numbers = #tpu.dot_dimension_numbers<[1], [0], [0], [1], [0, 0, 1, 1], [], []>} : vector<10x64xf32>, vector<64x32xf32>, vector<10x32xf32> -> vector<10x32xf32>
    %c0_16 = arith.constant 0 : index
    %c0_17 = arith.constant 0 : index
    %16 = vector.load %arg8[%c0_16, %c0_17] : memref<1x32xf32, #tpu.memory_space<vmem>>, vector<1x32xf32>
    %17 = vector.broadcast %16 : vector<1x32xf32> to vector<10x32xf32>
    %18 = arith.addf %15, %17 : vector<10x32xf32>
    %19 = arith.addf %5, %18 : vector<10x32xf32>
    %c0_18 = arith.constant 0 : index
    %c0_19 = arith.constant 0 : index
    %20 = vector.load %arg9[%c0_18, %c0_19] : memref<32x128xf32, #tpu.memory_space<vmem>>, vector<32x128xf32>
    %cst_20 = arith.constant dense<0.000000e+00> : vector<10x128xf32>
    %21 = tpu.matmul %19, %20, %cst_20 {dimension_numbers = #tpu.dot_dimension_numbers<[1], [0], [0], [1], [0, 0, 1, 1], [], []>} : vector<10x32xf32>, vector<32x128xf32>, vector<10x128xf32> -> vector<10x128xf32>
    %c0_21 = arith.constant 0 : index
    %c0_22 = arith.constant 0 : index
    %22 = vector.load %arg10[%c0_21, %c0_22] : memref<10x128xf32, #tpu.memory_space<vmem>>, vector<10x128xf32>
    tpu.vector_store %arg10[%c0_21, %c0_22], %21 {strides = array<i32>} : memref<10x128xf32, #tpu.memory_space<vmem>>, vector<10x128xf32>,
    return
  }
  func.func @transform_0(%arg0: i32) -> (i32, i32) {
    %c0_i32 = arith.constant 0 : i32
    %c0_i32_0 = arith.constant 0 : i32
    %c0_i32_1 = arith.constant 0 : i32
    return %c0_i32, %c0_i32_0 : i32, i32
  }
  func.func @transform_1(%arg0: i32) -> (i32, i32) {
    %c0_i32 = arith.constant 0 : i32
    %c0_i32_0 = arith.constant 0 : i32
    %c0_i32_1 = arith.constant 0 : i32
    return %c0_i32, %c0_i32_0 : i32, i32
  }
  func.func @transform_2(%arg0: i32) -> (i32, i32) {
    %c0_i32 = arith.constant 0 : i32
    %c0_i32_0 = arith.constant 0 : i32
    %c0_i32_1 = arith.constant 0 : i32
    return %c0_i32, %c0_i32_0 : i32, i32
  }
  func.func @transform_3(%arg0: i32) -> (i32, i32) {
    %c0_i32 = arith.constant 0 : i32
    %c0_i32_0 = arith.constant 0 : i32
    %c0_i32_1 = arith.constant 0 : i32
    return %c0_i32, %c0_i32_0 : i32, i32
  }
  func.func @transform_4(%arg0: i32) -> (i32, i32) {
    %c0_i32 = arith.constant 0 : i32
    %c0_i32_0 = arith.constant 0 : i32
    %c0_i32_1 = arith.constant 0 : i32
    return %c0_i32, %c0_i32_0 : i32, i32
  }
  func.func @transform_5(%arg0: i32) -> (i32, i32) {
    %c0_i32 = arith.constant 0 : i32
    %c0_i32_0 = arith.constant 0 : i32
    %c0_i32_1 = arith.constant 0 : i32
    return %c0_i32, %c0_i32_0 : i32, i32
  }
  func.func @transform_6(%arg0: i32) -> (i32, i32) {
    %c0_i32 = arith.constant 0 : i32
    %c0_i32_0 = arith.constant 0 : i32
    %c0_i32_1 = arith.constant 0 : i32
    return %c0_i32, %c0_i32_0 : i32, i32
  }
  func.func @transform_7(%arg0: i32) -> (i32, i32) {
    %c0_i32 = arith.constant 0 : i32
    %c0_i32_0 = arith.constant 0 : i32
    %c0_i32_1 = arith.constant 0 : i32
    return %c0_i32, %c0_i32_0 : i32, i32
  }
  func.func @transform_8(%arg0: i32) -> (i32, i32) {
    %c0_i32 = arith.constant 0 : i32
    %c0_i32_0 = arith.constant 0 : i32
    %c0_i32_1 = arith.constant 0 : i32
    return %c0_i32, %c0_i32_0 : i32, i32
  }
  func.func @transform_9(%arg0: i32) -> (i32, i32) {
    %c0_i32 = arith.constant 0 : i32
    %c0_i32_0 = arith.constant 0 : i32
    %c0_i32_1 = arith.constant 0 : i32
    return %c0_i32, %c0_i32_0 : i32, i32
  }
}

module attributes {stable_mosaic.version = 11 : i64} {
  func.func @kernel(%arg0: i32, %arg1: i32, %arg2: memref<16x128xf32, #tpu.memory_space<vmem>>, %arg3: memref<128x80xf32, #tpu.memory_space<vmem>>, %arg4: memref<1x80xf32, #tpu.memory_space<vmem>>, %arg5: memref<16x80xf32, #tpu.memory_space<vmem>>, %arg6: memref<16x80xf32, #tpu.memory_space<vmem>>) attributes {dimension_semantics = [#tpu.dimension_semantics<parallel>, #tpu.dimension_semantics<arbitrary>], iteration_bounds = array<i64: 1, 1>, scalar_prefetch = 0 : i64, scratch_operands = 1 : i64, tpu.core_type = #tpu.core_type<tc>, window_params = [{transform_indices = @transform_0, window_bounds = array<i64: 16, 128>}, {transform_indices = @transform_1, window_bounds = array<i64: 128, 80>}, {pipeline_mode = #tpu.pipeline_mode<synchronous>, transform_indices = @transform_2, window_bounds = array<i64: 1, 80>}, {transform_indices = @transform_3, window_bounds = array<i64: 16, 80>}]} {
    %c0_i32 = arith.constant 0 : i32
    %0 = arith.cmpi eq, %arg1, %c0_i32 : i32
    %1 = arith.extui %0 : i1 to i32
    %c0_i32_0 = arith.constant 0 : i32
    %2 = arith.cmpi ne, %1, %c0_i32_0 : i32
    scf.if %2 {
      %cst_10 = arith.constant 0.000000e+00 : f32
      %12 = vector.broadcast %cst_10 : f32 to vector<16x80xf32>
      %c0_11 = arith.constant 0 : index
      %c0_12 = arith.constant 0 : index
      %13 = vector.load %arg6[%c0_11, %c0_12] : memref<16x80xf32, #tpu.memory_space<vmem>>, vector<16x80xf32>
      tpu.vector_store %arg6[%c0_11, %c0_12], %12 {strides = array<i32>} : memref<16x80xf32, #tpu.memory_space<vmem>>, vector<16x80xf32>,
    } else {
    }
    %c0 = arith.constant 0 : index
    %c0_1 = arith.constant 0 : index
    %3 = vector.load %arg6[%c0, %c0_1] : memref<16x80xf32, #tpu.memory_space<vmem>>, vector<16x80xf32>
    %c0_2 = arith.constant 0 : index
    %c0_3 = arith.constant 0 : index
    %4 = vector.load %arg2[%c0_2, %c0_3] : memref<16x128xf32, #tpu.memory_space<vmem>>, vector<16x128xf32>
    %c0_4 = arith.constant 0 : index
    %c0_5 = arith.constant 0 : index
    %5 = vector.load %arg3[%c0_4, %c0_5] : memref<128x80xf32, #tpu.memory_space<vmem>>, vector<128x80xf32>
    %cst = arith.constant dense<0.000000e+00> : vector<16x80xf32>
    %6 = tpu.matmul %4, %5, %cst {dimension_numbers = #tpu.dot_dimension_numbers<[1], [0], [0], [1], [0, 0, 1, 1], [], []>} : vector<16x128xf32>, vector<128x80xf32>, vector<16x80xf32> -> vector<16x80xf32>
    %7 = arith.addf %3, %6 : vector<16x80xf32>
    %c0_6 = arith.constant 0 : index
    %c0_7 = arith.constant 0 : index
    %8 = vector.load %arg6[%c0_6, %c0_7] : memref<16x80xf32, #tpu.memory_space<vmem>>, vector<16x80xf32>
    tpu.vector_store %arg6[%c0_6, %c0_7], %7 {strides = array<i32>} : memref<16x80xf32, #tpu.memory_space<vmem>>, vector<16x80xf32>,
    %c0_i32_8 = arith.constant 0 : i32
    %9 = arith.cmpi eq, %arg1, %c0_i32_8 : i32
    %10 = arith.extui %9 : i1 to i32
    %c0_i32_9 = arith.constant 0 : i32
    %11 = arith.cmpi ne, %10, %c0_i32_9 : i32
    scf.if %11 {
      %c0_10 = arith.constant 0 : index
      %c0_11 = arith.constant 0 : index
      %12 = vector.load %arg6[%c0_10, %c0_11] : memref<16x80xf32, #tpu.memory_space<vmem>>, vector<16x80xf32>
      %c0_12 = arith.constant 0 : index
      %c0_13 = arith.constant 0 : index
      %13 = vector.load %arg4[%c0_12, %c0_13] : memref<1x80xf32, #tpu.memory_space<vmem>>, vector<1x80xf32>
      %14 = vector.broadcast %13 : vector<1x80xf32> to vector<16x80xf32>
      %15 = arith.addf %12, %14 : vector<16x80xf32>
      %c0_14 = arith.constant 0 : index
      %c0_15 = arith.constant 0 : index
      %16 = vector.load %arg5[%c0_14, %c0_15] : memref<16x80xf32, #tpu.memory_space<vmem>>, vector<16x80xf32>
      tpu.vector_store %arg5[%c0_14, %c0_15], %15 {strides = array<i32>} : memref<16x80xf32, #tpu.memory_space<vmem>>, vector<16x80xf32>,
    } else {
    }
    return
  }
  func.func @transform_0(%arg0: i32, %arg1: i32) -> (i32, i32) {
    %c0_i32 = arith.constant 0 : i32
    return %arg0, %arg1 : i32, i32
  }
  func.func @transform_1(%arg0: i32, %arg1: i32) -> (i32, i32) {
    %c0_i32 = arith.constant 0 : i32
    %c0_i32_0 = arith.constant 0 : i32
    return %arg1, %c0_i32 : i32, i32
  }
  func.func @transform_2(%arg0: i32, %arg1: i32) -> (i32, i32) {
    %c0_i32 = arith.constant 0 : i32
    %c0_i32_0 = arith.constant 0 : i32
    %c0_i32_1 = arith.constant 0 : i32
    return %c0_i32, %c0_i32_0 : i32, i32
  }
  func.func @transform_3(%arg0: i32, %arg1: i32) -> (i32, i32) {
    %c0_i32 = arith.constant 0 : i32
    %c0_i32_0 = arith.constant 0 : i32
    return %arg0, %c0_i32 : i32, i32
  }
}

module attributes {stable_mosaic.version = 11 : i64} {
  func.func @kernel(%arg0: i32, %arg1: memref<5x128xf32, #tpu.memory_space<vmem>>, %arg2: memref<5x128xf32, #tpu.memory_space<vmem>>, %arg3: memref<5x8x128xf32, #tpu.memory_space<vmem>>, %arg4: memref<5x8x128xf32, #tpu.memory_space<vmem>>, %arg5: memref<5x128xf32, #tpu.memory_space<vmem>>, %arg6: memref<8x128xf32, #tpu.memory_space<vmem>>, %arg7: memref<1x128xf32, #tpu.memory_space<vmem>>, %arg8: memref<64x4xf32, #tpu.memory_space<vmem>>, %arg9: memref<1x4xf32, #tpu.memory_space<vmem>>, %arg10: memref<2x5x4xf32, #tpu.memory_space<vmem>>) attributes {dimension_semantics = [#tpu.dimension_semantics<arbitrary>], iteration_bounds = array<i64: 1>, scalar_prefetch = 0 : i64, scratch_operands = 0 : i64, tpu.core_type = #tpu.core_type<tc>, window_params = [{pipeline_mode = #tpu.pipeline_mode<synchronous>, transform_indices = @transform_0, window_bounds = array<i64: 5, 128>}, {pipeline_mode = #tpu.pipeline_mode<synchronous>, transform_indices = @transform_1, window_bounds = array<i64: 5, 128>}, {pipeline_mode = #tpu.pipeline_mode<synchronous>, transform_indices = @transform_2, window_bounds = array<i64: 5, 8, 128>}, {pipeline_mode = #tpu.pipeline_mode<synchronous>, transform_indices = @transform_3, window_bounds = array<i64: 5, 8, 128>}, {pipeline_mode = #tpu.pipeline_mode<synchronous>, transform_indices = @transform_4, window_bounds = array<i64: 5, 128>}, {pipeline_mode = #tpu.pipeline_mode<synchronous>, transform_indices = @transform_5, window_bounds = array<i64: 8, 128>}, {pipeline_mode = #tpu.pipeline_mode<synchronous>, transform_indices = @transform_6, window_bounds = array<i64: 1, 128>}, {pipeline_mode = #tpu.pipeline_mode<synchronous>, transform_indices = @transform_7, window_bounds = array<i64: 64, 4>}, {pipeline_mode = #tpu.pipeline_mode<synchronous>, transform_indices = @transform_8, window_bounds = array<i64: 1, 4>}, {pipeline_mode = #tpu.pipeline_mode<synchronous>, transform_indices = @transform_9, window_bounds = array<i64: 2, 5, 4>}]} {
    %c0 = arith.constant 0 : index
    %c0_0 = arith.constant 0 : index
    %0 = vector.load %arg1[%c0, %c0_0] : memref<5x128xf32, #tpu.memory_space<vmem>>, vector<5x128xf32>
    %c0_1 = arith.constant 0 : index
    %c0_2 = arith.constant 0 : index
    %1 = vector.load %arg2[%c0_1, %c0_2] : memref<5x128xf32, #tpu.memory_space<vmem>>, vector<5x128xf32>
    %cst = arith.constant 0.000000e+00 : f32
    %2 = vector.broadcast %cst : f32 to vector<5x128xf32>
    %3 = arith.maximumf %1, %2 : vector<5x128xf32>
    %4 = math.absf %1 : vector<5x128xf32>
    %cst_3 = arith.constant 0.000000e+00 : f32
    %5 = vector.broadcast %cst_3 : f32 to vector<5x128xf32>
    %6 = arith.subf %5, %4 : vector<5x128xf32>
    %7 = math.exp %6 : vector<5x128xf32>
    %cst_4 = arith.constant 1.000000e+00 : f32
    %8 = vector.broadcast %cst_4 : f32 to vector<5x128xf32>
    %9 = arith.addf %8, %7 : vector<5x128xf32>
    %10 = math.log %9 : vector<5x128xf32>
    %11 = arith.addf %3, %10 : vector<5x128xf32>
    %c0_5 = arith.constant 0 : index
    %c0_6 = arith.constant 0 : index
    %12 = vector.load %arg5[%c0_5, %c0_6] : memref<5x128xf32, #tpu.memory_space<vmem>>, vector<5x128xf32>
    %cst_7 = arith.constant 0.000000e+00 : f32
    %13 = vector.broadcast %cst_7 : f32 to vector<5x128xf32>
    %14 = arith.subf %13, %12 : vector<5x128xf32>
    %15 = math.exp %14 : vector<5x128xf32>
    %cst_8 = arith.constant 1.000000e+00 : f32
    %16 = vector.broadcast %cst_8 : f32 to vector<5x128xf32>
    %17 = arith.addf %16, %15 : vector<5x128xf32>
    %cst_9 = arith.constant 1.000000e+00 : f32
    %18 = vector.broadcast %cst_9 : f32 to vector<5x128xf32>
    %19 = arith.divf %18, %17 : vector<5x128xf32>
    %20 = arith.mulf %12, %19 : vector<5x128xf32>
    %c0_10 = arith.constant 0 : index
    %c0_11 = arith.constant 0 : index
    %21 = vector.load %arg6[%c0_10, %c0_11] : memref<8x128xf32, #tpu.memory_space<vmem>>, vector<8x128xf32>
    %c0_12 = arith.constant 0 : index
    %c0_13 = arith.constant 0 : index
    %22 = vector.load %arg7[%c0_12, %c0_13] : memref<1x128xf32, #tpu.memory_space<vmem>>, vector<1x128xf32>
    %23 = arith.mulf %11, %0 : vector<5x128xf32>
    %cst_14 = arith.constant 0.000000e+00 : f32
    %24 = vector.broadcast %cst_14 : f32 to vector<8x128xf32>
    %25 = vector.extract_strided_slice %11 {offsets = [0, 0], sizes = [1, 128], strides = [1, 1]} : vector<5x128xf32> to vector<1x128xf32>
    %26 = vector.broadcast %25 : vector<1x128xf32> to vector<8x128xf32>
    %27 = arith.mulf %26, %21 : vector<8x128xf32>
    %28 = math.exp %27 : vector<8x128xf32>
    %29 = arith.mulf %28, %24 : vector<8x128xf32>
    %c0_15 = arith.constant 0 : index
    %c0_16 = arith.constant 0 : index
    %c0_17 = arith.constant 0 : index
    %30 = vector.load %arg3[%c0_15, %c0_16, %c0_17] : memref<5x8x128xf32, #tpu.memory_space<vmem>>, vector<1x8x128xf32>
    %31 = vector.shape_cast %30 : vector<1x8x128xf32> to vector<8x128xf32>
    %32 = vector.extract_strided_slice %23 {offsets = [0, 0], sizes = [1, 128], strides = [1, 1]} : vector<5x128xf32> to vector<1x128xf32>
    %33 = vector.broadcast %32 : vector<1x128xf32> to vector<8x128xf32>
    %34 = arith.mulf %31, %33 : vector<8x128xf32>
    %35 = arith.addf %29, %34 : vector<8x128xf32>
    %c0_18 = arith.constant 0 : index
    %c0_19 = arith.constant 0 : index
    %c0_20 = arith.constant 0 : index
    %36 = vector.load %arg4[%c0_18, %c0_19, %c0_20] : memref<5x8x128xf32, #tpu.memory_space<vmem>>, vector<1x8x128xf32>
    %37 = vector.shape_cast %36 : vector<1x8x128xf32> to vector<8x128xf32>
    %38 = arith.mulf %37, %35 : vector<8x128xf32>
    %cst_21 = arith.constant dense<0.000000e+00> : vector<128xf32>
    %39 = vector.multi_reduction <add>, %38, %cst_21 [0] : vector<8x128xf32> to vector<128xf32>
    %40 = vector.shape_cast %39 : vector<128xf32> to vector<1x128xf32>
    %41 = vector.extract_strided_slice %0 {offsets = [0, 0], sizes = [1, 128], strides = [1, 1]} : vector<5x128xf32> to vector<1x128xf32>
    %42 = arith.mulf %22, %41 : vector<1x128xf32>
    %43 = arith.addf %40, %42 : vector<1x128xf32>
    %44 = vector.extract_strided_slice %11 {offsets = [1, 0], sizes = [1, 128], strides = [1, 1]} : vector<5x128xf32> to vector<1x128xf32>
    %45 = vector.broadcast %44 : vector<1x128xf32> to vector<8x128xf32>
    %46 = arith.mulf %45, %21 : vector<8x128xf32>
    %47 = math.exp %46 : vector<8x128xf32>
    %48 = arith.mulf %47, %35 : vector<8x128xf32>
    %c1 = arith.constant 1 : index
    %c0_22 = arith.constant 0 : index
    %c0_23 = arith.constant 0 : index
    %49 = vector.load %arg3[%c1, %c0_22, %c0_23] : memref<5x8x128xf32, #tpu.memory_space<vmem>>, vector<1x8x128xf32>
    %50 = vector.shape_cast %49 : vector<1x8x128xf32> to vector<8x128xf32>
    %51 = vector.extract_strided_slice %23 {offsets = [1, 0], sizes = [1, 128], strides = [1, 1]} : vector<5x128xf32> to vector<1x128xf32>
    %52 = vector.broadcast %51 : vector<1x128xf32> to vector<8x128xf32>
    %53 = arith.mulf %50, %52 : vector<8x128xf32>
    %54 = arith.addf %48, %53 : vector<8x128xf32>
    %c1_24 = arith.constant 1 : index
    %c0_25 = arith.constant 0 : index
    %c0_26 = arith.constant 0 : index
    %55 = vector.load %arg4[%c1_24, %c0_25, %c0_26] : memref<5x8x128xf32, #tpu.memory_space<vmem>>, vector<1x8x128xf32>
    %56 = vector.shape_cast %55 : vector<1x8x128xf32> to vector<8x128xf32>
    %57 = arith.mulf %56, %54 : vector<8x128xf32>
    %cst_27 = arith.constant dense<0.000000e+00> : vector<128xf32>
    %58 = vector.multi_reduction <add>, %57, %cst_27 [0] : vector<8x128xf32> to vector<128xf32>
    %59 = vector.shape_cast %58 : vector<128xf32> to vector<1x128xf32>
    %60 = vector.extract_strided_slice %0 {offsets = [1, 0], sizes = [1, 128], strides = [1, 1]} : vector<5x128xf32> to vector<1x128xf32>
    %61 = arith.mulf %22, %60 : vector<1x128xf32>
    %62 = arith.addf %59, %61 : vector<1x128xf32>
    %63 = vector.extract_strided_slice %11 {offsets = [2, 0], sizes = [1, 128], strides = [1, 1]} : vector<5x128xf32> to vector<1x128xf32>
    %64 = vector.broadcast %63 : vector<1x128xf32> to vector<8x128xf32>
    %65 = arith.mulf %64, %21 : vector<8x128xf32>
    %66 = math.exp %65 : vector<8x128xf32>
    %67 = arith.mulf %66, %54 : vector<8x128xf32>
    %c2 = arith.constant 2 : index
    %c0_28 = arith.constant 0 : index
    %c0_29 = arith.constant 0 : index
    %68 = vector.load %arg3[%c2, %c0_28, %c0_29] : memref<5x8x128xf32, #tpu.memory_space<vmem>>, vector<1x8x128xf32>
    %69 = vector.shape_cast %68 : vector<1x8x128xf32> to vector<8x128xf32>
    %70 = vector.extract_strided_slice %23 {offsets = [2, 0], sizes = [1, 128], strides = [1, 1]} : vector<5x128xf32> to vector<1x128xf32>
    %71 = vector.broadcast %70 : vector<1x128xf32> to vector<8x128xf32>
    %72 = arith.mulf %69, %71 : vector<8x128xf32>
    %73 = arith.addf %67, %72 : vector<8x128xf32>
    %c2_30 = arith.constant 2 : index
    %c0_31 = arith.constant 0 : index
    %c0_32 = arith.constant 0 : index
    %74 = vector.load %arg4[%c2_30, %c0_31, %c0_32] : memref<5x8x128xf32, #tpu.memory_space<vmem>>, vector<1x8x128xf32>
    %75 = vector.shape_cast %74 : vector<1x8x128xf32> to vector<8x128xf32>
    %76 = arith.mulf %75, %73 : vector<8x128xf32>
    %cst_33 = arith.constant dense<0.000000e+00> : vector<128xf32>
    %77 = vector.multi_reduction <add>, %76, %cst_33 [0] : vector<8x128xf32> to vector<128xf32>
    %78 = vector.shape_cast %77 : vector<128xf32> to vector<1x128xf32>
    %79 = vector.extract_strided_slice %0 {offsets = [2, 0], sizes = [1, 128], strides = [1, 1]} : vector<5x128xf32> to vector<1x128xf32>
    %80 = arith.mulf %22, %79 : vector<1x128xf32>
    %81 = arith.addf %78, %80 : vector<1x128xf32>
    %82 = vector.extract_strided_slice %11 {offsets = [3, 0], sizes = [1, 128], strides = [1, 1]} : vector<5x128xf32> to vector<1x128xf32>
    %83 = vector.broadcast %82 : vector<1x128xf32> to vector<8x128xf32>
    %84 = arith.mulf %83, %21 : vector<8x128xf32>
    %85 = math.exp %84 : vector<8x128xf32>
    %86 = arith.mulf %85, %73 : vector<8x128xf32>
    %c3 = arith.constant 3 : index
    %c0_34 = arith.constant 0 : index
    %c0_35 = arith.constant 0 : index
    %87 = vector.load %arg3[%c3, %c0_34, %c0_35] : memref<5x8x128xf32, #tpu.memory_space<vmem>>, vector<1x8x128xf32>
    %88 = vector.shape_cast %87 : vector<1x8x128xf32> to vector<8x128xf32>
    %89 = vector.extract_strided_slice %23 {offsets = [3, 0], sizes = [1, 128], strides = [1, 1]} : vector<5x128xf32> to vector<1x128xf32>
    %90 = vector.broadcast %89 : vector<1x128xf32> to vector<8x128xf32>
    %91 = arith.mulf %88, %90 : vector<8x128xf32>
    %92 = arith.addf %86, %91 : vector<8x128xf32>
    %c3_36 = arith.constant 3 : index
    %c0_37 = arith.constant 0 : index
    %c0_38 = arith.constant 0 : index
    %93 = vector.load %arg4[%c3_36, %c0_37, %c0_38] : memref<5x8x128xf32, #tpu.memory_space<vmem>>, vector<1x8x128xf32>
    %94 = vector.shape_cast %93 : vector<1x8x128xf32> to vector<8x128xf32>
    %95 = arith.mulf %94, %92 : vector<8x128xf32>
    %cst_39 = arith.constant dense<0.000000e+00> : vector<128xf32>
    %96 = vector.multi_reduction <add>, %95, %cst_39 [0] : vector<8x128xf32> to vector<128xf32>
    %97 = vector.shape_cast %96 : vector<128xf32> to vector<1x128xf32>
    %98 = vector.extract_strided_slice %0 {offsets = [3, 0], sizes = [1, 128], strides = [1, 1]} : vector<5x128xf32> to vector<1x128xf32>
    %99 = arith.mulf %22, %98 : vector<1x128xf32>
    %100 = arith.addf %97, %99 : vector<1x128xf32>
    %101 = vector.extract_strided_slice %11 {offsets = [4, 0], sizes = [1, 128], strides = [1, 1]} : vector<5x128xf32> to vector<1x128xf32>
    %102 = vector.broadcast %101 : vector<1x128xf32> to vector<8x128xf32>
    %103 = arith.mulf %102, %21 : vector<8x128xf32>
    %104 = math.exp %103 : vector<8x128xf32>
    %105 = arith.mulf %104, %92 : vector<8x128xf32>
    %c4 = arith.constant 4 : index
    %c0_40 = arith.constant 0 : index
    %c0_41 = arith.constant 0 : index
    %106 = vector.load %arg3[%c4, %c0_40, %c0_41] : memref<5x8x128xf32, #tpu.memory_space<vmem>>, vector<1x8x128xf32>
    %107 = vector.shape_cast %106 : vector<1x8x128xf32> to vector<8x128xf32>
    %108 = vector.extract_strided_slice %23 {offsets = [4, 0], sizes = [1, 128], strides = [1, 1]} : vector<5x128xf32> to vector<1x128xf32>
    %109 = vector.broadcast %108 : vector<1x128xf32> to vector<8x128xf32>
    %110 = arith.mulf %107, %109 : vector<8x128xf32>
    %111 = arith.addf %105, %110 : vector<8x128xf32>
    %c4_42 = arith.constant 4 : index
    %c0_43 = arith.constant 0 : index
    %c0_44 = arith.constant 0 : index
    %112 = vector.load %arg4[%c4_42, %c0_43, %c0_44] : memref<5x8x128xf32, #tpu.memory_space<vmem>>, vector<1x8x128xf32>
    %113 = vector.shape_cast %112 : vector<1x8x128xf32> to vector<8x128xf32>
    %114 = arith.mulf %113, %111 : vector<8x128xf32>
    %cst_45 = arith.constant dense<0.000000e+00> : vector<128xf32>
    %115 = vector.multi_reduction <add>, %114, %cst_45 [0] : vector<8x128xf32> to vector<128xf32>
    %116 = vector.shape_cast %115 : vector<128xf32> to vector<1x128xf32>
    %117 = vector.extract_strided_slice %0 {offsets = [4, 0], sizes = [1, 128], strides = [1, 1]} : vector<5x128xf32> to vector<1x128xf32>
    %118 = arith.mulf %22, %117 : vector<1x128xf32>
    %119 = arith.addf %116, %118 : vector<1x128xf32>
    %120 = tpu.concatenate %43, %62, %81, %100, %119 in 0 : vector<1x128xf32>, vector<1x128xf32>, vector<1x128xf32>, vector<1x128xf32>, vector<1x128xf32> -> vector<5x128xf32>
    %121 = arith.mulf %120, %20 : vector<5x128xf32>
    %c0_46 = arith.constant 0 : index
    %c0_47 = arith.constant 0 : index
    %122 = vector.load %arg8[%c0_46, %c0_47] : memref<64x4xf32, #tpu.memory_space<vmem>>, vector<64x4xf32>
    %c0_48 = arith.constant 0 : index
    %c0_49 = arith.constant 0 : index
    %123 = vector.load %arg9[%c0_48, %c0_49] : memref<1x4xf32, #tpu.memory_space<vmem>>, vector<1x4xf32>
    %124 = vector.extract_strided_slice %121 {offsets = [0, 0], sizes = [5, 64], strides = [1, 1]} : vector<5x128xf32> to vector<5x64xf32>
    %cst_50 = arith.constant dense<0.000000e+00> : vector<5x4xf32>
    %125 = tpu.matmul %124, %122, %cst_50 {dimension_numbers = #tpu.dot_dimension_numbers<[1], [0], [0], [1], [0, 0, 1, 1], [], []>} : vector<5x64xf32>, vector<64x4xf32>, vector<5x4xf32> -> vector<5x4xf32>
    %126 = vector.broadcast %123 : vector<1x4xf32> to vector<5x4xf32>
    %127 = arith.addf %125, %126 : vector<5x4xf32>
    %c0_51 = arith.constant 0 : index
    %c0_52 = arith.constant 0 : index
    %c0_53 = arith.constant 0 : index
    %128 = vector.load %arg10[%c0_51, %c0_52, %c0_53] : memref<2x5x4xf32, #tpu.memory_space<vmem>>, vector<1x5x4xf32>
    %129 = vector.shape_cast %128 : vector<1x5x4xf32> to vector<5x4xf32>
    %130 = vector.shape_cast %127 : vector<5x4xf32> to vector<1x5x4xf32>
    tpu.vector_store %arg10[%c0_51, %c0_52, %c0_53], %130 {strides = array<i32>} : memref<2x5x4xf32, #tpu.memory_space<vmem>>, vector<1x5x4xf32>,
    %131 = vector.extract_strided_slice %121 {offsets = [0, 64], sizes = [5, 64], strides = [1, 1]} : vector<5x128xf32> to vector<5x64xf32>
    %cst_54 = arith.constant dense<0.000000e+00> : vector<5x4xf32>
    %132 = tpu.matmul %131, %122, %cst_54 {dimension_numbers = #tpu.dot_dimension_numbers<[1], [0], [0], [1], [0, 0, 1, 1], [], []>} : vector<5x64xf32>, vector<64x4xf32>, vector<5x4xf32> -> vector<5x4xf32>
    %133 = vector.broadcast %123 : vector<1x4xf32> to vector<5x4xf32>
    %134 = arith.addf %132, %133 : vector<5x4xf32>
    %c1_55 = arith.constant 1 : index
    %c0_56 = arith.constant 0 : index
    %c0_57 = arith.constant 0 : index
    %135 = vector.load %arg10[%c1_55, %c0_56, %c0_57] : memref<2x5x4xf32, #tpu.memory_space<vmem>>, vector<1x5x4xf32>
    %136 = vector.shape_cast %135 : vector<1x5x4xf32> to vector<5x4xf32>
    %137 = vector.shape_cast %134 : vector<5x4xf32> to vector<1x5x4xf32>
    tpu.vector_store %arg10[%c1_55, %c0_56, %c0_57], %137 {strides = array<i32>} : memref<2x5x4xf32, #tpu.memory_space<vmem>>, vector<1x5x4xf32>,
    return
  }
  func.func @transform_0(%arg0: i32) -> (i32, i32) {
    %c0_i32 = arith.constant 0 : i32
    %c0_i32_0 = arith.constant 0 : i32
    %c0_i32_1 = arith.constant 0 : i32
    return %c0_i32, %c0_i32_0 : i32, i32
  }
  func.func @transform_1(%arg0: i32) -> (i32, i32) {
    %c0_i32 = arith.constant 0 : i32
    %c0_i32_0 = arith.constant 0 : i32
    %c0_i32_1 = arith.constant 0 : i32
    return %c0_i32, %c0_i32_0 : i32, i32
  }
  func.func @transform_2(%arg0: i32) -> (i32, i32, i32) {
    %c0_i32 = arith.constant 0 : i32
    %c0_i32_0 = arith.constant 0 : i32
    %c0_i32_1 = arith.constant 0 : i32
    %c0_i32_2 = arith.constant 0 : i32
    return %c0_i32, %c0_i32_0, %c0_i32_1 : i32, i32, i32
  }
  func.func @transform_3(%arg0: i32) -> (i32, i32, i32) {
    %c0_i32 = arith.constant 0 : i32
    %c0_i32_0 = arith.constant 0 : i32
    %c0_i32_1 = arith.constant 0 : i32
    %c0_i32_2 = arith.constant 0 : i32
    return %c0_i32, %c0_i32_0, %c0_i32_1 : i32, i32, i32
  }
  func.func @transform_4(%arg0: i32) -> (i32, i32) {
    %c0_i32 = arith.constant 0 : i32
    %c0_i32_0 = arith.constant 0 : i32
    %c0_i32_1 = arith.constant 0 : i32
    return %c0_i32, %c0_i32_0 : i32, i32
  }
  func.func @transform_5(%arg0: i32) -> (i32, i32) {
    %c0_i32 = arith.constant 0 : i32
    %c0_i32_0 = arith.constant 0 : i32
    %c0_i32_1 = arith.constant 0 : i32
    return %c0_i32, %c0_i32_0 : i32, i32
  }
  func.func @transform_6(%arg0: i32) -> (i32, i32) {
    %c0_i32 = arith.constant 0 : i32
    %c0_i32_0 = arith.constant 0 : i32
    %c0_i32_1 = arith.constant 0 : i32
    return %c0_i32, %c0_i32_0 : i32, i32
  }
  func.func @transform_7(%arg0: i32) -> (i32, i32) {
    %c0_i32 = arith.constant 0 : i32
    %c0_i32_0 = arith.constant 0 : i32
    %c0_i32_1 = arith.constant 0 : i32
    return %c0_i32, %c0_i32_0 : i32, i32
  }
  func.func @transform_8(%arg0: i32) -> (i32, i32) {
    %c0_i32 = arith.constant 0 : i32
    %c0_i32_0 = arith.constant 0 : i32
    %c0_i32_1 = arith.constant 0 : i32
    return %c0_i32, %c0_i32_0 : i32, i32
  }
  func.func @transform_9(%arg0: i32) -> (i32, i32, i32) {
    %c0_i32 = arith.constant 0 : i32
    %c0_i32_0 = arith.constant 0 : i32
    %c0_i32_1 = arith.constant 0 : i32
    %c0_i32_2 = arith.constant 0 : i32
    return %c0_i32, %c0_i32_0, %c0_i32_1 : i32, i32, i32
  }
}

</mosaic_0001>

<llo_original>
// kernel: tile.9
$region0: #{tile.9}
  %s0 = inlined_call_operand.vmem [shape: f32[8,2,64], index: 0, kind: input, shape index: {}]
  %s1 = inlined_call_operand.vmem [shape: f32[8,128], index: 1, kind: output, shape index: {}]
  $region1: #{tile.9} parent=0
    #allocation0 [shape = 'u8[32768]{0}', space=vmem, size = 0x8000, scoped, tag = 'scoped mem for input reshape']
    %s3 = sshllo.u32 0, 2
    %s4 = smul.addr 2, 7
    %s5 = scalar_lea.vmem %s0, %s4
    %v6 = vld [vmem:[%s5] sm:%s3]
    %s7 = scalar_lea.vmem [#allocation0], 56
    %8 = vst [vmem:[%s7] sm:%s3] %v6
    %s9 = smul.addr 2, 6
    %s10 = scalar_lea.vmem %s0, %s9
    %v11 = vld [vmem:[%s10] sm:%s3]
    %s12 = scalar_lea.vmem [#allocation0], 48
    %13 = vst [vmem:[%s12] sm:%s3] %v11
    %s14 = smul.addr 2, 5
    %s15 = scalar_lea.vmem %s0, %s14
    %v16 = vld [vmem:[%s15] sm:%s3]
    %s17 = scalar_lea.vmem [#allocation0], 40
    %18 = vst [vmem:[%s17] sm:%s3] %v16
    %s19 = smul.addr 2, 4
    %s20 = scalar_lea.vmem %s0, %s19
    %v21 = vld [vmem:[%s20] sm:%s3]
    %s22 = scalar_lea.vmem [#allocation0], 32
    %23 = vst [vmem:[%s22] sm:%s3] %v21
    %s24 = smul.addr 2, 3
    %s25 = scalar_lea.vmem %s0, %s24
    %v26 = vld [vmem:[%s25] sm:%s3]
    %s27 = scalar_lea.vmem [#allocation0], 24
    %28 = vst [vmem:[%s27] sm:%s3] %v26
    %s29 = smul.addr 2, 2
    %s30 = scalar_lea.vmem %s0, %s29
    %v31 = vld [vmem:[%s30] sm:%s3]
    %s32 = scalar_lea.vmem [#allocation0], 16
    %33 = vst [vmem:[%s32] sm:%s3] %v31
    %s34 = scalar_lea.vmem %s0, 2
    %v35 = vld [vmem:[%s34] sm:%s3]
    %s36 = scalar_lea.vmem [#allocation0], 8
    %37 = vst [vmem:[%s36] sm:%s3] %v35
    %v38 = vld [vmem:[%s0] sm:%s3]
    %39 = vst [vmem:[#allocation0] sm:%s3] %v38
    %v40 = vld [vmem:[#allocation0] ss:$8 sm:$0xf]
    %v41 = vld [vmem:[#allocation0] ss:$8 sm:$0xf0]
    %vm42 = vcmask 1047556
    %v43 = vsel %vm42, %v41, %v40
    %vm44 = vcmask 523264
    %45 = vst.msk [vmem:[%s1] sm:$0xff] %vm44, %v43
    %s46 = scalar_lea.vmem [#allocation0], 1
    %v47 = vld [vmem:[%s46] ss:$8 sm:$0xf]
    %s48 = scalar_lea.vmem [#allocation0], 1
    %v49 = vld [vmem:[%s48] ss:$8 sm:$0xf0]
    %vm50 = vcmask 1047556
    %v51 = vsel %vm50, %v49, %v47
    %52 = vrot.lane.b32.xlu0 %v51, 64
    %v53 = vpop.permute.xlu0 %52
    %vm54 = vcmask 1048064
    %55 = vst.msk [vmem:[%s1] sm:$0xff] %vm54, %v53

// kernel: tile.5
$region0: #{tile.5}
  #allocation0 [shape = 's32[1]{0}', space=sflag, size = 0x4, scoped, tag = 'scoped memory for tile.5']
  %s0 = inlined_call_operand.<no memory space> [shape: f32[], index: 0, kind: input, shape index: {}]
  %s1 = inlined_call_operand.vmem [shape: f32[1,128], index: 1, kind: output, shape index: {}]
  %v2 = vstv %s0
  %3 = vst [vmem:[%s1] sm:$0x1] %v2

// kernel: sub.51
$region0: #{sub.51}
  #allocation0 [shape = 's32[1]{0}', space=sflag, size = 0x4, scoped, tag = 'scoped memory for sub.51']
  %s0 = inlined_call_operand.vmem [shape: f32[2,4], index: 0, kind: input, shape index: {}]
  %s1 = inlined_call_operand.vmem [shape: f32[2,4], index: 1, kind: input, shape index: {}]
  %s2 = inlined_call_operand.vmem [shape: f32[2,4], index: 2, kind: output, shape index: {}]
  %v3 = vld [vmem:[%s0] sm:$0x3]
  %v4 = vld [vmem:[%s1] sm:$0x3]
  %5 = xla_tuple %v3, %v4
  %6 = xla_tuple %5
  %v7 = vsub.f32 %v3, %v4
  %8 = xla_tuple %v7
  %9 = vst [vmem:[%s2] sm:$0x3] %v7

// kernel: custom-call.27
$region0: #{custom-call.27}
  %s0 = inlined_call_operand.vmem [shape: f32[5,2,4], index: 0, kind: output, shape index: {}]

// kernel: custom-call.35
$region0: #{custom-call.35}
  %s0 = inlined_call_operand.vmem [shape: f32[2,4,4], index: 0, kind: input, shape index: {}]
  %s1 = inlined_call_operand.vmem [shape: f32[2,4,4], index: 1, kind: output, shape index: {0}]
  %s2 = inlined_call_operand.hbm [shape: s32[2,4], index: 2, kind: output, shape index: {1}]
  %s3 = inlined_call_operand.vmem [shape: s32[2,4], index: 3, kind: output, shape index: {2}]
  %4 = xla_tuple %s1, %s2, %s3
  $region1: #{custom-call.35} parent=0
    #allocation0 [shape = 'u8[4096]{0}', space=vmem, size = 0x1000, scoped, tag = 'operand span for operand 0']
    #allocation1 [shape = 'u8[4096]{0}', space=vmem, size = 0x1000, scoped, tag = 'packed  for operand 0']
    #allocation2 [shape = 'u8[4096]{0}', space=vmem, size = 0x1000, scoped, tag = 'operand span for operand 1']
    #allocation3 [shape = 'u8[4096]{0}', space=vmem, size = 0x1000, scoped, tag = 'packed  for operand 1']
    #allocation4 [shape = 'u8[4096]{0}', space=vmem, size = 0x1000, scoped, tag = 'operand span for operand 2']
    #allocation5 [shape = 'u8[2048]{0}', space=vmem, size = 0x800, scoped, tag = 'packed  for operand 2']
    #allocation6 [shape = 's32[2]{0}', space=sflag, size = 0x8, scoped, tag = 'scoped memory for custom-call.35']
    #allocation7 [shape = 'u8[4096]{0}', space=vmem, size = 0x1000, scoped, tag = 'operand span for operand 3']
    #allocation8 [shape = 'u8[2048]{0}', space=vmem, size = 0x800, scoped, tag = 'packed  for operand 3']
    %5 = vsyncpa [#allocation6], 0
    %s6 = scalar_lea.sflag [#allocation6], 1
    %7 = vsyncpa %s6, 0
    loop: start=0, step=1, limit=4
    $region2: #{custom-call.35} parent=1 // loop_pre_header
      _
    $region3: #{custom-call.35} parent=1 // loop_header
      %s9 = sphi 0, %s13
      %p10 = scmp.ge.s32.totalorder %s9, 4
      %s21 = sphi 0, %s23
      %s24 = sphi 0, %s21
      %s25 = sphi 0, %s24
      %s41 = sphi 0, %s25
      %s49 = sphi 0, %s51
      %s52 = sphi 0, %s49
      %s53 = sphi 0, %s52
      %s69 = sphi 0, %s53
    $region4: #{custom-call.35} parent=1 // loop_header_branch
      %12 = sbr.rel (%p10) target = $region8
    $region5: #{custom-call.35} parent=1 // loop_body
      %s14 = ssub.s32 %s9, 1
      %s15 = ssub.s32 %s9, 2
      %s16 = sadd.s32 %s9, 1
      %s17 = sshrl.u32 %s9, 3
      %s18 = sshrl.u32 %s16, 3
      %s19 = ssub.s32 %s17, %s18
      %p20 = scmp.eq.s32.totalorder %s19, 0
      %s22 = sadd.s32 %s21, 1
      %s23 = scalar_select %p20, %s21, %s22
      %p26 = pneg %p20
      %p27 = scmp.eq.s32.totalorder %s9, 1
      %p28 = por %p26, %p27
      %p29 = scmp.ne.s32.totalorder %s21, %s24
      %p30 = scmp.eq.s32.totalorder %s9, 0
      %p31 = por %p29, %p30
      %p32 = scmp.ne.s32.totalorder %s21, %s24
      %p33 = scmp.eq.s32.totalorder %s14, 1
      %p34 = por %p32, %p33
      %p35 = scmp.ne.s32.totalorder %s24, %s25
      %p36 = scmp.eq.s32.totalorder %s14, 0
      %p37 = por %p35, %p36
      %p38 = scmp.ne.s32.totalorder %s24, %s25
      %p39 = scmp.eq.s32.totalorder %s15, 1
      %p40 = por %p38, %p39
      %p42 = scmp.ne.s32.totalorder %s25, %s41
      %p43 = scmp.eq.s32.totalorder %s15, 0
      %p44 = por %p42, %p43
      %s45 = sshrl.u32 %s9, 3
      %s46 = sshrl.u32 %s16, 3
      %s47 = ssub.s32 %s45, %s46
      %p48 = scmp.eq.s32.totalorder %s47, 0
      %s50 = sadd.s32 %s49, 1
      %s51 = scalar_select %p48, %s49, %s50
      %p54 = pneg %p48
      %p55 = scmp.eq.s32.totalorder %s9, 1
      %p56 = por %p54, %p55
      %p57 = scmp.ne.s32.totalorder %s49, %s52
      %p58 = scmp.eq.s32.totalorder %s9, 0
      %p59 = por %p57, %p58
      %p60 = scmp.ne.s32.totalorder %s49, %s52
      %p61 = scmp.eq.s32.totalorder %s14, 1
      %p62 = por %p60, %p61
      %p63 = scmp.ne.s32.totalorder %s52, %s53
      %p64 = scmp.eq.s32.totalorder %s14, 0
      %p65 = por %p63, %p64
      %p66 = scmp.ne.s32.totalorder %s52, %s53
      %p67 = scmp.eq.s32.totalorder %s15, 1
      %p68 = por %p66, %p67
      %p70 = scmp.ne.s32.totalorder %s53, %s69
      %p71 = scmp.eq.s32.totalorder %s15, 0
      %p72 = por %p70, %p71
      %p73 = scmp.le.s32.totalorder 1, %s9
      %p74 = scmp.lt.s32.totalorder %s9, 3
      %p75 = pnand %p73, %p74
      %p76 = pneg %p75
      // Predicated region
      $region9: #{custom-call.35} parent=5 // pred_check
        _
      $region10: #{custom-call.35} parent=5 // pred_check_branch
        %78 = sbr.rel (%p75) target = $region12
      $region11: #{custom-call.35} parent=5 // pred_region
        %s79 = ssub.s32 %s9, 1
      $region12: #{custom-call.35} parent=5 // pred_fallthru
        _
      %p80 = scmp.lt.s32.totalorder %s9, 2
      // Predicated region
      $region13: #{custom-call.35} parent=5 // pred_check
        %p81 = pneg %p80
      $region14: #{custom-call.35} parent=5 // pred_check_branch
        %83 = sbr.rel (%p81) target = $region16
      $region15: #{custom-call.35} parent=5 // pred_region
        %s84 = sand.u32 %s9, 1
        %s85 = sand.u32 %s9, 1
        %s86 = smul.addr %s85, 4
        %s87 = scalar_lea.vmem [#allocation1], %s86
        %s88 = smul.addr %s9, 4
        %s89 = scalar_lea.vmem %s0, %s88
        // Predicated region
        $region17: #{custom-call.35} parent=15 // pred_check
          _
        $region18: #{custom-call.35} parent=15 // pred_check_branch
          %91 = sbr.rel (0) target = $region20
        $region19: #{custom-call.35} parent=15 // pred_region
          // Predicated region
          $region21: #{custom-call.35} parent=19 // pred_check
            _
          $region22: #{custom-call.35} parent=19 // pred_check_branch
            %93 = sbr.rel target = $region24
          $region23: #{custom-call.35} parent=19 // pred_region
            // Predicated region
            $region36: #{custom-call.35} parent=23 // pred_check
              _
            $region37: #{custom-call.35} parent=23 // pred_check_branch
              %108 = sbr.rel (0) target = $region39
            $region38: #{custom-call.35} parent=23 // pred_region
              loop: start=0, step=1, limit=1
              $region40: #{custom-call.35} parent=38 // loop_pre_header
                _
              $region41: #{custom-call.35} parent=38 // loop_header
                %s111 = sphi 0, %s115
                %p112 = scmp.ge.s32.totalorder %s111, 1
                %s116 = sphi %s89, %s89
                %s117 = sphi %s87, %s87
              $region42: #{custom-call.35} parent=38 // loop_header_branch
                %114 = sbr.rel (%p112) target = $region46
              $region43: #{custom-call.35} parent=38 // loop_body
                %v118 = vld [vmem:[%s116] sm:$0xf]
                %119 = vst [vmem:[%s117] sm:$0xf] %v118
              $region44: #{custom-call.35} parent=38 // loop_footer
                %s115 = sadd.s32 1, %s111
              $region45: #{custom-call.35} parent=38 // loop_footer_branch
                %110 = sbr.rel target = $region41
              $region46: #{custom-call.35} parent=38 // loop_exit
                _
            $region39: #{custom-call.35} parent=23 // pred_fallthru
              _
          $region24: #{custom-call.35} parent=19 // pred_fallthru
            _
          // Predicated region
          $region25: #{custom-call.35} parent=19 // pred_check
            _
          $region26: #{custom-call.35} parent=19 // pred_check_branch
            %95 = sbr.rel (0) target = $region28
          $region27: #{custom-call.35} parent=19 // pred_region
            loop: start=0, step=1, limit=1
            $region29: #{custom-call.35} parent=27 // loop_pre_header
              _
            $region30: #{custom-call.35} parent=27 // loop_header
              %s98 = sphi 0, %s102
              %p99 = scmp.ge.s32.totalorder %s98, 1
              %s103 = sphi %s89, %s89
              %s104 = sphi %s87, %s87
            $region31: #{custom-call.35} parent=27 // loop_header_branch
              %101 = sbr.rel (%p99) target = $region35
            $region32: #{custom-call.35} parent=27 // loop_body
              %v105 = vld [vmem:[%s103] sm:$0xf]
              %106 = vst [vmem:[%s104] sm:$0xf] %v105
            $region33: #{custom-call.35} parent=27 // loop_footer
              %s102 = sadd.s32 1, %s98
            $region34: #{custom-call.35} parent=27 // loop_footer_branch
              %97 = sbr.rel target = $region30
            $region35: #{custom-call.35} parent=27 // loop_exit
              _
          $region28: #{custom-call.35} parent=19 // pred_fallthru
            _
        $region20: #{custom-call.35} parent=15 // pred_fallthru
          _
        %120 = vnop
      $region16: #{custom-call.35} parent=5 // pred_fallthru
        _
      %p121 = scmp.le.s32.totalorder 1, %s9
      %p122 = scmp.lt.s32.totalorder %s9, 3
      %p123 = pnand %p121, %p122
      %p124 = pneg %p123
      // Predicated region
      $region47: #{custom-call.35} parent=5 // pred_check
        _
      $region48: #{custom-call.35} parent=5 // pred_check_branch
        %126 = sbr.rel (%p123) target = $region50
      $region49: #{custom-call.35} parent=5 // pred_region
        #allocation9 [shape = 's32[4,128]{1,0}', space=vmem, size = 0x1000, scoped, tag = 'scratch for permutations']
        %s127 = ssub.s32 %s9, 1
        %s128 = sand.u32 %s14, 1
        %s129 = sand.u32 %s14, 1
        %s130 = smul.addr %s129, 4
        %s131 = scalar_lea.vmem [#allocation1], %s130
        %s132 = sand.u32 %s14, 1
        %s133 = sand.u32 %s14, 1
        %s134 = smul.addr %s133, 4
        %s135 = scalar_lea.vmem [#allocation1], %s134
        %s136 = sand.u32 %s14, 1
        %s137 = sand.u32 %s14, 1
        %s138 = smul.addr %s137, 4
        %s139 = scalar_lea.vmem [#allocation3], %s138
        %p140 = pneg %p37
        %p141 = pneg %p34
        %s142 = sand.u32 %s24, 1
        %s143 = scalar_lea.sflag [#allocation6], %s142
        %s144 = sand.u32 %s24, 1
        %s145 = smul.addr %s144, 2
        %s146 = scalar_lea.vmem [#allocation5], %s145
        %p147 = pneg %p65
        %p148 = pneg %p62
        %s149 = sand.u32 %s52, 1
        %s150 = sand.u32 %s52, 1
        %s151 = smul.addr %s150, 2
        %s152 = scalar_lea.vmem [#allocation8], %s151
        %s154 = sshllo.u32 0, 4
        %v155 = vld [vmem:[%s135] sm:%s154]
        %156 = vst [vmem:[#allocation0] sm:%s154] %v155
        %s157 = sshrl.u32 %s14, 3
        %s158 = sshrl.u32 %s14, 3
        %v159 = vld [vmem:[#allocation0] sm:$0xff]
        %160 = vst [vmem:[#allocation2] sm:$0xff] %v159
        %s161 = sand.u32 %s14, 7
        %s162 = scalar_lea.vmem [#allocation4], %s161
        %s163 = sand.u32 %s14, 7
        %s164 = scalar_lea.vmem [#allocation7], %s163
        %165 = vst [vmem:[%s162] sm:$0x1] 0
        %v166 = vlaneseq
        %v167 = vshrl.u32 %v166, 7
        %v168 = vmov %v167
        %170 = vst [vmem:[#allocation9] sm:$0xff] %v168
        loop: start=0, step=1, limit=4
        $region52: #{custom-call.35} parent=49 // loop_pre_header
          _
        $region53: #{custom-call.35} parent=49 // loop_header
          %s172 = sphi 0, %s176
          %p173 = scmp.ge.s32.totalorder %s172, 4
        $region54: #{custom-call.35} parent=49 // loop_header_branch
          %175 = sbr.rel (%p173) target = $region58
        $region55: #{custom-call.35} parent=49 // loop_body
          %v177 = vstv %s172
          %v178 = vlaneseq
          %v179 = vshrl.u32 %v178, 7
          %v180 = vmov %v179
          %v181 = vld [vmem:[#allocation2] sm:$0xff]
          %v182 = vand.u32 2147483647, %v181
          %v184 = vstv %s172
          %vm185 = vcmp.ge.s32.totalorder %v180, %v184
          %vm186 = vcmp.lt.s32.totalorder %v180, 4
          %vm187 = vmand %vm185, %vm186
          %vm188 = vcmp.lt.f32.partialorder -inf, %v182
          %vm189 = vmand %vm187, %vm188
          %v190 = vsel %vm189, %v180, %v177
          %v191 = vsel %vm189, %v182, -inf
          %v192 = vrot.slane %v191, 1
          %v193 = vrot.slane %v190, 1
          %vm194 = vcmp.ge.f32.partialorder %v192, %v191
          %v195 = vsel %vm194, %v192, %v191
          %v196 = vsel %vm194, %v193, %v190
          %v197 = vrot.slane %v192, 1
          %v198 = vrot.slane %v193, 1
          %vm199 = vcmp.ge.f32.partialorder %v197, %v195
          %v200 = vsel %vm199, %v197, %v195
          %v201 = vsel %vm199, %v198, %v196
          %v202 = vrot.slane %v197, 1
          %v203 = vrot.slane %v198, 1
          %vm204 = vcmp.ge.f32.partialorder %v202, %v200
          %v205 = vsel %vm204, %v202, %v200
          %v206 = vsel %vm204, %v203, %v201
          %v207 = vrot.slane %v202, 1
          %v208 = vrot.slane %v203, 1
          %vm209 = vcmp.ge.f32.partialorder %v207, %v205
          %v210 = vsel %vm209, %v207, %v205
          %v211 = vsel %vm209, %v208, %v206
          %v212 = vrot.slane %v207, 1
          %v213 = vrot.slane %v208, 1
          %vm214 = vcmp.ge.f32.partialorder %v212, %v210
          %v215 = vsel %vm214, %v212, %v210
          %v216 = vsel %vm214, %v213, %v211
          %v217 = vrot.slane %v212, 1
          %v218 = vrot.slane %v213, 1
          %vm219 = vcmp.ge.f32.partialorder %v217, %v215
          %v220 = vsel %vm219, %v217, %v215
          %v221 = vsel %vm219, %v218, %v216
          %v222 = vrot.slane %v217, 1
          %v223 = vrot.slane %v218, 1
          %vm224 = vcmp.ge.f32.partialorder %v222, %v220
          %v225 = vsel %vm224, %v222, %v220
          %v226 = vsel %vm224, %v223, %v221
          %s227 = ssub.s32 128, %s172
          %228 = vrot.lane.b32.xlu0 %v226, %s227
          %v229 = vpop.permute.xlu0 %228
          %s230 = vtos %v229
          %v231 = vstv %s172
          %v232 = vlaneseq
          %v233 = vand.u32 %v232, 127
          %vm234 = vcmp.eq.s32.totalorder %v233, %v231
          %v235 = vstv %s230
          %v236 = vld [vmem:[%s162] ss:$0 sm:$0xff]
          %v237 = vsel %vm234, %v235, %v236
          %238 = vst [vmem:[%s162] sm:$0x1] %v237
          %s239 = scalar_lea.vmem [#allocation2], %s172
          %s240 = scalar_lea.vmem [#allocation2], %s230
          %v241 = vld [vmem:[%s239] ss:$0 sm:$0xff]
          %v242 = vld [vmem:[%s240] ss:$0 sm:$0xff]
          %243 = vst [vmem:[%s240] sm:$0x1] %v241
          %244 = vst [vmem:[%s239] sm:$0x1] %v242
          %s245 = scalar_lea.vmem [#allocation9], %s172
          %s246 = scalar_lea.vmem [#allocation9], %s230
          %v247 = vld [vmem:[%s245] ss:$0 sm:$0xff]
          %v248 = vld [vmem:[%s246] ss:$0 sm:$0xff]
          %249 = vst [vmem:[%s246] sm:$0x1] %v247
          %250 = vst [vmem:[%s245] sm:$0x1] %v248
          %vm251 = vcmp.ne.f32.partialorder %v242, 0.0
          %vm252 = vmand %vm234, %vm251
          %v253 = vsel %vm252, %v242, 1.0
          %v254 = vlaneseq
          %v255 = vand.u32 %v254, 127
          %v256 = vstv %s172
          %vm257 = vcmp.gt.s32.totalorder %v255, %v256
          %v258 = vsel %vm257, %v242, 0.0
          %v259 = vlaneseq
          %v260 = vshrl.u32 %v259, 7
          %v261 = vmov %v260
          %v262 = vld [vmem:[#allocation2] sm:$0xff]
          %v264 = vstv %s172
          %vm265 = vcmp.gt.s32.totalorder %v261, %v264
          %v266 = vsel %vm265, %v253, 1.0
          %v267 = vrcp.pop %v266
          %v268 = vmul.f32 %v262, %v267
          %vm269 = vmand %vm265, %vm234
          %v270 = vsel %vm269, %v268, 0.0
          %271 = vadd.xlane.f32.xlu0 %v270
          %v272 = vpop.xlane.xlu0 %271
          %v273 = vmul.f32 %v272, %v258
          %v274 = vsub.f32 %v268, %v273
          %275 = vst [vmem:[#allocation2] sm:$0xff] %v274
        $region56: #{custom-call.35} parent=49 // loop_footer
          %s176 = sadd.s32 1, %s172
        $region57: #{custom-call.35} parent=49 // loop_footer_branch
          %171 = sbr.rel target = $region53
        $region58: #{custom-call.35} parent=49 // loop_exit
          _
        %v276 = vld [vmem:[#allocation9] sm:$0xff]
        %s277 = scalar_lea.vmem [#allocation9], 8
        %s278 = scalar_lea.vmem [#allocation9], 16
        %s279 = scalar_lea.vmem [#allocation9], 24
        %s280 = scalar_lea.vmem [#allocation9], 32
        %s281 = scalar_lea.vmem [#allocation9], 40
        %s282 = scalar_lea.vmem [#allocation9], 48
        %s283 = scalar_lea.vmem [#allocation9], 56
        %s284 = scalar_lea.vmem [#allocation9], 64
        %s285 = scalar_lea.vmem [#allocation9], 72
        %s286 = scalar_lea.vmem [#allocation9], 80
        %s287 = scalar_lea.vmem [#allocation9], 88
        %s288 = scalar_lea.vmem [#allocation9], 96
        %s289 = scalar_lea.vmem [#allocation9], 104
        %s290 = scalar_lea.vmem [#allocation9], 112
        %s291 = scalar_lea.vmem [#allocation9], 120
        %292 = vxpose.xlu0.b32.start [1/16] %v276, 128
        %293 = vxpose.xlu0.b32.cont [2/16] 0, 128
        %294 = vxpose.xlu0.b32.cont [3/16] 0, 128
        %295 = vxpose.xlu0.b32.cont [4/16] 0, 128
        %296 = vxpose.xlu0.b32.cont [5/16] 0, 128
        %297 = vxpose.xlu0.b32.cont [6/16] 0, 128
        %298 = vxpose.xlu0.b32.cont [7/16] 0, 128
        %299 = vxpose.xlu0.b32.cont [8/16] 0, 128
        %300 = vxpose.xlu0.b32.cont [9/16] 0, 128
        %301 = vxpose.xlu0.b32.cont [10/16] 0, 128
        %302 = vxpose.xlu0.b32.cont [11/16] 0, 128
        %303 = vxpose.xlu0.b32.cont [12/16] 0, 128
        %304 = vxpose.xlu0.b32.cont [13/16] 0, 128
        %305 = vxpose.xlu0.b32.cont [14/16] 0, 128
        %306 = vxpose.xlu0.b32.cont [15/16] 0, 128
        %307 = vxpose.xlu0.b32.end [16/16] 0, 128
        %v308 = vpop.trf.xlu0
        %v309 = vpop.trf.xlu0
        %v310 = vpop.trf.xlu0
        %v311 = vpop.trf.xlu0
        %v312 = vpop.trf.xlu0
        %v313 = vpop.trf.xlu0
        %v314 = vpop.trf.xlu0
        %v315 = vpop.trf.xlu0
        %v316 = vpop.trf.xlu0
        %v317 = vpop.trf.xlu0
        %v318 = vpop.trf.xlu0
        %v319 = vpop.trf.xlu0
        %v320 = vpop.trf.xlu0
        %v321 = vpop.trf.xlu0
        %v322 = vpop.trf.xlu0
        %v323 = vpop.trf.xlu0
        %324 = vst [vmem:[%s164] sm:$0x1] %v308
        %s326 = sshllo.u32 0, 4
        %v328 = vld [vmem:[#allocation2] sm:%s326]
        %s329 = sshllo.u32 0, 4
        %330 = vst [vmem:[%s139] sm:%s329] %v328
        %s332 = sshllo.u32 0, 2
        %v334 = vld [vmem:[#allocation4] sm:%s332]
        %s335 = sshllo.u32 0, 2
        %336 = vst [vmem:[%s146] sm:%s335] %v334
        %s338 = sshllo.u32 0, 2
        %v340 = vld [vmem:[#allocation7] sm:%s338]
        %s341 = sshllo.u32 0, 2
        %342 = vst [vmem:[%s152] sm:%s341] %v340
        %s343 = sand.u32 %s14, 1
        %s344 = sand.u32 %s14, 1
        %s345 = smul.addr %s344, 4
        %s346 = scalar_lea.vmem [#allocation3], %s345
        %s347 = sand.u32 %s24, 1
        %s348 = scalar_lea.sflag [#allocation6], %s347
        %s349 = sand.u32 %s24, 1
        %s350 = smul.addr %s349, 2
        %s351 = scalar_lea.vmem [#allocation5], %s350
        %s352 = sand.u32 %s52, 1
        %s353 = sand.u32 %s52, 1
        %s354 = smul.addr %s353, 2
        %s355 = scalar_lea.vmem [#allocation8], %s354
        %s356 = smul.addr %s14, 4
        %s357 = scalar_lea.vmem %s1, %s356
        // Predicated region
        $region59: #{custom-call.35} parent=49 // pred_check
          _
        $region60: #{custom-call.35} parent=49 // pred_check_branch
          %359 = sbr.rel (0) target = $region62
        $region61: #{custom-call.35} parent=49 // pred_region
          // Predicated region
          $region63: #{custom-call.35} parent=61 // pred_check
            _
          $region64: #{custom-call.35} parent=61 // pred_check_branch
            %361 = sbr.rel target = $region66
          $region65: #{custom-call.35} parent=61 // pred_region
            // Predicated region
            $region78: #{custom-call.35} parent=65 // pred_check
              _
            $region79: #{custom-call.35} parent=65 // pred_check_branch
              %376 = sbr.rel (0) target = $region81
            $region80: #{custom-call.35} parent=65 // pred_region
              loop: start=0, step=1, limit=1
              $region82: #{custom-call.35} parent=80 // loop_pre_header
                _
              $region83: #{custom-call.35} parent=80 // loop_header
                %s379 = sphi 0, %s383
                %p380 = scmp.ge.s32.totalorder %s379, 1
                %s384 = sphi %s346, %s346
                %s385 = sphi %s357, %s357
              $region84: #{custom-call.35} parent=80 // loop_header_branch
                %382 = sbr.rel (%p380) target = $region88
              $region85: #{custom-call.35} parent=80 // loop_body
                %v386 = vld [vmem:[%s384] sm:$0xf]
                %387 = vst [vmem:[%s385] sm:$0xf] %v386
              $region86: #{custom-call.35} parent=80 // loop_footer
                %s383 = sadd.s32 1, %s379
              $region87: #{custom-call.35} parent=80 // loop_footer_branch
                %378 = sbr.rel target = $region83
              $region88: #{custom-call.35} parent=80 // loop_exit
                _
            $region81: #{custom-call.35} parent=65 // pred_fallthru
              _
          $region66: #{custom-call.35} parent=61 // pred_fallthru
            _
          // Predicated region
          $region67: #{custom-call.35} parent=61 // pred_check
            _
          $region68: #{custom-call.35} parent=61 // pred_check_branch
            %363 = sbr.rel (0) target = $region70
          $region69: #{custom-call.35} parent=61 // pred_region
            loop: start=0, step=1, limit=1
            $region71: #{custom-call.35} parent=69 // loop_pre_header
              _
            $region72: #{custom-call.35} parent=69 // loop_header
              %s366 = sphi 0, %s370
              %p367 = scmp.ge.s32.totalorder %s366, 1
              %s371 = sphi %s346, %s346
              %s372 = sphi %s357, %s357
            $region73: #{custom-call.35} parent=69 // loop_header_branch
              %369 = sbr.rel (%p367) target = $region77
            $region74: #{custom-call.35} parent=69 // loop_body
              %v373 = vld [vmem:[%s371] sm:$0xf]
              %374 = vst [vmem:[%s372] sm:$0xf] %v373
            $region75: #{custom-call.35} parent=69 // loop_footer
              %s370 = sadd.s32 1, %s366
            $region76: #{custom-call.35} parent=69 // loop_footer_branch
              %365 = sbr.rel target = $region72
            $region77: #{custom-call.35} parent=69 // loop_exit
              _
          $region70: #{custom-call.35} parent=61 // pred_fallthru
            _
        $region62: #{custom-call.35} parent=49 // pred_fallthru
          _
        %388 = vnop
        // Predicated region
        $region89: #{custom-call.35} parent=49 // pred_check
          %p389 = pneg %p34
        $region90: #{custom-call.35} parent=49 // pred_check_branch
          %391 = sbr.rel (%p389) target = $region92
        $region91: #{custom-call.35} parent=49 // pred_region
          %s392 = sshrl.u32 %s14, 3
          %s394 = ssub.s32 32, 32
          %395 = vsyncadd %s348, %s394
          %s396 = smul.addr %s392, 32
          %s397 = scalar_lea.hbm %s2, %s396
          %s399 = sshll.u32 %s351, 4
          %s400 = int_to_ptr.vmem [resolvable:$true] %s399
          %402 = dma.vmem_to_hbm [thread:$0]  %s400, 32, %s397, %s348
        $region92: #{custom-call.35} parent=49 // pred_fallthru
          _
        // Predicated region
        $region93: #{custom-call.35} parent=49 // pred_check
          %p403 = pneg %p62
        $region94: #{custom-call.35} parent=49 // pred_check_branch
          %405 = sbr.rel (%p403) target = $region96
        $region95: #{custom-call.35} parent=49 // pred_region
          %s406 = sshrl.u32 %s14, 3
          %s407 = smul.addr %s406, 2
          %s408 = scalar_lea.vmem %s3, %s407
          // Predicated region
          $region97: #{custom-call.35} parent=95 // pred_check
            _
          $region98: #{custom-call.35} parent=95 // pred_check_branch
            %410 = sbr.rel (0) target = $region100
          $region99: #{custom-call.35} parent=95 // pred_region
            // Predicated region
            $region101: #{custom-call.35} parent=99 // pred_check
              _
            $region102: #{custom-call.35} parent=99 // pred_check_branch
              %412 = sbr.rel target = $region104
            $region103: #{custom-call.35} parent=99 // pred_region
              // Predicated region
              $region116: #{custom-call.35} parent=103 // pred_check
                _
              $region117: #{custom-call.35} parent=103 // pred_check_branch
                %427 = sbr.rel (0) target = $region119
              $region118: #{custom-call.35} parent=103 // pred_region
                loop: start=0, step=1, limit=1
                $region120: #{custom-call.35} parent=118 // loop_pre_header
                  _
                $region121: #{custom-call.35} parent=118 // loop_header
                  %s430 = sphi 0, %s434
                  %p431 = scmp.ge.s32.totalorder %s430, 1
                  %s435 = sphi %s355, %s355
                  %s436 = sphi %s408, %s408
                $region122: #{custom-call.35} parent=118 // loop_header_branch
                  %433 = sbr.rel (%p431) target = $region126
                $region123: #{custom-call.35} parent=118 // loop_body
                  %v437 = vld [vmem:[%s435] sm:$0x3]
                  %438 = vst [vmem:[%s436] sm:$0x3] %v437
                $region124: #{custom-call.35} parent=118 // loop_footer
                  %s434 = sadd.s32 1, %s430
                $region125: #{custom-call.35} parent=118 // loop_footer_branch
                  %429 = sbr.rel target = $region121
                $region126: #{custom-call.35} parent=118 // loop_exit
                  _
              $region119: #{custom-call.35} parent=103 // pred_fallthru
                _
            $region104: #{custom-call.35} parent=99 // pred_fallthru
              _
            // Predicated region
            $region105: #{custom-call.35} parent=99 // pred_check
              _
            $region106: #{custom-call.35} parent=99 // pred_check_branch
              %414 = sbr.rel (0) target = $region108
            $region107: #{custom-call.35} parent=99 // pred_region
              loop: start=0, step=1, limit=1
              $region109: #{custom-call.35} parent=107 // loop_pre_header
                _
              $region110: #{custom-call.35} parent=107 // loop_header
                %s417 = sphi 0, %s421
                %p418 = scmp.ge.s32.totalorder %s417, 1
                %s422 = sphi %s355, %s355
                %s423 = sphi %s408, %s408
              $region111: #{custom-call.35} parent=107 // loop_header_branch
                %420 = sbr.rel (%p418) target = $region115
              $region112: #{custom-call.35} parent=107 // loop_body
                %v424 = vld [vmem:[%s422] sm:$0x3]
                %425 = vst [vmem:[%s423] sm:$0x3] %v424
              $region113: #{custom-call.35} parent=107 // loop_footer
                %s421 = sadd.s32 1, %s417
              $region114: #{custom-call.35} parent=107 // loop_footer_branch
                %416 = sbr.rel target = $region110
              $region115: #{custom-call.35} parent=107 // loop_exit
                _
            $region108: #{custom-call.35} parent=99 // pred_fallthru
              _
          $region100: #{custom-call.35} parent=95 // pred_fallthru
            _
          %439 = vnop
        $region96: #{custom-call.35} parent=49 // pred_fallthru
          _
      $region50: #{custom-call.35} parent=5 // pred_fallthru
        _
      %p440 = scmp.le.s32.totalorder 2, %s9
      // Predicated region
      $region127: #{custom-call.35} parent=5 // pred_check
        %p441 = pneg %p440
      $region128: #{custom-call.35} parent=5 // pred_check_branch
        %443 = sbr.rel (%p441) target = $region130
      $region129: #{custom-call.35} parent=5 // pred_region
        %s444 = ssub.s32 %s9, 2
        %s445 = sand.u32 %s15, 1
        %s446 = sand.u32 %s15, 1
        %s447 = smul.addr %s446, 4
        %s448 = scalar_lea.vmem [#allocation3], %s447
        // Predicated region
        $region131: #{custom-call.35} parent=129 // pred_check
          %p449 = pneg %p40
        $region132: #{custom-call.35} parent=129 // pred_check_branch
          %451 = sbr.rel (%p449) target = $region134
        $region133: #{custom-call.35} parent=129 // pred_region
          %s452 = sand.u32 %s25, 1
          %s453 = scalar_lea.sflag [#allocation6], %s452
          %s454 = sand.u32 %s25, 1
          %s455 = smul.addr %s454, 2
          %s456 = scalar_lea.vmem [#allocation5], %s455
          %457 = dma.done %s453, 32
        $region134: #{custom-call.35} parent=129 // pred_fallthru
          _
        // Predicated region
        $region135: #{custom-call.35} parent=129 // pred_check
          %p458 = pneg %p68
        $region136: #{custom-call.35} parent=129 // pred_check_branch
          %460 = sbr.rel (%p458) target = $region138
        $region137: #{custom-call.35} parent=129 // pred_region
          %s461 = sand.u32 %s53, 1
          %s462 = sand.u32 %s53, 1
          %s463 = smul.addr %s462, 2
          %s464 = scalar_lea.vmem [#allocation8], %s463
        $region138: #{custom-call.35} parent=129 // pred_fallthru
          _
      $region130: #{custom-call.35} parent=5 // pred_fallthru
        _
    $region6: #{custom-call.35} parent=1 // loop_footer
      %s13 = sadd.s32 1, %s9
    $region7: #{custom-call.35} parent=1 // loop_footer_branch
      %8 = sbr.rel target = $region3
    $region8: #{custom-call.35} parent=1 // loop_exit
      _
    %465 = vsyncpa [#allocation6], 1
    %s466 = scalar_lea.sflag [#allocation6], 1
    %467 = vsyncpa %s466, 1

// kernel: custom-call.36
$region0: #{custom-call.36}
  %s0 = inlined_call_operand.vmem [shape: f32[2,1,4,4], index: 0, kind: input, shape index: {}]
  %s1 = inlined_call_operand.vmem [shape: f32[2,1,4,4], index: 1, kind: output, shape index: {}]
  $region1: #{custom-call.36} parent=0
    #allocation0 [shape = 'u8[4096]{0}', space=vmem, size = 0x1000, scoped, tag = 'operand span for operand 0']
    #allocation1 [shape = 'u8[4096]{0}', space=vmem, size = 0x1000, scoped, tag = 'packed  for operand 0']
    #allocation2 [shape = 'u8[4096]{0}', space=vmem, size = 0x1000, scoped, tag = 'operand span for operand 1']
    #allocation3 [shape = 'u8[4096]{0}', space=vmem, size = 0x1000, scoped, tag = 'packed  for operand 1']
    loop: start=0, step=1, limit=4
    $region2: #{custom-call.36} parent=1 // loop_pre_header
      _
    $region3: #{custom-call.36} parent=1 // loop_header
      %s3 = sphi 0, %s7
      %p4 = scmp.ge.s32.totalorder %s3, 4
      %s10 = sphi 0, %s36
      %s11 = sphi 0, %s32
      %s12 = sphi 0, %s28
      %s13 = sphi 0, %s24
      %s14 = sphi 0, %s10
      %s15 = sphi 0, %s11
      %s16 = sphi 0, %s12
      %s17 = sphi 0, %s13
      %s18 = sphi 0, %s14
      %s19 = sphi 0, %s15
      %s20 = sphi 0, %s16
      %s21 = sphi 0, %s17
    $region4: #{custom-call.36} parent=1 // loop_header_branch
      %6 = sbr.rel (%p4) target = $region8
    $region5: #{custom-call.36} parent=1 // loop_body
      %s8 = ssub.s32 %s3, 1
      %s9 = ssub.s32 %s3, 2
      %s22 = sadd.s32 1, %s13
      %p23 = scmp.ge.s32.totalorder %s22, 1
      %s24 = scalar_select %p23, 0, %s22
      %s25 = sadd.s32 1, %s12
      %s26 = scalar_select %p23, %s25, %s12
      %p27 = scmp.ge.s32.totalorder %s26, 1
      %s28 = scalar_select %p27, 0, %s26
      %s29 = sadd.s32 1, %s11
      %s30 = scalar_select %p27, %s29, %s11
      %p31 = scmp.ge.s32.totalorder %s30, 1
      %s32 = scalar_select %p31, 0, %s30
      %s33 = sadd.s32 1, %s10
      %s34 = scalar_select %p31, %s33, %s10
      %p35 = scmp.ge.s32.totalorder %s34, 2
      %s36 = scalar_select %p35, 0, %s34
      %p37 = scmp.le.s32.totalorder 1, %s3
      %p38 = scmp.lt.s32.totalorder %s3, 3
      %p39 = pnand %p37, %p38
      %p40 = pneg %p39
      // Predicated region
      $region9: #{custom-call.36} parent=5 // pred_check
        _
      $region10: #{custom-call.36} parent=5 // pred_check_branch
        %42 = sbr.rel (%p39) target = $region12
      $region11: #{custom-call.36} parent=5 // pred_region
        %s43 = ssub.s32 %s3, 1
      $region12: #{custom-call.36} parent=5 // pred_fallthru
        _
      %p44 = scmp.lt.s32.totalorder %s3, 2
      // Predicated region
      $region13: #{custom-call.36} parent=5 // pred_check
        %p45 = pneg %p44
      $region14: #{custom-call.36} parent=5 // pred_check_branch
        %47 = sbr.rel (%p45) target = $region16
      $region15: #{custom-call.36} parent=5 // pred_region
        %s48 = sand.u32 %s3, 1
        %s49 = sand.u32 %s3, 1
        %s50 = smul.addr %s49, 4
        %s51 = scalar_lea.vmem [#allocation1], %s50
        %s52 = sadd.s32 %s13, %s12
        %s53 = sadd.s32 %s52, %s11
        %s54 = sadd.s32 %s53, %s10
        %s55 = smul.addr %s54, 4
        %s56 = scalar_lea.vmem %s0, %s55
        // Predicated region
        $region17: #{custom-call.36} parent=15 // pred_check
          _
        $region18: #{custom-call.36} parent=15 // pred_check_branch
          %58 = sbr.rel (0) target = $region20
        $region19: #{custom-call.36} parent=15 // pred_region
          // Predicated region
          $region21: #{custom-call.36} parent=19 // pred_check
            _
          $region22: #{custom-call.36} parent=19 // pred_check_branch
            %60 = sbr.rel target = $region24
          $region23: #{custom-call.36} parent=19 // pred_region
            // Predicated region
            $region36: #{custom-call.36} parent=23 // pred_check
              _
            $region37: #{custom-call.36} parent=23 // pred_check_branch
              %75 = sbr.rel (0) target = $region39
            $region38: #{custom-call.36} parent=23 // pred_region
              loop: start=0, step=1, limit=1
              $region40: #{custom-call.36} parent=38 // loop_pre_header
                _
              $region41: #{custom-call.36} parent=38 // loop_header
                %s78 = sphi 0, %s82
                %p79 = scmp.ge.s32.totalorder %s78, 1
                %s83 = sphi %s56, %s56
                %s84 = sphi %s51, %s51
              $region42: #{custom-call.36} parent=38 // loop_header_branch
                %81 = sbr.rel (%p79) target = $region46
              $region43: #{custom-call.36} parent=38 // loop_body
                %v85 = vld [vmem:[%s83] sm:$0xf]
                %86 = vst [vmem:[%s84] sm:$0xf] %v85
              $region44: #{custom-call.36} parent=38 // loop_footer
                %s82 = sadd.s32 1, %s78
              $region45: #{custom-call.36} parent=38 // loop_footer_branch
                %77 = sbr.rel target = $region41
              $region46: #{custom-call.36} parent=38 // loop_exit
                _
            $region39: #{custom-call.36} parent=23 // pred_fallthru
              _
          $region24: #{custom-call.36} parent=19 // pred_fallthru
            _
          // Predicated region
          $region25: #{custom-call.36} parent=19 // pred_check
            _
          $region26: #{custom-call.36} parent=19 // pred_check_branch
            %62 = sbr.rel (0) target = $region28
          $region27: #{custom-call.36} parent=19 // pred_region
            loop: start=0, step=1, limit=1
            $region29: #{custom-call.36} parent=27 // loop_pre_header
              _
            $region30: #{custom-call.36} parent=27 // loop_header
              %s65 = sphi 0, %s69
              %p66 = scmp.ge.s32.totalorder %s65, 1
              %s70 = sphi %s56, %s56
              %s71 = sphi %s51, %s51
            $region31: #{custom-call.36} parent=27 // loop_header_branch
              %68 = sbr.rel (%p66) target = $region35
            $region32: #{custom-call.36} parent=27 // loop_body
              %v72 = vld [vmem:[%s70] sm:$0xf]
              %73 = vst [vmem:[%s71] sm:$0xf] %v72
            $region33: #{custom-call.36} parent=27 // loop_footer
              %s69 = sadd.s32 1, %s65
            $region34: #{custom-call.36} parent=27 // loop_footer_branch
              %64 = sbr.rel target = $region30
            $region35: #{custom-call.36} parent=27 // loop_exit
              _
          $region28: #{custom-call.36} parent=19 // pred_fallthru
            _
        $region20: #{custom-call.36} parent=15 // pred_fallthru
          _
        %87 = vnop
      $region16: #{custom-call.36} parent=5 // pred_fallthru
        _
      %p88 = scmp.le.s32.totalorder 1, %s3
      %p89 = scmp.lt.s32.totalorder %s3, 3
      %p90 = pnand %p88, %p89
      %p91 = pneg %p90
      // Predicated region
      $region47: #{custom-call.36} parent=5 // pred_check
        _
      $region48: #{custom-call.36} parent=5 // pred_check_branch
        %93 = sbr.rel (%p90) target = $region50
      $region49: #{custom-call.36} parent=5 // pred_region
        #allocation4 [shape = 'f32[4,4]{1,0}', space=vmem, size = 0x1000, scoped, tag = 'rescaled input a']
        %s94 = ssub.s32 %s3, 1
        %s95 = sand.u32 %s8, 1
        %s96 = sand.u32 %s8, 1
        %s97 = smul.addr %s96, 4
        %s98 = scalar_lea.vmem [#allocation1], %s97
        %s99 = sand.u32 %s8, 1
        %s100 = sand.u32 %s8, 1
        %s101 = smul.addr %s100, 4
        %s102 = scalar_lea.vmem [#allocation1], %s101
        %s103 = sand.u32 %s8, 1
        %s104 = sand.u32 %s8, 1
        %s105 = smul.addr %s104, 4
        %s106 = scalar_lea.vmem [#allocation3], %s105
        %s108 = sshllo.u32 0, 4
        %v109 = vld [vmem:[%s102] sm:%s108]
        %110 = vst [vmem:[#allocation0] sm:%s108] %v109
        %v111 = vlaneseq
        %v112 = vand.u32 %v111, 127
        %vm113 = vcmp.lt.s32.totalorder %v112, 4
        %v114 = vlaneseq
        %v115 = vshrl.u32 %v114, 7
        %vm117 = vcmp.eq.s32.totalorder %v115, %v112
        %v118 = vld [vmem:[#allocation0] sm:$0xff]
        %v119 = vsel %vm117, %v118, 0.0
        %120 = vadd.xlane.f32.xlu0 %v119
        %v121 = vpop.xlane.xlu0 %120
        %vm122 = vcmp.ge.s32.totalorder %v115, %v112
        %vm123 = vmand %vm122, %vm113
        %v124 = vsel %vm123, %v118, 0.0
        %v125 = vrcp.pop %v121
        %v126 = vmul.f32 %v124, %v125
        %127 = vst [vmem:[#allocation4] sm:$0xff] %v126
        %v128 = vlaneseq
        %v129 = vand.u32 %v128, 127
        %v130 = vlaneseq
        %v131 = vshrl.u32 %v130, 7
        %vm133 = vcmp.eq.s32.totalorder %v129, %v131
        %v134 = vlaneseq
        %v135 = vand.u32 %v134, 127
        %vm136 = vcmp.eq.s32.totalorder %v135, 0
        %v137 = vsel %vm136, 1.0, -1.0
        %v138 = vsel %vm133, %v137, 0.0
        %s139 = scalar_lea.vmem [#allocation4], 1
        %v140 = vld [vmem:[%s139] ss:$0 sm:$0xff]
        %v141 = vxor.u32 %v140, 2147483648
        %v142 = vlaneseq
        %v143 = vand.u32 %v142, 127
        %vm144 = vcmp.eq.s32.totalorder %v143, 1
        %v145 = vmul.f32 %v141, %v138
        %146 = vadd.xlane.f32.xlu0 %v145
        %v147 = vpop.xlane.xlu0 %146
        %v148 = vsel %vm144, %v147, %v138
        %s149 = scalar_lea.vmem [#allocation4], 2
        %v150 = vld [vmem:[%s149] ss:$0 sm:$0xff]
        %v151 = vxor.u32 %v150, 2147483648
        %v152 = vlaneseq
        %v153 = vand.u32 %v152, 127
        %vm154 = vcmp.eq.s32.totalorder %v153, 2
        %v155 = vmul.f32 %v151, %v148
        %156 = vadd.xlane.f32.xlu0 %v155
        %v157 = vpop.xlane.xlu0 %156
        %v158 = vsel %vm154, %v157, %v148
        %s159 = scalar_lea.vmem [#allocation4], 3
        %v160 = vld [vmem:[%s159] ss:$0 sm:$0xff]
        %v161 = vxor.u32 %v160, 2147483648
        %v162 = vlaneseq
        %v163 = vand.u32 %v162, 127
        %vm164 = vcmp.eq.s32.totalorder %v163, 3
        %v165 = vmul.f32 %v161, %v158
        %166 = vadd.xlane.f32.xlu0 %v165
        %v167 = vpop.xlane.xlu0 %166
        %v168 = vsel %vm164, %v167, %v158
        %v169 = vrcp.pop %v121
        %v170 = vmul.f32 %v168, %v169
        %vm171 = vweird.f32 %v121
        %v172 = vsel %vm171, %v168, %v170
        %173 = vst [vmem:[#allocation2] sm:$0xff] %v172
        %s175 = sshllo.u32 0, 4
        %v177 = vld [vmem:[#allocation2] sm:%s175]
        %s178 = sshllo.u32 0, 4
        %179 = vst [vmem:[%s106] sm:%s178] %v177
        %s180 = sand.u32 %s8, 1
        %s181 = sand.u32 %s8, 1
        %s182 = smul.addr %s181, 4
        %s183 = scalar_lea.vmem [#allocation3], %s182
        %s184 = sadd.s32 %s17, %s16
        %s185 = sadd.s32 %s184, %s15
        %s186 = sadd.s32 %s185, %s14
        %s187 = smul.addr %s186, 4
        %s188 = scalar_lea.vmem %s1, %s187
        // Predicated region
        $region51: #{custom-call.36} parent=49 // pred_check
          _
        $region52: #{custom-call.36} parent=49 // pred_check_branch
          %190 = sbr.rel (0) target = $region54
        $region53: #{custom-call.36} parent=49 // pred_region
          // Predicated region
          $region55: #{custom-call.36} parent=53 // pred_check
            _
          $region56: #{custom-call.36} parent=53 // pred_check_branch
            %192 = sbr.rel target = $region58
          $region57: #{custom-call.36} parent=53 // pred_region
            // Predicated region
            $region70: #{custom-call.36} parent=57 // pred_check
              _
            $region71: #{custom-call.36} parent=57 // pred_check_branch
              %207 = sbr.rel (0) target = $region73
            $region72: #{custom-call.36} parent=57 // pred_region
              loop: start=0, step=1, limit=1
              $region74: #{custom-call.36} parent=72 // loop_pre_header
                _
              $region75: #{custom-call.36} parent=72 // loop_header
                %s210 = sphi 0, %s214
                %p211 = scmp.ge.s32.totalorder %s210, 1
                %s215 = sphi %s183, %s183
                %s216 = sphi %s188, %s188
              $region76: #{custom-call.36} parent=72 // loop_header_branch
                %213 = sbr.rel (%p211) target = $region80
              $region77: #{custom-call.36} parent=72 // loop_body
                %v217 = vld [vmem:[%s215] sm:$0xf]
                %218 = vst [vmem:[%s216] sm:$0xf] %v217
              $region78: #{custom-call.36} parent=72 // loop_footer
                %s214 = sadd.s32 1, %s210
              $region79: #{custom-call.36} parent=72 // loop_footer_branch
                %209 = sbr.rel target = $region75
              $region80: #{custom-call.36} parent=72 // loop_exit
                _
            $region73: #{custom-call.36} parent=57 // pred_fallthru
              _
          $region58: #{custom-call.36} parent=53 // pred_fallthru
            _
          // Predicated region
          $region59: #{custom-call.36} parent=53 // pred_check
            _
          $region60: #{custom-call.36} parent=53 // pred_check_branch
            %194 = sbr.rel (0) target = $region62
          $region61: #{custom-call.36} parent=53 // pred_region
            loop: start=0, step=1, limit=1
            $region63: #{custom-call.36} parent=61 // loop_pre_header
              _
            $region64: #{custom-call.36} parent=61 // loop_header
              %s197 = sphi 0, %s201
              %p198 = scmp.ge.s32.totalorder %s197, 1
              %s202 = sphi %s183, %s183
              %s203 = sphi %s188, %s188
            $region65: #{custom-call.36} parent=61 // loop_header_branch
              %200 = sbr.rel (%p198) target = $region69
            $region66: #{custom-call.36} parent=61 // loop_body
              %v204 = vld [vmem:[%s202] sm:$0xf]
              %205 = vst [vmem:[%s203] sm:$0xf] %v204
            $region67: #{custom-call.36} parent=61 // loop_footer
              %s201 = sadd.s32 1, %s197
            $region68: #{custom-call.36} parent=61 // loop_footer_branch
              %196 = sbr.rel target = $region64
            $region69: #{custom-call.36} parent=61 // loop_exit
              _
          $region62: #{custom-call.36} parent=53 // pred_fallthru
            _
        $region54: #{custom-call.36} parent=49 // pred_fallthru
          _
        %219 = vnop
      $region50: #{custom-call.36} parent=5 // pred_fallthru
        _
      %p220 = scmp.le.s32.totalorder 2, %s3
      // Predicated region
      $region81: #{custom-call.36} parent=5 // pred_check
        %p221 = pneg %p220
      $region82: #{custom-call.36} parent=5 // pred_check_branch
        %223 = sbr.rel (%p221) target = $region84
      $region83: #{custom-call.36} parent=5 // pred_region
        %s224 = ssub.s32 %s3, 2
        %s225 = sand.u32 %s9, 1
        %s226 = sand.u32 %s9, 1
        %s227 = smul.addr %s226, 4
        %s228 = scalar_lea.vmem [#allocation3], %s227
      $region84: #{custom-call.36} parent=5 // pred_fallthru
        _
    $region6: #{custom-call.36} parent=1 // loop_footer
      %s7 = sadd.s32 1, %s3
    $region7: #{custom-call.36} parent=1 // loop_footer_branch
      %2 = sbr.rel target = $region3
    $region8: #{custom-call.36} parent=1 // loop_exit
      _

// kernel: custom-call.37
$region0: #{custom-call.37}
  %s0 = inlined_call_operand.vmem [shape: f32[2,1,4,4], index: 0, kind: input, shape index: {}]
  %s1 = inlined_call_operand.vmem [shape: f32[2,1,4,4], index: 1, kind: output, shape index: {}]
  $region1: #{custom-call.37} parent=0
    #allocation0 [shape = 'u8[4096]{0}', space=vmem, size = 0x1000, scoped, tag = 'operand span for operand 0']
    #allocation1 [shape = 'u8[4096]{0}', space=vmem, size = 0x1000, scoped, tag = 'packed  for operand 0']
    #allocation2 [shape = 'u8[4096]{0}', space=vmem, size = 0x1000, scoped, tag = 'operand span for operand 1']
    #allocation3 [shape = 'u8[4096]{0}', space=vmem, size = 0x1000, scoped, tag = 'packed  for operand 1']
    loop: start=0, step=1, limit=4
    $region2: #{custom-call.37} parent=1 // loop_pre_header
      _
    $region3: #{custom-call.37} parent=1 // loop_header
      %s3 = sphi 0, %s7
      %p4 = scmp.ge.s32.totalorder %s3, 4
      %s10 = sphi 0, %s36
      %s11 = sphi 0, %s32
      %s12 = sphi 0, %s28
      %s13 = sphi 0, %s24
      %s14 = sphi 0, %s10
      %s15 = sphi 0, %s11
      %s16 = sphi 0, %s12
      %s17 = sphi 0, %s13
      %s18 = sphi 0, %s14
      %s19 = sphi 0, %s15
      %s20 = sphi 0, %s16
      %s21 = sphi 0, %s17
    $region4: #{custom-call.37} parent=1 // loop_header_branch
      %6 = sbr.rel (%p4) target = $region8
    $region5: #{custom-call.37} parent=1 // loop_body
      %s8 = ssub.s32 %s3, 1
      %s9 = ssub.s32 %s3, 2
      %s22 = sadd.s32 1, %s13
      %p23 = scmp.ge.s32.totalorder %s22, 1
      %s24 = scalar_select %p23, 0, %s22
      %s25 = sadd.s32 1, %s12
      %s26 = scalar_select %p23, %s25, %s12
      %p27 = scmp.ge.s32.totalorder %s26, 1
      %s28 = scalar_select %p27, 0, %s26
      %s29 = sadd.s32 1, %s11
      %s30 = scalar_select %p27, %s29, %s11
      %p31 = scmp.ge.s32.totalorder %s30, 1
      %s32 = scalar_select %p31, 0, %s30
      %s33 = sadd.s32 1, %s10
      %s34 = scalar_select %p31, %s33, %s10
      %p35 = scmp.ge.s32.totalorder %s34, 2
      %s36 = scalar_select %p35, 0, %s34
      %p37 = scmp.le.s32.totalorder 1, %s3
      %p38 = scmp.lt.s32.totalorder %s3, 3
      %p39 = pnand %p37, %p38
      %p40 = pneg %p39
      // Predicated region
      $region9: #{custom-call.37} parent=5 // pred_check
        _
      $region10: #{custom-call.37} parent=5 // pred_check_branch
        %42 = sbr.rel (%p39) target = $region12
      $region11: #{custom-call.37} parent=5 // pred_region
        %s43 = ssub.s32 %s3, 1
      $region12: #{custom-call.37} parent=5 // pred_fallthru
        _
      %p44 = scmp.lt.s32.totalorder %s3, 2
      // Predicated region
      $region13: #{custom-call.37} parent=5 // pred_check
        %p45 = pneg %p44
      $region14: #{custom-call.37} parent=5 // pred_check_branch
        %47 = sbr.rel (%p45) target = $region16
      $region15: #{custom-call.37} parent=5 // pred_region
        %s48 = sand.u32 %s3, 1
        %s49 = sand.u32 %s3, 1
        %s50 = smul.addr %s49, 4
        %s51 = scalar_lea.vmem [#allocation1], %s50
        %s52 = sadd.s32 %s13, %s12
        %s53 = sadd.s32 %s52, %s11
        %s54 = sadd.s32 %s53, %s10
        %s55 = smul.addr %s54, 4
        %s56 = scalar_lea.vmem %s0, %s55
        // Predicated region
        $region17: #{custom-call.37} parent=15 // pred_check
          _
        $region18: #{custom-call.37} parent=15 // pred_check_branch
          %58 = sbr.rel (0) target = $region20
        $region19: #{custom-call.37} parent=15 // pred_region
          // Predicated region
          $region21: #{custom-call.37} parent=19 // pred_check
            _
          $region22: #{custom-call.37} parent=19 // pred_check_branch
            %60 = sbr.rel target = $region24
          $region23: #{custom-call.37} parent=19 // pred_region
            // Predicated region
            $region36: #{custom-call.37} parent=23 // pred_check
              _
            $region37: #{custom-call.37} parent=23 // pred_check_branch
              %75 = sbr.rel (0) target = $region39
            $region38: #{custom-call.37} parent=23 // pred_region
              loop: start=0, step=1, limit=1
              $region40: #{custom-call.37} parent=38 // loop_pre_header
                _
              $region41: #{custom-call.37} parent=38 // loop_header
                %s78 = sphi 0, %s82
                %p79 = scmp.ge.s32.totalorder %s78, 1
                %s83 = sphi %s56, %s56
                %s84 = sphi %s51, %s51
              $region42: #{custom-call.37} parent=38 // loop_header_branch
                %81 = sbr.rel (%p79) target = $region46
              $region43: #{custom-call.37} parent=38 // loop_body
                %v85 = vld [vmem:[%s83] sm:$0xf]
                %86 = vst [vmem:[%s84] sm:$0xf] %v85
              $region44: #{custom-call.37} parent=38 // loop_footer
                %s82 = sadd.s32 1, %s78
              $region45: #{custom-call.37} parent=38 // loop_footer_branch
                %77 = sbr.rel target = $region41
              $region46: #{custom-call.37} parent=38 // loop_exit
                _
            $region39: #{custom-call.37} parent=23 // pred_fallthru
              _
          $region24: #{custom-call.37} parent=19 // pred_fallthru
            _
          // Predicated region
          $region25: #{custom-call.37} parent=19 // pred_check
            _
          $region26: #{custom-call.37} parent=19 // pred_check_branch
            %62 = sbr.rel (0) target = $region28
          $region27: #{custom-call.37} parent=19 // pred_region
            loop: start=0, step=1, limit=1
            $region29: #{custom-call.37} parent=27 // loop_pre_header
              _
            $region30: #{custom-call.37} parent=27 // loop_header
              %s65 = sphi 0, %s69
              %p66 = scmp.ge.s32.totalorder %s65, 1
              %s70 = sphi %s56, %s56
              %s71 = sphi %s51, %s51
            $region31: #{custom-call.37} parent=27 // loop_header_branch
              %68 = sbr.rel (%p66) target = $region35
            $region32: #{custom-call.37} parent=27 // loop_body
              %v72 = vld [vmem:[%s70] sm:$0xf]
              %73 = vst [vmem:[%s71] sm:$0xf] %v72
            $region33: #{custom-call.37} parent=27 // loop_footer
              %s69 = sadd.s32 1, %s65
            $region34: #{custom-call.37} parent=27 // loop_footer_branch
              %64 = sbr.rel target = $region30
            $region35: #{custom-call.37} parent=27 // loop_exit
              _
          $region28: #{custom-call.37} parent=19 // pred_fallthru
            _
        $region20: #{custom-call.37} parent=15 // pred_fallthru
          _
        %87 = vnop
      $region16: #{custom-call.37} parent=5 // pred_fallthru
        _
      %p88 = scmp.le.s32.totalorder 1, %s3
      %p89 = scmp.lt.s32.totalorder %s3, 3
      %p90 = pnand %p88, %p89
      %p91 = pneg %p90
      // Predicated region
      $region47: #{custom-call.37} parent=5 // pred_check
        _
      $region48: #{custom-call.37} parent=5 // pred_check_branch
        %93 = sbr.rel (%p90) target = $region50
      $region49: #{custom-call.37} parent=5 // pred_region
        #allocation4 [shape = 'f32[4,4]{1,0}', space=vmem, size = 0x1000, scoped, tag = 'rescaled input a']
        %s94 = ssub.s32 %s3, 1
        %s95 = sand.u32 %s8, 1
        %s96 = sand.u32 %s8, 1
        %s97 = smul.addr %s96, 4
        %s98 = scalar_lea.vmem [#allocation1], %s97
        %s99 = sand.u32 %s8, 1
        %s100 = sand.u32 %s8, 1
        %s101 = smul.addr %s100, 4
        %s102 = scalar_lea.vmem [#allocation1], %s101
        %s103 = sand.u32 %s8, 1
        %s104 = sand.u32 %s8, 1
        %s105 = smul.addr %s104, 4
        %s106 = scalar_lea.vmem [#allocation3], %s105
        %s108 = sshllo.u32 0, 4
        %v109 = vld [vmem:[%s102] sm:%s108]
        %110 = vst [vmem:[#allocation0] sm:%s108] %v109
        %v111 = vlaneseq
        %v112 = vand.u32 %v111, 127
        %vm113 = vcmp.lt.s32.totalorder %v112, 4
        %v114 = vlaneseq
        %v115 = vshrl.u32 %v114, 7
        %vm117 = vcmp.eq.s32.totalorder %v115, %v112
        %v118 = vld [vmem:[#allocation0] sm:$0xff]
        %v119 = vsel %vm117, %v118, 0.0
        %120 = vadd.xlane.f32.xlu0 %v119
        %v121 = vpop.xlane.xlu0 %120
        %vm122 = vcmp.le.s32.totalorder %v115, %v112
        %vm123 = vmand %vm122, %vm113
        %v124 = vsel %vm123, %v118, 0.0
        %v125 = vrcp.pop %v121
        %v126 = vmul.f32 %v124, %v125
        %127 = vst [vmem:[#allocation4] sm:$0xff] %v126
        %v128 = vlaneseq
        %v129 = vand.u32 %v128, 127
        %v130 = vlaneseq
        %v131 = vshrl.u32 %v130, 7
        %vm133 = vcmp.eq.s32.totalorder %v129, %v131
        %v134 = vlaneseq
        %v135 = vand.u32 %v134, 127
        %vm136 = vcmp.eq.s32.totalorder %v135, 3
        %v137 = vsel %vm136, 1.0, -1.0
        %v138 = vsel %vm133, %v137, 0.0
        %s139 = scalar_lea.vmem [#allocation4], 2
        %v140 = vld [vmem:[%s139] ss:$0 sm:$0xff]
        %v141 = vxor.u32 %v140, 2147483648
        %v142 = vlaneseq
        %v143 = vand.u32 %v142, 127
        %vm144 = vcmp.eq.s32.totalorder %v143, 2
        %v145 = vmul.f32 %v141, %v138
        %146 = vadd.xlane.f32.xlu0 %v145
        %v147 = vpop.xlane.xlu0 %146
        %v148 = vsel %vm144, %v147, %v138
        %s149 = scalar_lea.vmem [#allocation4], 1
        %v150 = vld [vmem:[%s149] ss:$0 sm:$0xff]
        %v151 = vxor.u32 %v150, 2147483648
        %v152 = vlaneseq
        %v153 = vand.u32 %v152, 127
        %vm154 = vcmp.eq.s32.totalorder %v153, 1
        %v155 = vmul.f32 %v151, %v148
        %156 = vadd.xlane.f32.xlu0 %v155
        %v157 = vpop.xlane.xlu0 %156
        %v158 = vsel %vm154, %v157, %v148
        %v159 = vld [vmem:[#allocation4] ss:$0 sm:$0xff]
        %v160 = vxor.u32 %v159, 2147483648
        %v161 = vlaneseq
        %v162 = vand.u32 %v161, 127
        %vm163 = vcmp.eq.s32.totalorder %v162, 0
        %v164 = vmul.f32 %v160, %v158
        %165 = vadd.xlane.f32.xlu0 %v164
        %v166 = vpop.xlane.xlu0 %165
        %v167 = vsel %vm163, %v166, %v158
        %v168 = vrcp.pop %v121
        %v169 = vmul.f32 %v167, %v168
        %vm170 = vweird.f32 %v121
        %v171 = vsel %vm170, %v167, %v169
        %172 = vst [vmem:[#allocation2] sm:$0xff] %v171
        %s174 = sshllo.u32 0, 4
        %v176 = vld [vmem:[#allocation2] sm:%s174]
        %s177 = sshllo.u32 0, 4
        %178 = vst [vmem:[%s106] sm:%s177] %v176
        %s179 = sand.u32 %s8, 1
        %s180 = sand.u32 %s8, 1
        %s181 = smul.addr %s180, 4
        %s182 = scalar_lea.vmem [#allocation3], %s181
        %s183 = sadd.s32 %s17, %s16
        %s184 = sadd.s32 %s183, %s15
        %s185 = sadd.s32 %s184, %s14
        %s186 = smul.addr %s185, 4
        %s187 = scalar_lea.vmem %s1, %s186
        // Predicated region
        $region51: #{custom-call.37} parent=49 // pred_check
          _
        $region52: #{custom-call.37} parent=49 // pred_check_branch
          %189 = sbr.rel (0) target = $region54
        $region53: #{custom-call.37} parent=49 // pred_region
          // Predicated region
          $region55: #{custom-call.37} parent=53 // pred_check
            _
          $region56: #{custom-call.37} parent=53 // pred_check_branch
            %191 = sbr.rel target = $region58
          $region57: #{custom-call.37} parent=53 // pred_region
            // Predicated region
            $region70: #{custom-call.37} parent=57 // pred_check
              _
            $region71: #{custom-call.37} parent=57 // pred_check_branch
              %206 = sbr.rel (0) target = $region73
            $region72: #{custom-call.37} parent=57 // pred_region
              loop: start=0, step=1, limit=1
              $region74: #{custom-call.37} parent=72 // loop_pre_header
                _
              $region75: #{custom-call.37} parent=72 // loop_header
                %s209 = sphi 0, %s213
                %p210 = scmp.ge.s32.totalorder %s209, 1
                %s214 = sphi %s182, %s182
                %s215 = sphi %s187, %s187
              $region76: #{custom-call.37} parent=72 // loop_header_branch
                %212 = sbr.rel (%p210) target = $region80
              $region77: #{custom-call.37} parent=72 // loop_body
                %v216 = vld [vmem:[%s214] sm:$0xf]
                %217 = vst [vmem:[%s215] sm:$0xf] %v216
              $region78: #{custom-call.37} parent=72 // loop_footer
                %s213 = sadd.s32 1, %s209
              $region79: #{custom-call.37} parent=72 // loop_footer_branch
                %208 = sbr.rel target = $region75
              $region80: #{custom-call.37} parent=72 // loop_exit
                _
            $region73: #{custom-call.37} parent=57 // pred_fallthru
              _
          $region58: #{custom-call.37} parent=53 // pred_fallthru
            _
          // Predicated region
          $region59: #{custom-call.37} parent=53 // pred_check
            _
          $region60: #{custom-call.37} parent=53 // pred_check_branch
            %193 = sbr.rel (0) target = $region62
          $region61: #{custom-call.37} parent=53 // pred_region
            loop: start=0, step=1, limit=1
            $region63: #{custom-call.37} parent=61 // loop_pre_header
              _
            $region64: #{custom-call.37} parent=61 // loop_header
              %s196 = sphi 0, %s200
              %p197 = scmp.ge.s32.totalorder %s196, 1
              %s201 = sphi %s182, %s182
              %s202 = sphi %s187, %s187
            $region65: #{custom-call.37} parent=61 // loop_header_branch
              %199 = sbr.rel (%p197) target = $region69
            $region66: #{custom-call.37} parent=61 // loop_body
              %v203 = vld [vmem:[%s201] sm:$0xf]
              %204 = vst [vmem:[%s202] sm:$0xf] %v203
            $region67: #{custom-call.37} parent=61 // loop_footer
              %s200 = sadd.s32 1, %s196
            $region68: #{custom-call.37} parent=61 // loop_footer_branch
              %195 = sbr.rel target = $region64
            $region69: #{custom-call.37} parent=61 // loop_exit
              _
          $region62: #{custom-call.37} parent=53 // pred_fallthru
            _
        $region54: #{custom-call.37} parent=49 // pred_fallthru
          _
        %218 = vnop
      $region50: #{custom-call.37} parent=5 // pred_fallthru
        _
      %p219 = scmp.le.s32.totalorder 2, %s3
      // Predicated region
      $region81: #{custom-call.37} parent=5 // pred_check
        %p220 = pneg %p219
      $region82: #{custom-call.37} parent=5 // pred_check_branch
        %222 = sbr.rel (%p220) target = $region84
      $region83: #{custom-call.37} parent=5 // pred_region
        %s223 = ssub.s32 %s3, 2
        %s224 = sand.u32 %s9, 1
        %s225 = sand.u32 %s9, 1
        %s226 = smul.addr %s225, 4
        %s227 = scalar_lea.vmem [#allocation3], %s226
      $region84: #{custom-call.37} parent=5 // pred_fallthru
        _
    $region6: #{custom-call.37} parent=1 // loop_footer
      %s7 = sadd.s32 1, %s3
    $region7: #{custom-call.37} parent=1 // loop_footer_branch
      %2 = sbr.rel target = $region3
    $region8: #{custom-call.37} parent=1 // loop_exit
      _

</llo_original>
